<compile_context>
chip_gen: v6e
topology: v6e:2x2x1
jax: 0.10.0
libtpu: 0.0.40
codegen_flags: <defaults>
</compile_context>

<pallas_src>
import functools

import jax
import jax.numpy as jnp
from jax import lax
from jax.experimental import pallas as pl
from jax.experimental.pallas import tpu as pltpu  # noqa: F401  (kept per template)

# --- small synthetic config (stand-in for vinai/bertweet-base) ---------------
VOCAB = 100
SEQ = 8
HIDDEN = 32
HEADS = 2
HEAD_DIM = HIDDEN // HEADS
INTERMEDIATE = 64
LAYERS = 2
NUM_LABELS = 3
LOGIT_PAD = 128          # lane-dense classifier output width (sliced to 3 outside)
LN_EPS = 1e-12


# --- in-kernel helpers --------------------------------------------------------
def _layernorm(x, g, b):
    mu = jnp.mean(x, axis=-1, keepdims=True)
    var = jnp.mean(jnp.square(x - mu), axis=-1, keepdims=True)
    return (x - mu) * lax.rsqrt(var + LN_EPS) * g + b


# --- single fused Pallas kernel ----------------------------------------------
def fused_bert_kernel(x_ref, mask_ref, embg_ref, embb_ref,
                      wq_ref, bq_ref, wk_ref, bk_ref, wv_ref, bv_ref,
                      wo_ref, bo_ref, ln1g_ref, ln1b_ref,
                      wi_ref, bi_ref, wf_ref, bf_ref, ln2g_ref, ln2b_ref,
                      wc_ref, bc_ref,
                      logits_ref):
    BS, H = x_ref.shape            # (B*S, H)
    B = mask_ref.shape[0]
    S = BS // B

    mask = mask_ref[...]           # (B, 1, S) additive attention mask
    scale = 1.0 / (HEAD_DIM ** 0.5)

    # Embedding LayerNorm over the full (B*S, H) slab.
    x0 = _layernorm(x_ref[...], embg_ref[...], embb_ref[...])

    def layer_body(l, x):          # x: (B*S, H), l: layer index
        q = jnp.dot(x, wq_ref[l], preferred_element_type=jnp.float32) + bq_ref[l]
        k = jnp.dot(x, wk_ref[l], preferred_element_type=jnp.float32) + bk_ref[l]
        v = jnp.dot(x, wv_ref[l], preferred_element_type=jnp.float32) + bv_ref[l]

        q3 = q.reshape(B, S, H)
        k3 = k.reshape(B, S, H)
        v3 = v.reshape(B, S, H)

        ctx_heads = []
        for h in range(HEADS):                     # static loop, HEADS == 2
            lo = h * HEAD_DIM
            qh = q3[:, :, lo:lo + HEAD_DIM]        # (B, S, D)
            kh = k3[:, :, lo:lo + HEAD_DIM]
            vh = v3[:, :, lo:lo + HEAD_DIM]
            # batched Q.K^T, contracting on head dim (no transpose materialized)
            s = lax.dot_general(qh, kh, (((2,), (2,)), ((0,), (0,))),
                                preferred_element_type=jnp.float32)
            s = s * scale + mask                   # (B, S, S)
            s = s - jnp.max(s, axis=-1, keepdims=True)
            p = jnp.exp(s)
            p = p * pl.reciprocal(jnp.sum(p, axis=-1, keepdims=True), approx=True)
            ctx_heads.append(
                lax.dot_general(p, vh, (((2,), (1,)), ((0,), (0,))),
                                preferred_element_type=jnp.float32))
        ctx = jnp.concatenate(ctx_heads, axis=-1).reshape(BS, H)

        attn = jnp.dot(ctx, wo_ref[l], preferred_element_type=jnp.float32) + bo_ref[l]
        h1 = _layernorm(x + attn, ln1g_ref[l], ln1b_ref[l])

        # TODO(synk): HF BERT/RoBERTa uses exact erf GELU; tanh approx kept for
        # a guaranteed Mosaic lowering (synthetic weights, negligible delta).
        ff = jax.nn.gelu(
            jnp.dot(h1, wi_ref[l], preferred_element_type=jnp.float32) + bi_ref[l],
            approximate=True)
        ffo = jnp.dot(ff, wf_ref[l], preferred_element_type=jnp.float32) + bf_ref[l]
        return _layernorm(h1 + ffo, ln2g_ref[l], ln2b_ref[l])

    x_fin = lax.fori_loop(0, LAYERS, layer_body, x0, unroll=True)

    # CLS-token pooling + classifier, written as one lane-dense (B, 128) store.
    cls = x_fin.reshape(B, S, H)[:, 0, :]          # (B, H)
    logits_ref[...] = (jnp.dot(cls, wc_ref[...],
                               preferred_element_type=jnp.float32) + bc_ref[...])


# --- parameters ---------------------------------------------------------------
def init_params(key):
    def dense(k, fan_in, fan_out):
        k1, k2 = jax.random.split(k)
        w = jax.random.normal(k1, (fan_in, fan_out), jnp.float32) * 0.02
        b = jax.random.normal(k2, (1, fan_out), jnp.float32) * 0.02
        return w, b

    keys = jax.random.split(key, 3 + LAYERS)
    params = {
        "word_emb": jax.random.normal(keys[0], (VOCAB, HIDDEN), jnp.float32) * 0.02,
        "pos_emb": jax.random.normal(keys[1], (SEQ, HIDDEN), jnp.float32) * 0.02,
        "emb_ln_g": jnp.ones((1, HIDDEN), jnp.float32),
        "emb_ln_b": jnp.zeros((1, HIDDEN), jnp.float32),
    }

    # stacked per-layer weights: (LAYERS, in, out) / (LAYERS, 1, out)
    acc = {n: [] for n in ("wq", "bq", "wk", "bk", "wv", "bv",
                           "wo", "bo", "wi", "bi", "wf", "bf")}
    for l in range(LAYERS):
        lk = jax.random.split(keys[2 + l], 6)
        for name, k, fi, fo in (("wq", lk[0], HIDDEN, HIDDEN),
                                ("wk", lk[1], HIDDEN, HIDDEN),
                                ("wv", lk[2], HIDDEN, HIDDEN),
                                ("wo", lk[3], HIDDEN, HIDDEN),
                                ("wi", lk[4], HIDDEN, INTERMEDIATE),
                                ("wf", lk[5], INTERMEDIATE, HIDDEN)):
            w, b = dense(k, fi, fo)
            acc[name].append(w)
            acc["b" + name[1]].append(b)
    for name, vals in acc.items():
        params[name] = jnp.stack(vals, axis=0)

    params["ln1g"] = jnp.ones((LAYERS, 1, HIDDEN), jnp.float32)
    params["ln1b"] = jnp.zeros((LAYERS, 1, HIDDEN), jnp.float32)
    params["ln2g"] = jnp.ones((LAYERS, 1, HIDDEN), jnp.float32)
    params["ln2b"] = jnp.zeros((LAYERS, 1, HIDDEN), jnp.float32)

    wc, bc = dense(keys[2 + LAYERS], HIDDEN, NUM_LABELS)
    params["wc"], params["bc"] = wc, bc
    return params


# --- forward pass ---------------------------------------------------------------
@jax.jit
def bert_sent_classifier(params, input_ids, attention_mask):
    B, S = input_ids.shape
    # glue: embedding gather (word + position); LN runs inside the fused kernel.
    x = params["word_emb"][input_ids] + params["pos_emb"][None, :S, :]
    x2 = x.reshape(B * S, HIDDEN)
    # additive attention mask, broadcast over query positions inside the kernel.
    add_mask = ((1.0 - attention_mask.astype(jnp.float32)) * -1e9)[:, None, :]

    # pad the classifier to a lane-dense (H, 128) / (1, 128) so the kernel's
    # only HBM store is an unmasked full-lane write; slice back to NUM_LABELS.
    wc_pad = jnp.zeros((HIDDEN, LOGIT_PAD), jnp.float32).at[:, :NUM_LABELS].set(params["wc"])
    bc_pad = jnp.zeros((1, LOGIT_PAD), jnp.float32).at[:, :NUM_LABELS].set(params["bc"])

    logits_pad = pl.pallas_call(
        fused_bert_kernel,
        out_shape=jax.ShapeDtypeStruct((B, LOGIT_PAD), jnp.float32),
    )(x2, add_mask,
      params["emb_ln_g"], params["emb_ln_b"],
      params["wq"], params["bq"], params["wk"], params["bk"],
      params["wv"], params["bv"], params["wo"], params["bo"],
      params["ln1g"], params["ln1b"],
      params["wi"], params["bi"], params["wf"], params["bf"],
      params["ln2g"], params["ln2b"],
      wc_pad, bc_pad)

    # dropout: identity in eval mode.
    return logits_pad[:, :NUM_LABELS]


if __name__ == "__main__":
    key = jax.random.PRNGKey(0)
    pkey, ikey = jax.random.split(key)
    params = init_params(pkey)

    input_ids = jax.random.randint(ikey, (2, SEQ), 0, VOCAB, dtype=jnp.int32)
    attention_mask = jnp.array(
        [[1] * SEQ, [1] * 5 + [0] * (SEQ - 5)], dtype=jnp.int32)

    logits = bert_sent_classifier(params, input_ids, attention_mask)
    jax.block_until_ready(logits)
    assert logits.shape == (2, NUM_LABELS) and logits.dtype == jnp.float32
    print("KERNEL_OK")
</pallas_src>

<mosaic_0001>
module attributes {stable_mosaic.version = 11 : i64} {
  func.func @fused_bert_kernel(%arg0: memref<16x32xf32, #tpu.memory_space<vmem>>, %arg1: memref<2x1x8xf32, #tpu.memory_space<vmem>>, %arg2: memref<1x32xf32, #tpu.memory_space<vmem>>, %arg3: memref<1x32xf32, #tpu.memory_space<vmem>>, %arg4: memref<2x32x32xf32, #tpu.memory_space<vmem>>, %arg5: memref<2x1x32xf32, #tpu.memory_space<vmem>>, %arg6: memref<2x32x32xf32, #tpu.memory_space<vmem>>, %arg7: memref<2x1x32xf32, #tpu.memory_space<vmem>>, %arg8: memref<2x32x32xf32, #tpu.memory_space<vmem>>, %arg9: memref<2x1x32xf32, #tpu.memory_space<vmem>>, %arg10: memref<2x32x32xf32, #tpu.memory_space<vmem>>, %arg11: memref<2x1x32xf32, #tpu.memory_space<vmem>>, %arg12: memref<2x1x32xf32, #tpu.memory_space<vmem>>, %arg13: memref<2x1x32xf32, #tpu.memory_space<vmem>>, %arg14: memref<2x32x64xf32, #tpu.memory_space<vmem>>, %arg15: memref<2x1x64xf32, #tpu.memory_space<vmem>>, %arg16: memref<2x64x32xf32, #tpu.memory_space<vmem>>, %arg17: memref<2x1x32xf32, #tpu.memory_space<vmem>>, %arg18: memref<2x1x32xf32, #tpu.memory_space<vmem>>, %arg19: memref<2x1x32xf32, #tpu.memory_space<vmem>>, %arg20: memref<32x128xf32, #tpu.memory_space<vmem>>, %arg21: memref<1x128xf32, #tpu.memory_space<vmem>>, %arg22: memref<2x128xf32, #tpu.memory_space<vmem>>) attributes {dimension_semantics = [], scalar_prefetch = 0 : i64, scratch_operands = 0 : i64, tpu.core_type = #tpu.core_type<tc>} {
    %c0 = arith.constant 0 : index
    %c0_0 = arith.constant 0 : index
    %c0_1 = arith.constant 0 : index
    %0 = vector.load %arg1[%c0, %c0_0, %c0_1] : memref<2x1x8xf32, #tpu.memory_space<vmem>>, vector<2x1x8xf32>
    %c0_2 = arith.constant 0 : index
    %c0_3 = arith.constant 0 : index
    %1 = vector.load %arg0[%c0_2, %c0_3] : memref<16x32xf32, #tpu.memory_space<vmem>>, vector<16x32xf32>
    %c0_4 = arith.constant 0 : index
    %c0_5 = arith.constant 0 : index
    %2 = vector.load %arg2[%c0_4, %c0_5] : memref<1x32xf32, #tpu.memory_space<vmem>>, vector<1x32xf32>
    %c0_6 = arith.constant 0 : index
    %c0_7 = arith.constant 0 : index
    %3 = vector.load %arg3[%c0_6, %c0_7] : memref<1x32xf32, #tpu.memory_space<vmem>>, vector<1x32xf32>
    %cst = arith.constant dense<0.000000e+00> : vector<16xf32>
    %4 = vector.multi_reduction <add>, %1, %cst [1] : vector<16x32xf32> to vector<16xf32>
    %5 = vector.shape_cast %4 : vector<16xf32> to vector<16x1xf32>
    %cst_8 = arith.constant 3.200000e+01 : f32
    %6 = vector.broadcast %cst_8 : f32 to vector<16x1xf32>
    %7 = arith.divf %5, %6 : vector<16x1xf32>
    %8 = vector.broadcast %7 : vector<16x1xf32> to vector<16x32xf32>
    %9 = arith.subf %1, %8 : vector<16x32xf32>
    %10 = arith.mulf %9, %9 : vector<16x32xf32>
    %cst_9 = arith.constant dense<0.000000e+00> : vector<16xf32>
    %11 = vector.multi_reduction <add>, %10, %cst_9 [1] : vector<16x32xf32> to vector<16xf32>
    %12 = vector.shape_cast %11 : vector<16xf32> to vector<16x1xf32>
    %cst_10 = arith.constant 3.200000e+01 : f32
    %13 = vector.broadcast %cst_10 : f32 to vector<16x1xf32>
    %14 = arith.divf %12, %13 : vector<16x1xf32>
    %15 = vector.broadcast %7 : vector<16x1xf32> to vector<16x32xf32>
    %16 = arith.subf %1, %15 : vector<16x32xf32>
    %cst_11 = arith.constant 9.99999996E-13 : f32
    %17 = vector.broadcast %cst_11 : f32 to vector<16x1xf32>
    %18 = arith.addf %14, %17 : vector<16x1xf32>
    %19 = math.rsqrt %18 : vector<16x1xf32>
    %20 = vector.broadcast %19 : vector<16x1xf32> to vector<16x32xf32>
    %21 = arith.mulf %16, %20 : vector<16x32xf32>
    %22 = vector.broadcast %2 : vector<1x32xf32> to vector<16x32xf32>
    %23 = arith.mulf %21, %22 : vector<16x32xf32>
    %24 = vector.broadcast %3 : vector<1x32xf32> to vector<16x32xf32>
    %25 = arith.addf %23, %24 : vector<16x32xf32>
    %c0_i32 = arith.constant 0 : i32
    %26 = arith.index_cast %c0_i32 : i32 to index
    %c0_12 = arith.constant 0 : index
    %c0_13 = arith.constant 0 : index
    %27 = vector.load %arg4[%26, %c0_12, %c0_13] : memref<2x32x32xf32, #tpu.memory_space<vmem>>, vector<1x32x32xf32>
    %28 = vector.shape_cast %27 : vector<1x32x32xf32> to vector<32x32xf32>
    %cst_14 = arith.constant dense<0.000000e+00> : vector<16x32xf32>
    %29 = tpu.matmul %25, %28, %cst_14 {dimension_numbers = #tpu.dot_dimension_numbers<[1], [0], [0], [1], [0, 0, 1, 1], [], []>} : vector<16x32xf32>, vector<32x32xf32>, vector<16x32xf32> -> vector<16x32xf32>
    %30 = arith.index_cast %c0_i32 : i32 to index
    %c0_15 = arith.constant 0 : index
    %c0_16 = arith.constant 0 : index
    %31 = vector.load %arg5[%30, %c0_15, %c0_16] : memref<2x1x32xf32, #tpu.memory_space<vmem>>, vector<1x1x32xf32>
    %32 = vector.shape_cast %31 : vector<1x1x32xf32> to vector<1x32xf32>
    %33 = vector.broadcast %32 : vector<1x32xf32> to vector<16x32xf32>
    %34 = arith.addf %29, %33 : vector<16x32xf32>
    %35 = arith.index_cast %c0_i32 : i32 to index
    %c0_17 = arith.constant 0 : index
    %c0_18 = arith.constant 0 : index
    %36 = vector.load %arg6[%35, %c0_17, %c0_18] : memref<2x32x32xf32, #tpu.memory_space<vmem>>, vector<1x32x32xf32>
    %37 = vector.shape_cast %36 : vector<1x32x32xf32> to vector<32x32xf32>
    %cst_19 = arith.constant dense<0.000000e+00> : vector<16x32xf32>
    %38 = tpu.matmul %25, %37, %cst_19 {dimension_numbers = #tpu.dot_dimension_numbers<[1], [0], [0], [1], [0, 0, 1, 1], [], []>} : vector<16x32xf32>, vector<32x32xf32>, vector<16x32xf32> -> vector<16x32xf32>
    %39 = arith.index_cast %c0_i32 : i32 to index
    %c0_20 = arith.constant 0 : index
    %c0_21 = arith.constant 0 : index
    %40 = vector.load %arg7[%39, %c0_20, %c0_21] : memref<2x1x32xf32, #tpu.memory_space<vmem>>, vector<1x1x32xf32>
    %41 = vector.shape_cast %40 : vector<1x1x32xf32> to vector<1x32xf32>
    %42 = vector.broadcast %41 : vector<1x32xf32> to vector<16x32xf32>
    %43 = arith.addf %38, %42 : vector<16x32xf32>
    %44 = arith.index_cast %c0_i32 : i32 to index
    %c0_22 = arith.constant 0 : index
    %c0_23 = arith.constant 0 : index
    %45 = vector.load %arg8[%44, %c0_22, %c0_23] : memref<2x32x32xf32, #tpu.memory_space<vmem>>, vector<1x32x32xf32>
    %46 = vector.shape_cast %45 : vector<1x32x32xf32> to vector<32x32xf32>
    %cst_24 = arith.constant dense<0.000000e+00> : vector<16x32xf32>
    %47 = tpu.matmul %25, %46, %cst_24 {dimension_numbers = #tpu.dot_dimension_numbers<[1], [0], [0], [1], [0, 0, 1, 1], [], []>} : vector<16x32xf32>, vector<32x32xf32>, vector<16x32xf32> -> vector<16x32xf32>
    %48 = arith.index_cast %c0_i32 : i32 to index
    %c0_25 = arith.constant 0 : index
    %c0_26 = arith.constant 0 : index
    %49 = vector.load %arg9[%48, %c0_25, %c0_26] : memref<2x1x32xf32, #tpu.memory_space<vmem>>, vector<1x1x32xf32>
    %50 = vector.shape_cast %49 : vector<1x1x32xf32> to vector<1x32xf32>
    %51 = vector.broadcast %50 : vector<1x32xf32> to vector<16x32xf32>
    %52 = arith.addf %47, %51 : vector<16x32xf32>
    %53 = vector.shape_cast %34 : vector<16x32xf32> to vector<2x8x32xf32>
    %54 = vector.shape_cast %43 : vector<16x32xf32> to vector<2x8x32xf32>
    %55 = vector.shape_cast %52 : vector<16x32xf32> to vector<2x8x32xf32>
    %56 = vector.extract_strided_slice %53 {offsets = [0, 0, 0], sizes = [2, 8, 16], strides = [1, 1, 1]} : vector<2x8x32xf32> to vector<2x8x16xf32>
    %57 = vector.extract_strided_slice %54 {offsets = [0, 0, 0], sizes = [2, 8, 16], strides = [1, 1, 1]} : vector<2x8x32xf32> to vector<2x8x16xf32>
    %58 = vector.extract_strided_slice %55 {offsets = [0, 0, 0], sizes = [2, 8, 16], strides = [1, 1, 1]} : vector<2x8x32xf32> to vector<2x8x16xf32>
    %cst_27 = arith.constant dense<0.000000e+00> : vector<2x8x8xf32>
    %59 = tpu.matmul %56, %57, %cst_27 {dimension_numbers = #tpu.dot_dimension_numbers<[2], [2], [1], [1], [0, 0, 0, 1, 1, 1], [0], [0]>} : vector<2x8x16xf32>, vector<2x8x16xf32>, vector<2x8x8xf32> -> vector<2x8x8xf32>
    %cst_28 = arith.constant 2.500000e-01 : f32
    %60 = vector.broadcast %cst_28 : f32 to vector<2x8x8xf32>
    %61 = arith.mulf %59, %60 : vector<2x8x8xf32>
    %62 = vector.broadcast %0 : vector<2x1x8xf32> to vector<2x8x8xf32>
    %63 = arith.addf %61, %62 : vector<2x8x8xf32>
    %cst_29 = arith.constant dense<0xFF800000> : vector<2x8xf32>
    %64 = vector.multi_reduction <maximumf>, %63, %cst_29 [2] : vector<2x8x8xf32> to vector<2x8xf32>
    %65 = vector.shape_cast %64 : vector<2x8xf32> to vector<2x8x1xf32>
    %66 = vector.broadcast %65 : vector<2x8x1xf32> to vector<2x8x8xf32>
    %67 = arith.subf %63, %66 : vector<2x8x8xf32>
    %68 = math.exp %67 : vector<2x8x8xf32>
    %cst_30 = arith.constant dense<0.000000e+00> : vector<2x8xf32>
    %69 = vector.multi_reduction <add>, %68, %cst_30 [2] : vector<2x8x8xf32> to vector<2x8xf32>
    %70 = vector.shape_cast %69 : vector<2x8xf32> to vector<2x8x1xf32>
    %71 = tpu.reciprocal %70 {approx = true} : vector<2x8x1xf32> -> vector<2x8x1xf32>
    %72 = vector.broadcast %71 : vector<2x8x1xf32> to vector<2x8x8xf32>
    %73 = arith.mulf %68, %72 : vector<2x8x8xf32>
    %cst_31 = arith.constant dense<0.000000e+00> : vector<2x8x16xf32>
    %74 = tpu.matmul %73, %58, %cst_31 {dimension_numbers = #tpu.dot_dimension_numbers<[2], [1], [1], [2], [0, 0, 0, 1, 1, 2], [0], [0]>} : vector<2x8x8xf32>, vector<2x8x16xf32>, vector<2x8x16xf32> -> vector<2x8x16xf32>
    %75 = vector.extract_strided_slice %53 {offsets = [0, 0, 16], sizes = [2, 8, 16], strides = [1, 1, 1]} : vector<2x8x32xf32> to vector<2x8x16xf32>
    %76 = vector.extract_strided_slice %54 {offsets = [0, 0, 16], sizes = [2, 8, 16], strides = [1, 1, 1]} : vector<2x8x32xf32> to vector<2x8x16xf32>
    %77 = vector.extract_strided_slice %55 {offsets = [0, 0, 16], sizes = [2, 8, 16], strides = [1, 1, 1]} : vector<2x8x32xf32> to vector<2x8x16xf32>
    %cst_32 = arith.constant dense<0.000000e+00> : vector<2x8x8xf32>
    %78 = tpu.matmul %75, %76, %cst_32 {dimension_numbers = #tpu.dot_dimension_numbers<[2], [2], [1], [1], [0, 0, 0, 1, 1, 1], [0], [0]>} : vector<2x8x16xf32>, vector<2x8x16xf32>, vector<2x8x8xf32> -> vector<2x8x8xf32>
    %cst_33 = arith.constant 2.500000e-01 : f32
    %79 = vector.broadcast %cst_33 : f32 to vector<2x8x8xf32>
    %80 = arith.mulf %78, %79 : vector<2x8x8xf32>
    %81 = vector.broadcast %0 : vector<2x1x8xf32> to vector<2x8x8xf32>
    %82 = arith.addf %80, %81 : vector<2x8x8xf32>
    %cst_34 = arith.constant dense<0xFF800000> : vector<2x8xf32>
    %83 = vector.multi_reduction <maximumf>, %82, %cst_34 [2] : vector<2x8x8xf32> to vector<2x8xf32>
    %84 = vector.shape_cast %83 : vector<2x8xf32> to vector<2x8x1xf32>
    %85 = vector.broadcast %84 : vector<2x8x1xf32> to vector<2x8x8xf32>
    %86 = arith.subf %82, %85 : vector<2x8x8xf32>
    %87 = math.exp %86 : vector<2x8x8xf32>
    %cst_35 = arith.constant dense<0.000000e+00> : vector<2x8xf32>
    %88 = vector.multi_reduction <add>, %87, %cst_35 [2] : vector<2x8x8xf32> to vector<2x8xf32>
    %89 = vector.shape_cast %88 : vector<2x8xf32> to vector<2x8x1xf32>
    %90 = tpu.reciprocal %89 {approx = true} : vector<2x8x1xf32> -> vector<2x8x1xf32>
    %91 = vector.broadcast %90 : vector<2x8x1xf32> to vector<2x8x8xf32>
    %92 = arith.mulf %87, %91 : vector<2x8x8xf32>
    %cst_36 = arith.constant dense<0.000000e+00> : vector<2x8x16xf32>
    %93 = tpu.matmul %92, %77, %cst_36 {dimension_numbers = #tpu.dot_dimension_numbers<[2], [1], [1], [2], [0, 0, 0, 1, 1, 2], [0], [0]>} : vector<2x8x8xf32>, vector<2x8x16xf32>, vector<2x8x16xf32> -> vector<2x8x16xf32>
    %94 = tpu.concatenate %74, %93 in 2 : vector<2x8x16xf32>, vector<2x8x16xf32> -> vector<2x8x32xf32>
    %95 = vector.shape_cast %94 : vector<2x8x32xf32> to vector<16x32xf32>
    %96 = arith.index_cast %c0_i32 : i32 to index
    %c0_37 = arith.constant 0 : index
    %c0_38 = arith.constant 0 : index
    %97 = vector.load %arg10[%96, %c0_37, %c0_38] : memref<2x32x32xf32, #tpu.memory_space<vmem>>, vector<1x32x32xf32>
    %98 = vector.shape_cast %97 : vector<1x32x32xf32> to vector<32x32xf32>
    %cst_39 = arith.constant dense<0.000000e+00> : vector<16x32xf32>
    %99 = tpu.matmul %95, %98, %cst_39 {dimension_numbers = #tpu.dot_dimension_numbers<[1], [0], [0], [1], [0, 0, 1, 1], [], []>} : vector<16x32xf32>, vector<32x32xf32>, vector<16x32xf32> -> vector<16x32xf32>
    %100 = arith.index_cast %c0_i32 : i32 to index
    %c0_40 = arith.constant 0 : index
    %c0_41 = arith.constant 0 : index
    %101 = vector.load %arg11[%100, %c0_40, %c0_41] : memref<2x1x32xf32, #tpu.memory_space<vmem>>, vector<1x1x32xf32>
    %102 = vector.shape_cast %101 : vector<1x1x32xf32> to vector<1x32xf32>
    %103 = vector.broadcast %102 : vector<1x32xf32> to vector<16x32xf32>
    %104 = arith.addf %99, %103 : vector<16x32xf32>
    %105 = arith.addf %25, %104 : vector<16x32xf32>
    %106 = arith.index_cast %c0_i32 : i32 to index
    %c0_42 = arith.constant 0 : index
    %c0_43 = arith.constant 0 : index
    %107 = vector.load %arg12[%106, %c0_42, %c0_43] : memref<2x1x32xf32, #tpu.memory_space<vmem>>, vector<1x1x32xf32>
    %108 = vector.shape_cast %107 : vector<1x1x32xf32> to vector<1x32xf32>
    %109 = arith.index_cast %c0_i32 : i32 to index
    %c0_44 = arith.constant 0 : index
    %c0_45 = arith.constant 0 : index
    %110 = vector.load %arg13[%109, %c0_44, %c0_45] : memref<2x1x32xf32, #tpu.memory_space<vmem>>, vector<1x1x32xf32>
    %111 = vector.shape_cast %110 : vector<1x1x32xf32> to vector<1x32xf32>
    %cst_46 = arith.constant dense<0.000000e+00> : vector<16xf32>
    %112 = vector.multi_reduction <add>, %105, %cst_46 [1] : vector<16x32xf32> to vector<16xf32>
    %113 = vector.shape_cast %112 : vector<16xf32> to vector<16x1xf32>
    %cst_47 = arith.constant 3.200000e+01 : f32
    %114 = vector.broadcast %cst_47 : f32 to vector<16x1xf32>
    %115 = arith.divf %113, %114 : vector<16x1xf32>
    %116 = vector.broadcast %115 : vector<16x1xf32> to vector<16x32xf32>
    %117 = arith.subf %105, %116 : vector<16x32xf32>
    %118 = arith.mulf %117, %117 : vector<16x32xf32>
    %cst_48 = arith.constant dense<0.000000e+00> : vector<16xf32>
    %119 = vector.multi_reduction <add>, %118, %cst_48 [1] : vector<16x32xf32> to vector<16xf32>
    %120 = vector.shape_cast %119 : vector<16xf32> to vector<16x1xf32>
    %cst_49 = arith.constant 3.200000e+01 : f32
    %121 = vector.broadcast %cst_49 : f32 to vector<16x1xf32>
    %122 = arith.divf %120, %121 : vector<16x1xf32>
    %123 = vector.broadcast %115 : vector<16x1xf32> to vector<16x32xf32>
    %124 = arith.subf %105, %123 : vector<16x32xf32>
    %cst_50 = arith.constant 9.99999996E-13 : f32
    %125 = vector.broadcast %cst_50 : f32 to vector<16x1xf32>
    %126 = arith.addf %122, %125 : vector<16x1xf32>
    %127 = math.rsqrt %126 : vector<16x1xf32>
    %128 = vector.broadcast %127 : vector<16x1xf32> to vector<16x32xf32>
    %129 = arith.mulf %124, %128 : vector<16x32xf32>
    %130 = vector.broadcast %108 : vector<1x32xf32> to vector<16x32xf32>
    %131 = arith.mulf %129, %130 : vector<16x32xf32>
    %132 = vector.broadcast %111 : vector<1x32xf32> to vector<16x32xf32>
    %133 = arith.addf %131, %132 : vector<16x32xf32>
    %134 = arith.index_cast %c0_i32 : i32 to index
    %c0_51 = arith.constant 0 : index
    %c0_52 = arith.constant 0 : index
    %135 = vector.load %arg14[%134, %c0_51, %c0_52] : memref<2x32x64xf32, #tpu.memory_space<vmem>>, vector<1x32x64xf32>
    %136 = vector.shape_cast %135 : vector<1x32x64xf32> to vector<32x64xf32>
    %cst_53 = arith.constant dense<0.000000e+00> : vector<16x64xf32>
    %137 = tpu.matmul %133, %136, %cst_53 {dimension_numbers = #tpu.dot_dimension_numbers<[1], [0], [0], [1], [0, 0, 1, 1], [], []>} : vector<16x32xf32>, vector<32x64xf32>, vector<16x64xf32> -> vector<16x64xf32>
    %138 = arith.index_cast %c0_i32 : i32 to index
    %c0_54 = arith.constant 0 : index
    %c0_55 = arith.constant 0 : index
    %139 = vector.load %arg15[%138, %c0_54, %c0_55] : memref<2x1x64xf32, #tpu.memory_space<vmem>>, vector<1x1x64xf32>
    %140 = vector.shape_cast %139 : vector<1x1x64xf32> to vector<1x64xf32>
    %141 = vector.broadcast %140 : vector<1x64xf32> to vector<16x64xf32>
    %142 = arith.addf %137, %141 : vector<16x64xf32>
    %143 = arith.mulf %142, %142 : vector<16x64xf32>
    %144 = arith.mulf %142, %143 : vector<16x64xf32>
    %cst_56 = arith.constant 4.471500e-02 : f32
    %145 = vector.broadcast %cst_56 : f32 to vector<16x64xf32>
    %146 = arith.mulf %145, %144 : vector<16x64xf32>
    %147 = arith.addf %142, %146 : vector<16x64xf32>
    %cst_57 = arith.constant 0.797884583 : f32
    %148 = vector.broadcast %cst_57 : f32 to vector<16x64xf32>
    %149 = arith.mulf %148, %147 : vector<16x64xf32>
    %150 = math.tanh %149 : vector<16x64xf32>
    %cst_58 = arith.constant 1.000000e+00 : f32
    %151 = vector.broadcast %cst_58 : f32 to vector<16x64xf32>
    %152 = arith.addf %151, %150 : vector<16x64xf32>
    %cst_59 = arith.constant 5.000000e-01 : f32
    %153 = vector.broadcast %cst_59 : f32 to vector<16x64xf32>
    %154 = arith.mulf %153, %152 : vector<16x64xf32>
    %155 = arith.mulf %142, %154 : vector<16x64xf32>
    %156 = arith.index_cast %c0_i32 : i32 to index
    %c0_60 = arith.constant 0 : index
    %c0_61 = arith.constant 0 : index
    %157 = vector.load %arg16[%156, %c0_60, %c0_61] : memref<2x64x32xf32, #tpu.memory_space<vmem>>, vector<1x64x32xf32>
    %158 = vector.shape_cast %157 : vector<1x64x32xf32> to vector<64x32xf32>
    %cst_62 = arith.constant dense<0.000000e+00> : vector<16x32xf32>
    %159 = tpu.matmul %155, %158, %cst_62 {dimension_numbers = #tpu.dot_dimension_numbers<[1], [0], [0], [1], [0, 0, 1, 1], [], []>} : vector<16x64xf32>, vector<64x32xf32>, vector<16x32xf32> -> vector<16x32xf32>
    %160 = arith.index_cast %c0_i32 : i32 to index
    %c0_63 = arith.constant 0 : index
    %c0_64 = arith.constant 0 : index
    %161 = vector.load %arg17[%160, %c0_63, %c0_64] : memref<2x1x32xf32, #tpu.memory_space<vmem>>, vector<1x1x32xf32>
    %162 = vector.shape_cast %161 : vector<1x1x32xf32> to vector<1x32xf32>
    %163 = vector.broadcast %162 : vector<1x32xf32> to vector<16x32xf32>
    %164 = arith.addf %159, %163 : vector<16x32xf32>
    %165 = arith.addf %133, %164 : vector<16x32xf32>
    %166 = arith.index_cast %c0_i32 : i32 to index
    %c0_65 = arith.constant 0 : index
    %c0_66 = arith.constant 0 : index
    %167 = vector.load %arg18[%166, %c0_65, %c0_66] : memref<2x1x32xf32, #tpu.memory_space<vmem>>, vector<1x1x32xf32>
    %168 = vector.shape_cast %167 : vector<1x1x32xf32> to vector<1x32xf32>
    %169 = arith.index_cast %c0_i32 : i32 to index
    %c0_67 = arith.constant 0 : index
    %c0_68 = arith.constant 0 : index
    %170 = vector.load %arg19[%169, %c0_67, %c0_68] : memref<2x1x32xf32, #tpu.memory_space<vmem>>, vector<1x1x32xf32>
    %171 = vector.shape_cast %170 : vector<1x1x32xf32> to vector<1x32xf32>
    %cst_69 = arith.constant dense<0.000000e+00> : vector<16xf32>
    %172 = vector.multi_reduction <add>, %165, %cst_69 [1] : vector<16x32xf32> to vector<16xf32>
    %173 = vector.shape_cast %172 : vector<16xf32> to vector<16x1xf32>
    %cst_70 = arith.constant 3.200000e+01 : f32
    %174 = vector.broadcast %cst_70 : f32 to vector<16x1xf32>
    %175 = arith.divf %173, %174 : vector<16x1xf32>
    %176 = vector.broadcast %175 : vector<16x1xf32> to vector<16x32xf32>
    %177 = arith.subf %165, %176 : vector<16x32xf32>
    %178 = arith.mulf %177, %177 : vector<16x32xf32>
    %cst_71 = arith.constant dense<0.000000e+00> : vector<16xf32>
    %179 = vector.multi_reduction <add>, %178, %cst_71 [1] : vector<16x32xf32> to vector<16xf32>
    %180 = vector.shape_cast %179 : vector<16xf32> to vector<16x1xf32>
    %cst_72 = arith.constant 3.200000e+01 : f32
    %181 = vector.broadcast %cst_72 : f32 to vector<16x1xf32>
    %182 = arith.divf %180, %181 : vector<16x1xf32>
    %183 = vector.broadcast %175 : vector<16x1xf32> to vector<16x32xf32>
    %184 = arith.subf %165, %183 : vector<16x32xf32>
    %cst_73 = arith.constant 9.99999996E-13 : f32
    %185 = vector.broadcast %cst_73 : f32 to vector<16x1xf32>
    %186 = arith.addf %182, %185 : vector<16x1xf32>
    %187 = math.rsqrt %186 : vector<16x1xf32>
    %188 = vector.broadcast %187 : vector<16x1xf32> to vector<16x32xf32>
    %189 = arith.mulf %184, %188 : vector<16x32xf32>
    %190 = vector.broadcast %168 : vector<1x32xf32> to vector<16x32xf32>
    %191 = arith.mulf %189, %190 : vector<16x32xf32>
    %192 = vector.broadcast %171 : vector<1x32xf32> to vector<16x32xf32>
    %193 = arith.addf %191, %192 : vector<16x32xf32>
    %c1_i32 = arith.constant 1 : i32
    %194 = arith.index_cast %c1_i32 : i32 to index
    %c0_74 = arith.constant 0 : index
    %c0_75 = arith.constant 0 : index
    %195 = vector.load %arg4[%194, %c0_74, %c0_75] : memref<2x32x32xf32, #tpu.memory_space<vmem>>, vector<1x32x32xf32>
    %196 = vector.shape_cast %195 : vector<1x32x32xf32> to vector<32x32xf32>
    %cst_76 = arith.constant dense<0.000000e+00> : vector<16x32xf32>
    %197 = tpu.matmul %193, %196, %cst_76 {dimension_numbers = #tpu.dot_dimension_numbers<[1], [0], [0], [1], [0, 0, 1, 1], [], []>} : vector<16x32xf32>, vector<32x32xf32>, vector<16x32xf32> -> vector<16x32xf32>
    %198 = arith.index_cast %c1_i32 : i32 to index
    %c0_77 = arith.constant 0 : index
    %c0_78 = arith.constant 0 : index
    %199 = vector.load %arg5[%198, %c0_77, %c0_78] : memref<2x1x32xf32, #tpu.memory_space<vmem>>, vector<1x1x32xf32>
    %200 = vector.shape_cast %199 : vector<1x1x32xf32> to vector<1x32xf32>
    %201 = vector.broadcast %200 : vector<1x32xf32> to vector<16x32xf32>
    %202 = arith.addf %197, %201 : vector<16x32xf32>
    %203 = arith.index_cast %c1_i32 : i32 to index
    %c0_79 = arith.constant 0 : index
    %c0_80 = arith.constant 0 : index
    %204 = vector.load %arg6[%203, %c0_79, %c0_80] : memref<2x32x32xf32, #tpu.memory_space<vmem>>, vector<1x32x32xf32>
    %205 = vector.shape_cast %204 : vector<1x32x32xf32> to vector<32x32xf32>
    %cst_81 = arith.constant dense<0.000000e+00> : vector<16x32xf32>
    %206 = tpu.matmul %193, %205, %cst_81 {dimension_numbers = #tpu.dot_dimension_numbers<[1], [0], [0], [1], [0, 0, 1, 1], [], []>} : vector<16x32xf32>, vector<32x32xf32>, vector<16x32xf32> -> vector<16x32xf32>
    %207 = arith.index_cast %c1_i32 : i32 to index
    %c0_82 = arith.constant 0 : index
    %c0_83 = arith.constant 0 : index
    %208 = vector.load %arg7[%207, %c0_82, %c0_83] : memref<2x1x32xf32, #tpu.memory_space<vmem>>, vector<1x1x32xf32>
    %209 = vector.shape_cast %208 : vector<1x1x32xf32> to vector<1x32xf32>
    %210 = vector.broadcast %209 : vector<1x32xf32> to vector<16x32xf32>
    %211 = arith.addf %206, %210 : vector<16x32xf32>
    %212 = arith.index_cast %c1_i32 : i32 to index
    %c0_84 = arith.constant 0 : index
    %c0_85 = arith.constant 0 : index
    %213 = vector.load %arg8[%212, %c0_84, %c0_85] : memref<2x32x32xf32, #tpu.memory_space<vmem>>, vector<1x32x32xf32>
    %214 = vector.shape_cast %213 : vector<1x32x32xf32> to vector<32x32xf32>
    %cst_86 = arith.constant dense<0.000000e+00> : vector<16x32xf32>
    %215 = tpu.matmul %193, %214, %cst_86 {dimension_numbers = #tpu.dot_dimension_numbers<[1], [0], [0], [1], [0, 0, 1, 1], [], []>} : vector<16x32xf32>, vector<32x32xf32>, vector<16x32xf32> -> vector<16x32xf32>
    %216 = arith.index_cast %c1_i32 : i32 to index
    %c0_87 = arith.constant 0 : index
    %c0_88 = arith.constant 0 : index
    %217 = vector.load %arg9[%216, %c0_87, %c0_88] : memref<2x1x32xf32, #tpu.memory_space<vmem>>, vector<1x1x32xf32>
    %218 = vector.shape_cast %217 : vector<1x1x32xf32> to vector<1x32xf32>
    %219 = vector.broadcast %218 : vector<1x32xf32> to vector<16x32xf32>
    %220 = arith.addf %215, %219 : vector<16x32xf32>
    %221 = vector.shape_cast %202 : vector<16x32xf32> to vector<2x8x32xf32>
    %222 = vector.shape_cast %211 : vector<16x32xf32> to vector<2x8x32xf32>
    %223 = vector.shape_cast %220 : vector<16x32xf32> to vector<2x8x32xf32>
    %224 = vector.extract_strided_slice %221 {offsets = [0, 0, 0], sizes = [2, 8, 16], strides = [1, 1, 1]} : vector<2x8x32xf32> to vector<2x8x16xf32>
    %225 = vector.extract_strided_slice %222 {offsets = [0, 0, 0], sizes = [2, 8, 16], strides = [1, 1, 1]} : vector<2x8x32xf32> to vector<2x8x16xf32>
    %226 = vector.extract_strided_slice %223 {offsets = [0, 0, 0], sizes = [2, 8, 16], strides = [1, 1, 1]} : vector<2x8x32xf32> to vector<2x8x16xf32>
    %cst_89 = arith.constant dense<0.000000e+00> : vector<2x8x8xf32>
    %227 = tpu.matmul %224, %225, %cst_89 {dimension_numbers = #tpu.dot_dimension_numbers<[2], [2], [1], [1], [0, 0, 0, 1, 1, 1], [0], [0]>} : vector<2x8x16xf32>, vector<2x8x16xf32>, vector<2x8x8xf32> -> vector<2x8x8xf32>
    %cst_90 = arith.constant 2.500000e-01 : f32
    %228 = vector.broadcast %cst_90 : f32 to vector<2x8x8xf32>
    %229 = arith.mulf %227, %228 : vector<2x8x8xf32>
    %230 = vector.broadcast %0 : vector<2x1x8xf32> to vector<2x8x8xf32>
    %231 = arith.addf %229, %230 : vector<2x8x8xf32>
    %cst_91 = arith.constant dense<0xFF800000> : vector<2x8xf32>
    %232 = vector.multi_reduction <maximumf>, %231, %cst_91 [2] : vector<2x8x8xf32> to vector<2x8xf32>
    %233 = vector.shape_cast %232 : vector<2x8xf32> to vector<2x8x1xf32>
    %234 = vector.broadcast %233 : vector<2x8x1xf32> to vector<2x8x8xf32>
    %235 = arith.subf %231, %234 : vector<2x8x8xf32>
    %236 = math.exp %235 : vector<2x8x8xf32>
    %cst_92 = arith.constant dense<0.000000e+00> : vector<2x8xf32>
    %237 = vector.multi_reduction <add>, %236, %cst_92 [2] : vector<2x8x8xf32> to vector<2x8xf32>
    %238 = vector.shape_cast %237 : vector<2x8xf32> to vector<2x8x1xf32>
    %239 = tpu.reciprocal %238 {approx = true} : vector<2x8x1xf32> -> vector<2x8x1xf32>
    %240 = vector.broadcast %239 : vector<2x8x1xf32> to vector<2x8x8xf32>
    %241 = arith.mulf %236, %240 : vector<2x8x8xf32>
    %cst_93 = arith.constant dense<0.000000e+00> : vector<2x8x16xf32>
    %242 = tpu.matmul %241, %226, %cst_93 {dimension_numbers = #tpu.dot_dimension_numbers<[2], [1], [1], [2], [0, 0, 0, 1, 1, 2], [0], [0]>} : vector<2x8x8xf32>, vector<2x8x16xf32>, vector<2x8x16xf32> -> vector<2x8x16xf32>
    %243 = vector.extract_strided_slice %221 {offsets = [0, 0, 16], sizes = [2, 8, 16], strides = [1, 1, 1]} : vector<2x8x32xf32> to vector<2x8x16xf32>
    %244 = vector.extract_strided_slice %222 {offsets = [0, 0, 16], sizes = [2, 8, 16], strides = [1, 1, 1]} : vector<2x8x32xf32> to vector<2x8x16xf32>
    %245 = vector.extract_strided_slice %223 {offsets = [0, 0, 16], sizes = [2, 8, 16], strides = [1, 1, 1]} : vector<2x8x32xf32> to vector<2x8x16xf32>
    %cst_94 = arith.constant dense<0.000000e+00> : vector<2x8x8xf32>
    %246 = tpu.matmul %243, %244, %cst_94 {dimension_numbers = #tpu.dot_dimension_numbers<[2], [2], [1], [1], [0, 0, 0, 1, 1, 1], [0], [0]>} : vector<2x8x16xf32>, vector<2x8x16xf32>, vector<2x8x8xf32> -> vector<2x8x8xf32>
    %cst_95 = arith.constant 2.500000e-01 : f32
    %247 = vector.broadcast %cst_95 : f32 to vector<2x8x8xf32>
    %248 = arith.mulf %246, %247 : vector<2x8x8xf32>
    %249 = vector.broadcast %0 : vector<2x1x8xf32> to vector<2x8x8xf32>
    %250 = arith.addf %248, %249 : vector<2x8x8xf32>
    %cst_96 = arith.constant dense<0xFF800000> : vector<2x8xf32>
    %251 = vector.multi_reduction <maximumf>, %250, %cst_96 [2] : vector<2x8x8xf32> to vector<2x8xf32>
    %252 = vector.shape_cast %251 : vector<2x8xf32> to vector<2x8x1xf32>
    %253 = vector.broadcast %252 : vector<2x8x1xf32> to vector<2x8x8xf32>
    %254 = arith.subf %250, %253 : vector<2x8x8xf32>
    %255 = math.exp %254 : vector<2x8x8xf32>
    %cst_97 = arith.constant dense<0.000000e+00> : vector<2x8xf32>
    %256 = vector.multi_reduction <add>, %255, %cst_97 [2] : vector<2x8x8xf32> to vector<2x8xf32>
    %257 = vector.shape_cast %256 : vector<2x8xf32> to vector<2x8x1xf32>
    %258 = tpu.reciprocal %257 {approx = true} : vector<2x8x1xf32> -> vector<2x8x1xf32>
    %259 = vector.broadcast %258 : vector<2x8x1xf32> to vector<2x8x8xf32>
    %260 = arith.mulf %255, %259 : vector<2x8x8xf32>
    %cst_98 = arith.constant dense<0.000000e+00> : vector<2x8x16xf32>
    %261 = tpu.matmul %260, %245, %cst_98 {dimension_numbers = #tpu.dot_dimension_numbers<[2], [1], [1], [2], [0, 0, 0, 1, 1, 2], [0], [0]>} : vector<2x8x8xf32>, vector<2x8x16xf32>, vector<2x8x16xf32> -> vector<2x8x16xf32>
    %262 = tpu.concatenate %242, %261 in 2 : vector<2x8x16xf32>, vector<2x8x16xf32> -> vector<2x8x32xf32>
    %263 = vector.shape_cast %262 : vector<2x8x32xf32> to vector<16x32xf32>
    %264 = arith.index_cast %c1_i32 : i32 to index
    %c0_99 = arith.constant 0 : index
    %c0_100 = arith.constant 0 : index
    %265 = vector.load %arg10[%264, %c0_99, %c0_100] : memref<2x32x32xf32, #tpu.memory_space<vmem>>, vector<1x32x32xf32>
    %266 = vector.shape_cast %265 : vector<1x32x32xf32> to vector<32x32xf32>
    %cst_101 = arith.constant dense<0.000000e+00> : vector<16x32xf32>
    %267 = tpu.matmul %263, %266, %cst_101 {dimension_numbers = #tpu.dot_dimension_numbers<[1], [0], [0], [1], [0, 0, 1, 1], [], []>} : vector<16x32xf32>, vector<32x32xf32>, vector<16x32xf32> -> vector<16x32xf32>
    %268 = arith.index_cast %c1_i32 : i32 to index
    %c0_102 = arith.constant 0 : index
    %c0_103 = arith.constant 0 : index
    %269 = vector.load %arg11[%268, %c0_102, %c0_103] : memref<2x1x32xf32, #tpu.memory_space<vmem>>, vector<1x1x32xf32>
    %270 = vector.shape_cast %269 : vector<1x1x32xf32> to vector<1x32xf32>
    %271 = vector.broadcast %270 : vector<1x32xf32> to vector<16x32xf32>
    %272 = arith.addf %267, %271 : vector<16x32xf32>
    %273 = arith.addf %193, %272 : vector<16x32xf32>
    %274 = arith.index_cast %c1_i32 : i32 to index
    %c0_104 = arith.constant 0 : index
    %c0_105 = arith.constant 0 : index
    %275 = vector.load %arg12[%274, %c0_104, %c0_105] : memref<2x1x32xf32, #tpu.memory_space<vmem>>, vector<1x1x32xf32>
    %276 = vector.shape_cast %275 : vector<1x1x32xf32> to vector<1x32xf32>
    %277 = arith.index_cast %c1_i32 : i32 to index
    %c0_106 = arith.constant 0 : index
    %c0_107 = arith.constant 0 : index
    %278 = vector.load %arg13[%277, %c0_106, %c0_107] : memref<2x1x32xf32, #tpu.memory_space<vmem>>, vector<1x1x32xf32>
    %279 = vector.shape_cast %278 : vector<1x1x32xf32> to vector<1x32xf32>
    %cst_108 = arith.constant dense<0.000000e+00> : vector<16xf32>
    %280 = vector.multi_reduction <add>, %273, %cst_108 [1] : vector<16x32xf32> to vector<16xf32>
    %281 = vector.shape_cast %280 : vector<16xf32> to vector<16x1xf32>
    %cst_109 = arith.constant 3.200000e+01 : f32
    %282 = vector.broadcast %cst_109 : f32 to vector<16x1xf32>
    %283 = arith.divf %281, %282 : vector<16x1xf32>
    %284 = vector.broadcast %283 : vector<16x1xf32> to vector<16x32xf32>
    %285 = arith.subf %273, %284 : vector<16x32xf32>
    %286 = arith.mulf %285, %285 : vector<16x32xf32>
    %cst_110 = arith.constant dense<0.000000e+00> : vector<16xf32>
    %287 = vector.multi_reduction <add>, %286, %cst_110 [1] : vector<16x32xf32> to vector<16xf32>
    %288 = vector.shape_cast %287 : vector<16xf32> to vector<16x1xf32>
    %cst_111 = arith.constant 3.200000e+01 : f32
    %289 = vector.broadcast %cst_111 : f32 to vector<16x1xf32>
    %290 = arith.divf %288, %289 : vector<16x1xf32>
    %291 = vector.broadcast %283 : vector<16x1xf32> to vector<16x32xf32>
    %292 = arith.subf %273, %291 : vector<16x32xf32>
    %cst_112 = arith.constant 9.99999996E-13 : f32
    %293 = vector.broadcast %cst_112 : f32 to vector<16x1xf32>
    %294 = arith.addf %290, %293 : vector<16x1xf32>
    %295 = math.rsqrt %294 : vector<16x1xf32>
    %296 = vector.broadcast %295 : vector<16x1xf32> to vector<16x32xf32>
    %297 = arith.mulf %292, %296 : vector<16x32xf32>
    %298 = vector.broadcast %276 : vector<1x32xf32> to vector<16x32xf32>
    %299 = arith.mulf %297, %298 : vector<16x32xf32>
    %300 = vector.broadcast %279 : vector<1x32xf32> to vector<16x32xf32>
    %301 = arith.addf %299, %300 : vector<16x32xf32>
    %302 = arith.index_cast %c1_i32 : i32 to index
    %c0_113 = arith.constant 0 : index
    %c0_114 = arith.constant 0 : index
    %303 = vector.load %arg14[%302, %c0_113, %c0_114] : memref<2x32x64xf32, #tpu.memory_space<vmem>>, vector<1x32x64xf32>
    %304 = vector.shape_cast %303 : vector<1x32x64xf32> to vector<32x64xf32>
    %cst_115 = arith.constant dense<0.000000e+00> : vector<16x64xf32>
    %305 = tpu.matmul %301, %304, %cst_115 {dimension_numbers = #tpu.dot_dimension_numbers<[1], [0], [0], [1], [0, 0, 1, 1], [], []>} : vector<16x32xf32>, vector<32x64xf32>, vector<16x64xf32> -> vector<16x64xf32>
    %306 = arith.index_cast %c1_i32 : i32 to index
    %c0_116 = arith.constant 0 : index
    %c0_117 = arith.constant 0 : index
    %307 = vector.load %arg15[%306, %c0_116, %c0_117] : memref<2x1x64xf32, #tpu.memory_space<vmem>>, vector<1x1x64xf32>
    %308 = vector.shape_cast %307 : vector<1x1x64xf32> to vector<1x64xf32>
    %309 = vector.broadcast %308 : vector<1x64xf32> to vector<16x64xf32>
    %310 = arith.addf %305, %309 : vector<16x64xf32>
    %311 = arith.mulf %310, %310 : vector<16x64xf32>
    %312 = arith.mulf %310, %311 : vector<16x64xf32>
    %cst_118 = arith.constant 4.471500e-02 : f32
    %313 = vector.broadcast %cst_118 : f32 to vector<16x64xf32>
    %314 = arith.mulf %313, %312 : vector<16x64xf32>
    %315 = arith.addf %310, %314 : vector<16x64xf32>
    %cst_119 = arith.constant 0.797884583 : f32
    %316 = vector.broadcast %cst_119 : f32 to vector<16x64xf32>
    %317 = arith.mulf %316, %315 : vector<16x64xf32>
    %318 = math.tanh %317 : vector<16x64xf32>
    %cst_120 = arith.constant 1.000000e+00 : f32
    %319 = vector.broadcast %cst_120 : f32 to vector<16x64xf32>
    %320 = arith.addf %319, %318 : vector<16x64xf32>
    %cst_121 = arith.constant 5.000000e-01 : f32
    %321 = vector.broadcast %cst_121 : f32 to vector<16x64xf32>
    %322 = arith.mulf %321, %320 : vector<16x64xf32>
    %323 = arith.mulf %310, %322 : vector<16x64xf32>
    %324 = arith.index_cast %c1_i32 : i32 to index
    %c0_122 = arith.constant 0 : index
    %c0_123 = arith.constant 0 : index
    %325 = vector.load %arg16[%324, %c0_122, %c0_123] : memref<2x64x32xf32, #tpu.memory_space<vmem>>, vector<1x64x32xf32>
    %326 = vector.shape_cast %325 : vector<1x64x32xf32> to vector<64x32xf32>
    %cst_124 = arith.constant dense<0.000000e+00> : vector<16x32xf32>
    %327 = tpu.matmul %323, %326, %cst_124 {dimension_numbers = #tpu.dot_dimension_numbers<[1], [0], [0], [1], [0, 0, 1, 1], [], []>} : vector<16x64xf32>, vector<64x32xf32>, vector<16x32xf32> -> vector<16x32xf32>
    %328 = arith.index_cast %c1_i32 : i32 to index
    %c0_125 = arith.constant 0 : index
    %c0_126 = arith.constant 0 : index
    %329 = vector.load %arg17[%328, %c0_125, %c0_126] : memref<2x1x32xf32, #tpu.memory_space<vmem>>, vector<1x1x32xf32>
    %330 = vector.shape_cast %329 : vector<1x1x32xf32> to vector<1x32xf32>
    %331 = vector.broadcast %330 : vector<1x32xf32> to vector<16x32xf32>
    %332 = arith.addf %327, %331 : vector<16x32xf32>
    %333 = arith.addf %301, %332 : vector<16x32xf32>
    %334 = arith.index_cast %c1_i32 : i32 to index
    %c0_127 = arith.constant 0 : index
    %c0_128 = arith.constant 0 : index
    %335 = vector.load %arg18[%334, %c0_127, %c0_128] : memref<2x1x32xf32, #tpu.memory_space<vmem>>, vector<1x1x32xf32>
    %336 = vector.shape_cast %335 : vector<1x1x32xf32> to vector<1x32xf32>
    %337 = arith.index_cast %c1_i32 : i32 to index
    %c0_129 = arith.constant 0 : index
    %c0_130 = arith.constant 0 : index
    %338 = vector.load %arg19[%337, %c0_129, %c0_130] : memref<2x1x32xf32, #tpu.memory_space<vmem>>, vector<1x1x32xf32>
    %339 = vector.shape_cast %338 : vector<1x1x32xf32> to vector<1x32xf32>
    %cst_131 = arith.constant dense<0.000000e+00> : vector<16xf32>
    %340 = vector.multi_reduction <add>, %333, %cst_131 [1] : vector<16x32xf32> to vector<16xf32>
    %341 = vector.shape_cast %340 : vector<16xf32> to vector<16x1xf32>
    %cst_132 = arith.constant 3.200000e+01 : f32
    %342 = vector.broadcast %cst_132 : f32 to vector<16x1xf32>
    %343 = arith.divf %341, %342 : vector<16x1xf32>
    %344 = vector.broadcast %343 : vector<16x1xf32> to vector<16x32xf32>
    %345 = arith.subf %333, %344 : vector<16x32xf32>
    %346 = arith.mulf %345, %345 : vector<16x32xf32>
    %cst_133 = arith.constant dense<0.000000e+00> : vector<16xf32>
    %347 = vector.multi_reduction <add>, %346, %cst_133 [1] : vector<16x32xf32> to vector<16xf32>
    %348 = vector.shape_cast %347 : vector<16xf32> to vector<16x1xf32>
    %cst_134 = arith.constant 3.200000e+01 : f32
    %349 = vector.broadcast %cst_134 : f32 to vector<16x1xf32>
    %350 = arith.divf %348, %349 : vector<16x1xf32>
    %351 = vector.broadcast %343 : vector<16x1xf32> to vector<16x32xf32>
    %352 = arith.subf %333, %351 : vector<16x32xf32>
    %cst_135 = arith.constant 9.99999996E-13 : f32
    %353 = vector.broadcast %cst_135 : f32 to vector<16x1xf32>
    %354 = arith.addf %350, %353 : vector<16x1xf32>
    %355 = math.rsqrt %354 : vector<16x1xf32>
    %356 = vector.broadcast %355 : vector<16x1xf32> to vector<16x32xf32>
    %357 = arith.mulf %352, %356 : vector<16x32xf32>
    %358 = vector.broadcast %336 : vector<1x32xf32> to vector<16x32xf32>
    %359 = arith.mulf %357, %358 : vector<16x32xf32>
    %360 = vector.broadcast %339 : vector<1x32xf32> to vector<16x32xf32>
    %361 = arith.addf %359, %360 : vector<16x32xf32>
    %c2_i32 = arith.constant 2 : i32
    %362 = vector.shape_cast %361 : vector<16x32xf32> to vector<2x8x32xf32>
    %363 = vector.extract_strided_slice %362 {offsets = [0, 0, 0], sizes = [2, 1, 32], strides = [1, 1, 1]} : vector<2x8x32xf32> to vector<2x1x32xf32>
    %364 = vector.shape_cast %363 : vector<2x1x32xf32> to vector<2x32xf32>
    %c0_136 = arith.constant 0 : index
    %c0_137 = arith.constant 0 : index
    %365 = vector.load %arg20[%c0_136, %c0_137] : memref<32x128xf32, #tpu.memory_space<vmem>>, vector<32x128xf32>
    %cst_138 = arith.constant dense<0.000000e+00> : vector<2x128xf32>
    %366 = tpu.matmul %364, %365, %cst_138 {dimension_numbers = #tpu.dot_dimension_numbers<[1], [0], [0], [1], [0, 0, 1, 1], [], []>} : vector<2x32xf32>, vector<32x128xf32>, vector<2x128xf32> -> vector<2x128xf32>
    %c0_139 = arith.constant 0 : index
    %c0_140 = arith.constant 0 : index
    %367 = vector.load %arg21[%c0_139, %c0_140] : memref<1x128xf32, #tpu.memory_space<vmem>>, vector<1x128xf32>
    %368 = vector.broadcast %367 : vector<1x128xf32> to vector<2x128xf32>
    %369 = arith.addf %366, %368 : vector<2x128xf32>
    %c0_141 = arith.constant 0 : index
    %c0_142 = arith.constant 0 : index
    %370 = vector.load %arg22[%c0_141, %c0_142] : memref<2x128xf32, #tpu.memory_space<vmem>>, vector<2x128xf32>
    tpu.vector_store %arg22[%c0_141, %c0_142], %369 {strides = array<i32>} : memref<2x128xf32, #tpu.memory_space<vmem>>, vector<2x128xf32>,
    return
  }
}

</mosaic_0001>

<llo_original>
// kernel: bert_sent_classifier.1
$region0: #{bert_sent_classifier.1}
  #allocation0 [shape = 'u32[]', space=smem, size = 0x4, offset = 0x4, fixed_abs, tag = 'smem constant byte address 0x4 - core index']
  #allocation1 [shape = 'u32[144,128]{1,0:T(1,128)}', space=vmem, size = 0x12000, scoped, tag = 'internal scratch']
  %s0 = inlined_call_operand.vmem [shape: f32[16,32], index: 0, kind: input, shape index: {}]
  %s1 = inlined_call_operand.vmem [shape: f32[2,1,8], index: 1, kind: input, shape index: {}]
  %s2 = inlined_call_operand.vmem [shape: f32[1,32], index: 2, kind: input, shape index: {}]
  %s3 = inlined_call_operand.vmem [shape: f32[1,32], index: 3, kind: input, shape index: {}]
  %s4 = inlined_call_operand.vmem [shape: f32[2,32,32], index: 4, kind: input, shape index: {}]
  %s5 = inlined_call_operand.vmem [shape: f32[2,1,32], index: 5, kind: input, shape index: {}]
  %s6 = inlined_call_operand.vmem [shape: f32[2,32,32], index: 6, kind: input, shape index: {}]
  %s7 = inlined_call_operand.vmem [shape: f32[2,1,32], index: 7, kind: input, shape index: {}]
  %s8 = inlined_call_operand.vmem [shape: f32[2,32,32], index: 8, kind: input, shape index: {}]
  %s9 = inlined_call_operand.vmem [shape: f32[2,1,32], index: 9, kind: input, shape index: {}]
  %s10 = inlined_call_operand.vmem [shape: f32[2,32,32], index: 10, kind: input, shape index: {}]
  %s11 = inlined_call_operand.vmem [shape: f32[2,1,32], index: 11, kind: input, shape index: {}]
  %s12 = inlined_call_operand.vmem [shape: f32[2,1,32], index: 12, kind: input, shape index: {}]
  %s13 = inlined_call_operand.vmem [shape: f32[2,1,32], index: 13, kind: input, shape index: {}]
  %s14 = inlined_call_operand.vmem [shape: f32[2,32,64], index: 14, kind: input, shape index: {}]
  %s15 = inlined_call_operand.vmem [shape: f32[2,1,64], index: 15, kind: input, shape index: {}]
  %s16 = inlined_call_operand.vmem [shape: f32[2,64,32], index: 16, kind: input, shape index: {}]
  %s17 = inlined_call_operand.vmem [shape: f32[2,1,32], index: 17, kind: input, shape index: {}]
  %s18 = inlined_call_operand.vmem [shape: f32[2,1,32], index: 18, kind: input, shape index: {}]
  %s19 = inlined_call_operand.vmem [shape: f32[2,1,32], index: 19, kind: input, shape index: {}]
  %s20 = inlined_call_operand.vmem [shape: f32[32,128], index: 20, kind: input, shape index: {}]
  %s21 = inlined_call_operand.vmem [shape: f32[1,128], index: 21, kind: input, shape index: {}]
  %s22 = inlined_call_operand.hbm [shape: f32[2,128], index: 22, kind: output, shape index: {}]
  %s23 = sld [smem:[#allocation0]]
  $region98: #{bert_sent_classifier.1} parent=0
    _
  %s25 = ssub.s32 1, %s23
  %s26 = scalar_select 0, %s25, %s23
  $region1: #{bert_sent_classifier.1} parent=0
    #allocation2 [shape = 'u8[1024]{0}', space=vmem, size = 0x400, scoped, tag = 'output window, operand 0, single buffered']
    #allocation3 [shape = 's32[1]{0}', space=sflag, size = 0x4, scoped, tag = 'scoped memory for bert_sent_classifier.1']
    %27 = vsyncpa [#allocation3], 0
    // Predicated region
    $region2: #{bert_sent_classifier.1} parent=1 // pred_check
      _
    $region3: #{bert_sent_classifier.1} parent=1 // pred_check_branch
      %29 = sbr.rel (0) target = $region5
    $region4: #{bert_sent_classifier.1} parent=1 // pred_region
      _
    $region5: #{bert_sent_classifier.1} parent=1 // pred_fallthru
      _
    // Predicated region
    $region6: #{bert_sent_classifier.1} parent=1 // pred_check
      _
    $region7: #{bert_sent_classifier.1} parent=1 // pred_check_branch
      %31 = sbr.rel (0) target = $region9
    $region8: #{bert_sent_classifier.1} parent=1 // pred_region
      _
    $region9: #{bert_sent_classifier.1} parent=1 // pred_fallthru
      _
    // Predicated region
    $region10: #{bert_sent_classifier.1} parent=1 // pred_check
      _
    $region11: #{bert_sent_classifier.1} parent=1 // pred_check_branch
      %33 = sbr.rel (0) target = $region13
    $region12: #{bert_sent_classifier.1} parent=1 // pred_region
      _
    $region13: #{bert_sent_classifier.1} parent=1 // pred_fallthru
      _
    // Predicated region
    $region14: #{bert_sent_classifier.1} parent=1 // pred_check
      _
    $region15: #{bert_sent_classifier.1} parent=1 // pred_check_branch
      %35 = sbr.rel (0) target = $region17
    $region16: #{bert_sent_classifier.1} parent=1 // pred_region
      _
    $region17: #{bert_sent_classifier.1} parent=1 // pred_fallthru
      _
    // Predicated region
    $region18: #{bert_sent_classifier.1} parent=1 // pred_check
      _
    $region19: #{bert_sent_classifier.1} parent=1 // pred_check_branch
      %37 = sbr.rel (0) target = $region21
    $region20: #{bert_sent_classifier.1} parent=1 // pred_region
      _
    $region21: #{bert_sent_classifier.1} parent=1 // pred_fallthru
      _
    // Predicated region
    $region22: #{bert_sent_classifier.1} parent=1 // pred_check
      _
    $region23: #{bert_sent_classifier.1} parent=1 // pred_check_branch
      %39 = sbr.rel (0) target = $region25
    $region24: #{bert_sent_classifier.1} parent=1 // pred_region
      _
    $region25: #{bert_sent_classifier.1} parent=1 // pred_fallthru
      _
    // Predicated region
    $region26: #{bert_sent_classifier.1} parent=1 // pred_check
      _
    $region27: #{bert_sent_classifier.1} parent=1 // pred_check_branch
      %41 = sbr.rel (0) target = $region29
    $region28: #{bert_sent_classifier.1} parent=1 // pred_region
      _
    $region29: #{bert_sent_classifier.1} parent=1 // pred_fallthru
      _
    // Predicated region
    $region30: #{bert_sent_classifier.1} parent=1 // pred_check
      _
    $region31: #{bert_sent_classifier.1} parent=1 // pred_check_branch
      %43 = sbr.rel (0) target = $region33
    $region32: #{bert_sent_classifier.1} parent=1 // pred_region
      _
    $region33: #{bert_sent_classifier.1} parent=1 // pred_fallthru
      _
    // Predicated region
    $region34: #{bert_sent_classifier.1} parent=1 // pred_check
      _
    $region35: #{bert_sent_classifier.1} parent=1 // pred_check_branch
      %45 = sbr.rel (0) target = $region37
    $region36: #{bert_sent_classifier.1} parent=1 // pred_region
      _
    $region37: #{bert_sent_classifier.1} parent=1 // pred_fallthru
      _
    // Predicated region
    $region38: #{bert_sent_classifier.1} parent=1 // pred_check
      _
    $region39: #{bert_sent_classifier.1} parent=1 // pred_check_branch
      %47 = sbr.rel (0) target = $region41
    $region40: #{bert_sent_classifier.1} parent=1 // pred_region
      _
    $region41: #{bert_sent_classifier.1} parent=1 // pred_fallthru
      _
    // Predicated region
    $region42: #{bert_sent_classifier.1} parent=1 // pred_check
      _
    $region43: #{bert_sent_classifier.1} parent=1 // pred_check_branch
      %49 = sbr.rel (0) target = $region45
    $region44: #{bert_sent_classifier.1} parent=1 // pred_region
      _
    $region45: #{bert_sent_classifier.1} parent=1 // pred_fallthru
      _
    // Predicated region
    $region46: #{bert_sent_classifier.1} parent=1 // pred_check
      _
    $region47: #{bert_sent_classifier.1} parent=1 // pred_check_branch
      %51 = sbr.rel (0) target = $region49
    $region48: #{bert_sent_classifier.1} parent=1 // pred_region
      _
    $region49: #{bert_sent_classifier.1} parent=1 // pred_fallthru
      _
    // Predicated region
    $region50: #{bert_sent_classifier.1} parent=1 // pred_check
      _
    $region51: #{bert_sent_classifier.1} parent=1 // pred_check_branch
      %53 = sbr.rel (0) target = $region53
    $region52: #{bert_sent_classifier.1} parent=1 // pred_region
      _
    $region53: #{bert_sent_classifier.1} parent=1 // pred_fallthru
      _
    // Predicated region
    $region54: #{bert_sent_classifier.1} parent=1 // pred_check
      _
    $region55: #{bert_sent_classifier.1} parent=1 // pred_check_branch
      %55 = sbr.rel (0) target = $region57
    $region56: #{bert_sent_classifier.1} parent=1 // pred_region
      _
    $region57: #{bert_sent_classifier.1} parent=1 // pred_fallthru
      _
    // Predicated region
    $region58: #{bert_sent_classifier.1} parent=1 // pred_check
      _
    $region59: #{bert_sent_classifier.1} parent=1 // pred_check_branch
      %57 = sbr.rel (0) target = $region61
    $region60: #{bert_sent_classifier.1} parent=1 // pred_region
      _
    $region61: #{bert_sent_classifier.1} parent=1 // pred_fallthru
      _
    // Predicated region
    $region62: #{bert_sent_classifier.1} parent=1 // pred_check
      _
    $region63: #{bert_sent_classifier.1} parent=1 // pred_check_branch
      %59 = sbr.rel (0) target = $region65
    $region64: #{bert_sent_classifier.1} parent=1 // pred_region
      _
    $region65: #{bert_sent_classifier.1} parent=1 // pred_fallthru
      _
    // Predicated region
    $region66: #{bert_sent_classifier.1} parent=1 // pred_check
      _
    $region67: #{bert_sent_classifier.1} parent=1 // pred_check_branch
      %61 = sbr.rel (0) target = $region69
    $region68: #{bert_sent_classifier.1} parent=1 // pred_region
      _
    $region69: #{bert_sent_classifier.1} parent=1 // pred_fallthru
      _
    // Predicated region
    $region70: #{bert_sent_classifier.1} parent=1 // pred_check
      _
    $region71: #{bert_sent_classifier.1} parent=1 // pred_check_branch
      %63 = sbr.rel (0) target = $region73
    $region72: #{bert_sent_classifier.1} parent=1 // pred_region
      _
    $region73: #{bert_sent_classifier.1} parent=1 // pred_fallthru
      _
    // Predicated region
    $region74: #{bert_sent_classifier.1} parent=1 // pred_check
      _
    $region75: #{bert_sent_classifier.1} parent=1 // pred_check_branch
      %65 = sbr.rel (0) target = $region77
    $region76: #{bert_sent_classifier.1} parent=1 // pred_region
      _
    $region77: #{bert_sent_classifier.1} parent=1 // pred_fallthru
      _
    // Predicated region
    $region78: #{bert_sent_classifier.1} parent=1 // pred_check
      _
    $region79: #{bert_sent_classifier.1} parent=1 // pred_check_branch
      %67 = sbr.rel (0) target = $region81
    $region80: #{bert_sent_classifier.1} parent=1 // pred_region
      _
    $region81: #{bert_sent_classifier.1} parent=1 // pred_fallthru
      _
    // Predicated region
    $region82: #{bert_sent_classifier.1} parent=1 // pred_check
      _
    $region83: #{bert_sent_classifier.1} parent=1 // pred_check_branch
      %69 = sbr.rel (0) target = $region85
    $region84: #{bert_sent_classifier.1} parent=1 // pred_region
      _
    $region85: #{bert_sent_classifier.1} parent=1 // pred_fallthru
      _
    // Predicated region
    $region86: #{bert_sent_classifier.1} parent=1 // pred_check
      _
    $region87: #{bert_sent_classifier.1} parent=1 // pred_check_branch
      %71 = sbr.rel (0) target = $region89
    $region88: #{bert_sent_classifier.1} parent=1 // pred_region
      _
    $region89: #{bert_sent_classifier.1} parent=1 // pred_fallthru
      _
    %v72 = vld [vmem:[%s1] sm:$0x1]
    %v73 = vld [vmem:[%s1 + $0x1] sm:$0x1]
    %v74 = vld [vmem:[%s0] sm:$0xff]
    %v75 = vld [vmem:[%s0 + $0x8] sm:$0xff]
    %v76 = vld [vmem:[%s2] sm:$0x1]
    %v77 = vld [vmem:[%s3] sm:$0x1]
    %vm78 = vcmask 261120
    %v79 = vsel %vm78, %v74, 0.0
    %80 = vadd.xlane.f32.xlu0 %v79
    %v81 = vpop.xlane.xlu0 %80
    %v82 = vsel %vm78, %v75, 0.0
    %83 = vadd.xlane.f32.xlu0 %v82
    %v84 = vpop.xlane.xlu0 %83
    %v85 = vrcp.pop 32.0
    %v86 = vmul.f32 %v81, %v85
    %v87 = vmul.f32 %v84, %v85
    %v88 = vsub.f32 %v74, %v86
    %v89 = vsub.f32 %v75, %v87
    %v90 = vmul.f32 %v88, %v88
    %v91 = vmul.f32 %v89, %v89
    %v92 = vsel %vm78, %v90, 0.0
    %93 = vadd.xlane.f32.xlu0 %v92
    %v94 = vpop.xlane.xlu0 %93
    %v95 = vsel %vm78, %v91, 0.0
    %96 = vadd.xlane.f32.xlu0 %v95
    %v97 = vpop.xlane.xlu0 %96
    %v98 = vmul.f32 %v94, %v85
    %v99 = vmul.f32 %v97, %v85
    %v100 = vadd.f32 %v98, 1e-12
    %v101 = vadd.f32 %v99, 1e-12
    %v102 = vrsqrt.pop %v100
    %v103 = vrsqrt.pop %v101
    %v104 = vmul.f32 %v88, %v102
    %v105 = vmul.f32 %v89, %v103
    %v107 = vlaneseq
    %v108 = vshrl.u32 %v107, 7
    %v109 = vsub.s32 0, %v108
    %v110 = vrot.slane %v76, %v109
    %v112 = vmul.f32 %v104, %v110
    %v113 = vmul.f32 %v105, %v110
    %v115 = vlaneseq
    %v116 = vshrl.u32 %v115, 7
    %v117 = vsub.s32 0, %v116
    %v118 = vrot.slane %v77, %v117
    %v120 = vadd.f32 %v112, %v118
    %v121 = vadd.f32 %v113, %v118
    %v122 = vld [vmem:[%s4] sm:$0xff]
    %v123 = vld [vmem:[%s4 + $0x8] sm:$0xff]
    %v124 = vld [vmem:[%s4 + $0x10] sm:$0xff]
    %v125 = vld [vmem:[%s4 + $0x18] sm:$0xff]
    %v126 = vld [vmem:[%s5] sm:$0x1]
    %v128 = vlaneseq
    %v129 = vshrl.u32 %v128, 7
    %v130 = vsub.s32 0, %v129
    %v131 = vrot.slane %v126, %v130
    %v134 = vsel %vm78, %v120, 0
    %v137 = vsel %vm78, %v121, 0
    %139 = vmatprep.subr.mxu0 0.0
    %140 = vmatpush1.msra.mxu0 0.0
    %141 = vmatprep.subr.mxu0 0.0
    %142 = vmatpush1.msra.mxu0 0.0
    %143 = vmatprep.subr.mxu0 0.0
    %144 = vmatpush1.msra.mxu0 0.0
    %145 = vmatprep.subr.mxu0 0.0
    %146 = vmatpush1.msra.mxu0 0.0
    %147 = vmatprep.subr.mxu0 0.0
    %148 = vmatpush1.msra.mxu0 0.0
    %149 = vmatprep.subr.mxu0 0.0
    %150 = vmatpush1.msra.mxu0 0.0
    %151 = vmatprep.subr.mxu0 0.0
    %152 = vmatpush1.msra.mxu0 0.0
    %153 = vmatprep.subr.mxu0 0.0
    %154 = vmatpush1.msra.mxu0 0.0
    %155 = vmatprep.subr.mxu0 0.0
    %156 = vmatpush1.msra.mxu0 0.0
    %157 = vmatprep.subr.mxu0 0.0
    %158 = vmatpush1.msra.mxu0 0.0
    %159 = vmatprep.subr.mxu0 0.0
    %160 = vmatpush1.msra.mxu0 0.0
    %161 = vmatprep.subr.mxu0 0.0
    %162 = vmatpush1.msra.mxu0 0.0
    %163 = vmatprep.subr.mxu0 0.0
    %164 = vmatpush1.msra.mxu0 %v125
    %165 = vmatprep.subr.mxu0 0.0
    %166 = vmatpush1.msra.mxu0 %v124
    %167 = vmatprep.subr.mxu0 0.0
    %168 = vmatpush1.msra.mxu0 %v123
    %169 = vmatprep.subr.mxu0 0.0
    %170 = vmatpush1.msra.mxu0 %v122
    %171 = vmatprep.subr.mxu0 0.0
    %172 = vmatpush2.msra.mxu0 0.0
    %173 = vmatprep.subr.mxu0 0.0
    %174 = vmatpush2.msra.mxu0 0.0
    %175 = vmatprep.subr.mxu0 0.0
    %176 = vmatpush2.msra.mxu0 0.0
    %177 = vmatprep.subr.mxu0 0.0
    %178 = vmatpush2.msra.mxu0 0.0
    %179 = vmatprep.subr.mxu0 0.0
    %180 = vmatpush2.msra.mxu0 0.0
    %181 = vmatprep.subr.mxu0 0.0
    %182 = vmatpush2.msra.mxu0 0.0
    %183 = vmatprep.subr.mxu0 0.0
    %184 = vmatpush2.msra.mxu0 0.0
    %185 = vmatprep.subr.mxu0 0.0
    %186 = vmatpush2.msra.mxu0 0.0
    %187 = vmatprep.subr.mxu0 0.0
    %188 = vmatpush2.msra.mxu0 0.0
    %189 = vmatprep.subr.mxu0 0.0
    %190 = vmatpush2.msra.mxu0 0.0
    %191 = vmatprep.subr.mxu0 0.0
    %192 = vmatpush2.msra.mxu0 0.0
    %193 = vmatprep.subr.mxu0 0.0
    %194 = vmatpush2.msra.mxu0 0.0
    %195 = vmatprep.subr.mxu0 0.0
    %196 = vmatpush2.msra.mxu0 0.0
    %197 = vmatprep.subr.mxu0 0.0
    %198 = vmatpush2.msra.mxu0 0.0
    %199 = vmatprep.subr.mxu0 0.0
    %200 = vmatpush2.msra.mxu0 0.0
    %201 = vmatprep.subr.mxu0 0.0
    %202 = vmatpush2.msra.mxu0 0.0
    %203 = vmatprep.mubr.f32.mxu0 0.0
    %204 = vmatmul.mubr.f32.gmra.mxu0 %v134
    %v205 = vpop.f32.mrf.mxu0
    %v206 = vadd.f32 %v131, %v205
    %v207 = vpop.f32.mrf.mxu0
    %208 = vmatprep.mubr.f32.mxu0 0.0
    %209 = vmatmul.mubr.f32.gmra.mxu0 %v137
    %v210 = vpop.f32.mrf.mxu0
    %v211 = vadd.f32 %v131, %v210
    %v212 = vpop.f32.mrf.mxu0
    %213 = vdwg.mxu0
    %v214 = vld [vmem:[%s6] sm:$0xff]
    %v215 = vld [vmem:[%s6 + $0x8] sm:$0xff]
    %v216 = vld [vmem:[%s6 + $0x10] sm:$0xff]
    %v217 = vld [vmem:[%s6 + $0x18] sm:$0xff]
    %v218 = vld [vmem:[%s7] sm:$0x1]
    %v220 = vlaneseq
    %v221 = vshrl.u32 %v220, 7
    %v222 = vsub.s32 0, %v221
    %v223 = vrot.slane %v218, %v222
    %225 = vmatprep.subr.mxu0 0.0
    %226 = vmatpush1.msra.mxu0 0.0
    %227 = vmatprep.subr.mxu0 0.0
    %228 = vmatpush1.msra.mxu0 0.0
    %229 = vmatprep.subr.mxu0 0.0
    %230 = vmatpush1.msra.mxu0 0.0
    %231 = vmatprep.subr.mxu0 0.0
    %232 = vmatpush1.msra.mxu0 0.0
    %233 = vmatprep.subr.mxu0 0.0
    %234 = vmatpush1.msra.mxu0 0.0
    %235 = vmatprep.subr.mxu0 0.0
    %236 = vmatpush1.msra.mxu0 0.0
    %237 = vmatprep.subr.mxu0 0.0
    %238 = vmatpush1.msra.mxu0 0.0
    %239 = vmatprep.subr.mxu0 0.0
    %240 = vmatpush1.msra.mxu0 0.0
    %241 = vmatprep.subr.mxu0 0.0
    %242 = vmatpush1.msra.mxu0 0.0
    %243 = vmatprep.subr.mxu0 0.0
    %244 = vmatpush1.msra.mxu0 0.0
    %245 = vmatprep.subr.mxu0 0.0
    %246 = vmatpush1.msra.mxu0 0.0
    %247 = vmatprep.subr.mxu0 0.0
    %248 = vmatpush1.msra.mxu0 0.0
    %249 = vmatprep.subr.mxu0 0.0
    %250 = vmatpush1.msra.mxu0 %v217
    %251 = vmatprep.subr.mxu0 0.0
    %252 = vmatpush1.msra.mxu0 %v216
    %253 = vmatprep.subr.mxu0 0.0
    %254 = vmatpush1.msra.mxu0 %v215
    %255 = vmatprep.subr.mxu0 0.0
    %256 = vmatpush1.msra.mxu0 %v214
    %257 = vmatprep.subr.mxu0 0.0
    %258 = vmatpush2.msra.mxu0 0.0
    %259 = vmatprep.subr.mxu0 0.0
    %260 = vmatpush2.msra.mxu0 0.0
    %261 = vmatprep.subr.mxu0 0.0
    %262 = vmatpush2.msra.mxu0 0.0
    %263 = vmatprep.subr.mxu0 0.0
    %264 = vmatpush2.msra.mxu0 0.0
    %265 = vmatprep.subr.mxu0 0.0
    %266 = vmatpush2.msra.mxu0 0.0
    %267 = vmatprep.subr.mxu0 0.0
    %268 = vmatpush2.msra.mxu0 0.0
    %269 = vmatprep.subr.mxu0 0.0
    %270 = vmatpush2.msra.mxu0 0.0
    %271 = vmatprep.subr.mxu0 0.0
    %272 = vmatpush2.msra.mxu0 0.0
    %273 = vmatprep.subr.mxu0 0.0
    %274 = vmatpush2.msra.mxu0 0.0
    %275 = vmatprep.subr.mxu0 0.0
    %276 = vmatpush2.msra.mxu0 0.0
    %277 = vmatprep.subr.mxu0 0.0
    %278 = vmatpush2.msra.mxu0 0.0
    %279 = vmatprep.subr.mxu0 0.0
    %280 = vmatpush2.msra.mxu0 0.0
    %281 = vmatprep.subr.mxu0 0.0
    %282 = vmatpush2.msra.mxu0 0.0
    %283 = vmatprep.subr.mxu0 0.0
    %284 = vmatpush2.msra.mxu0 0.0
    %285 = vmatprep.subr.mxu0 0.0
    %286 = vmatpush2.msra.mxu0 0.0
    %287 = vmatprep.subr.mxu0 0.0
    %288 = vmatpush2.msra.mxu0 0.0
    %289 = vmatprep.mubr.f32.mxu0 0.0
    %290 = vmatmul.mubr.f32.gmra.mxu0 %v134
    %v291 = vpop.f32.mrf.mxu0
    %v292 = vadd.f32 %v223, %v291
    %v293 = vpop.f32.mrf.mxu0
    %294 = vmatprep.mubr.f32.mxu0 0.0
    %295 = vmatmul.mubr.f32.gmra.mxu0 %v137
    %v296 = vpop.f32.mrf.mxu0
    %v297 = vadd.f32 %v223, %v296
    %v298 = vpop.f32.mrf.mxu0
    %299 = vdwg.mxu0
    %v300 = vld [vmem:[%s8] sm:$0xff]
    %v301 = vld [vmem:[%s8 + $0x8] sm:$0xff]
    %v302 = vld [vmem:[%s8 + $0x10] sm:$0xff]
    %v303 = vld [vmem:[%s8 + $0x18] sm:$0xff]
    %v304 = vld [vmem:[%s9] sm:$0x1]
    %v306 = vlaneseq
    %v307 = vshrl.u32 %v306, 7
    %v308 = vsub.s32 0, %v307
    %v309 = vrot.slane %v304, %v308
    %311 = vmatprep.subr.mxu0 0.0
    %312 = vmatpush1.msra.mxu0 0.0
    %313 = vmatprep.subr.mxu0 0.0
    %314 = vmatpush1.msra.mxu0 0.0
    %315 = vmatprep.subr.mxu0 0.0
    %316 = vmatpush1.msra.mxu0 0.0
    %317 = vmatprep.subr.mxu0 0.0
    %318 = vmatpush1.msra.mxu0 0.0
    %319 = vmatprep.subr.mxu0 0.0
    %320 = vmatpush1.msra.mxu0 0.0
    %321 = vmatprep.subr.mxu0 0.0
    %322 = vmatpush1.msra.mxu0 0.0
    %323 = vmatprep.subr.mxu0 0.0
    %324 = vmatpush1.msra.mxu0 0.0
    %325 = vmatprep.subr.mxu0 0.0
    %326 = vmatpush1.msra.mxu0 0.0
    %327 = vmatprep.subr.mxu0 0.0
    %328 = vmatpush1.msra.mxu0 0.0
    %329 = vmatprep.subr.mxu0 0.0
    %330 = vmatpush1.msra.mxu0 0.0
    %331 = vmatprep.subr.mxu0 0.0
    %332 = vmatpush1.msra.mxu0 0.0
    %333 = vmatprep.subr.mxu0 0.0
    %334 = vmatpush1.msra.mxu0 0.0
    %335 = vmatprep.subr.mxu0 0.0
    %336 = vmatpush1.msra.mxu0 %v303
    %337 = vmatprep.subr.mxu0 0.0
    %338 = vmatpush1.msra.mxu0 %v302
    %339 = vmatprep.subr.mxu0 0.0
    %340 = vmatpush1.msra.mxu0 %v301
    %341 = vmatprep.subr.mxu0 0.0
    %342 = vmatpush1.msra.mxu0 %v300
    %343 = vmatprep.subr.mxu0 0.0
    %344 = vmatpush2.msra.mxu0 0.0
    %345 = vmatprep.subr.mxu0 0.0
    %346 = vmatpush2.msra.mxu0 0.0
    %347 = vmatprep.subr.mxu0 0.0
    %348 = vmatpush2.msra.mxu0 0.0
    %349 = vmatprep.subr.mxu0 0.0
    %350 = vmatpush2.msra.mxu0 0.0
    %351 = vmatprep.subr.mxu0 0.0
    %352 = vmatpush2.msra.mxu0 0.0
    %353 = vmatprep.subr.mxu0 0.0
    %354 = vmatpush2.msra.mxu0 0.0
    %355 = vmatprep.subr.mxu0 0.0
    %356 = vmatpush2.msra.mxu0 0.0
    %357 = vmatprep.subr.mxu0 0.0
    %358 = vmatpush2.msra.mxu0 0.0
    %359 = vmatprep.subr.mxu0 0.0
    %360 = vmatpush2.msra.mxu0 0.0
    %361 = vmatprep.subr.mxu0 0.0
    %362 = vmatpush2.msra.mxu0 0.0
    %363 = vmatprep.subr.mxu0 0.0
    %364 = vmatpush2.msra.mxu0 0.0
    %365 = vmatprep.subr.mxu0 0.0
    %366 = vmatpush2.msra.mxu0 0.0
    %367 = vmatprep.subr.mxu0 0.0
    %368 = vmatpush2.msra.mxu0 0.0
    %369 = vmatprep.subr.mxu0 0.0
    %370 = vmatpush2.msra.mxu0 0.0
    %371 = vmatprep.subr.mxu0 0.0
    %372 = vmatpush2.msra.mxu0 0.0
    %373 = vmatprep.subr.mxu0 0.0
    %374 = vmatpush2.msra.mxu0 0.0
    %375 = vmatprep.mubr.f32.mxu0 0.0
    %376 = vmatmul.mubr.f32.gmra.mxu0 %v134
    %v377 = vpop.f32.mrf.mxu0
    %v378 = vadd.f32 %v309, %v377
    %v379 = vpop.f32.mrf.mxu0
    %380 = vmatprep.mubr.f32.mxu0 0.0
    %381 = vmatmul.mubr.f32.gmra.mxu0 %v137
    %v382 = vpop.f32.mrf.mxu0
    %v383 = vadd.f32 %v309, %v382
    %v384 = vpop.f32.mrf.mxu0
    %385 = vdwg.mxu0
    %vm386 = vcmask 130048
    %v388 = vsel %vm386, %v206, 0
    %v391 = vsel %vm386, %v292, 0
    %393 = vmatprep.subr.mxu0 0.0
    %394 = vmatpush1.xpose.msra.mxu0 0.0
    %395 = vmatprep.subr.mxu0 0.0
    %396 = vmatpush1.xpose.msra.mxu0 0.0
    %397 = vmatprep.subr.mxu0 0.0
    %398 = vmatpush1.xpose.msra.mxu0 0.0
    %399 = vmatprep.subr.mxu0 0.0
    %400 = vmatpush1.xpose.msra.mxu0 0.0
    %401 = vmatprep.subr.mxu0 0.0
    %402 = vmatpush1.xpose.msra.mxu0 0.0
    %403 = vmatprep.subr.mxu0 0.0
    %404 = vmatpush1.xpose.msra.mxu0 0.0
    %405 = vmatprep.subr.mxu0 0.0
    %406 = vmatpush1.xpose.msra.mxu0 0.0
    %407 = vmatprep.subr.mxu0 0.0
    %408 = vmatpush1.xpose.msra.mxu0 0.0
    %409 = vmatprep.subr.mxu0 0.0
    %410 = vmatpush1.xpose.msra.mxu0 0.0
    %411 = vmatprep.subr.mxu0 0.0
    %412 = vmatpush1.xpose.msra.mxu0 0.0
    %413 = vmatprep.subr.mxu0 0.0
    %414 = vmatpush1.xpose.msra.mxu0 0.0
    %415 = vmatprep.subr.mxu0 0.0
    %416 = vmatpush1.xpose.msra.mxu0 0.0
    %417 = vmatprep.subr.mxu0 0.0
    %418 = vmatpush1.xpose.msra.mxu0 0.0
    %419 = vmatprep.subr.mxu0 0.0
    %420 = vmatpush1.xpose.msra.mxu0 0.0
    %421 = vmatprep.subr.mxu0 0.0
    %422 = vmatpush1.xpose.msra.mxu0 0.0
    %423 = vmatprep.subr.mxu0 0.0
    %424 = vmatpush1.xpose.msra.mxu0 %v391
    %425 = vmatprep.subr.mxu0 0.0
    %426 = vmatpush2.xpose.msra.mxu0 0.0
    %427 = vmatprep.subr.mxu0 0.0
    %428 = vmatpush2.xpose.msra.mxu0 0.0
    %429 = vmatprep.subr.mxu0 0.0
    %430 = vmatpush2.xpose.msra.mxu0 0.0
    %431 = vmatprep.subr.mxu0 0.0
    %432 = vmatpush2.xpose.msra.mxu0 0.0
    %433 = vmatprep.subr.mxu0 0.0
    %434 = vmatpush2.xpose.msra.mxu0 0.0
    %435 = vmatprep.subr.mxu0 0.0
    %436 = vmatpush2.xpose.msra.mxu0 0.0
    %437 = vmatprep.subr.mxu0 0.0
    %438 = vmatpush2.xpose.msra.mxu0 0.0
    %439 = vmatprep.subr.mxu0 0.0
    %440 = vmatpush2.xpose.msra.mxu0 0.0
    %441 = vmatprep.subr.mxu0 0.0
    %442 = vmatpush2.xpose.msra.mxu0 0.0
    %443 = vmatprep.subr.mxu0 0.0
    %444 = vmatpush2.xpose.msra.mxu0 0.0
    %445 = vmatprep.subr.mxu0 0.0
    %446 = vmatpush2.xpose.msra.mxu0 0.0
    %447 = vmatprep.subr.mxu0 0.0
    %448 = vmatpush2.xpose.msra.mxu0 0.0
    %449 = vmatprep.subr.mxu0 0.0
    %450 = vmatpush2.xpose.msra.mxu0 0.0
    %451 = vmatprep.subr.mxu0 0.0
    %452 = vmatpush2.xpose.msra.mxu0 0.0
    %453 = vmatprep.subr.mxu0 0.0
    %454 = vmatpush2.xpose.msra.mxu0 0.0
    %455 = vmatprep.subr.mxu0 0.0
    %456 = vmatpush2.xpose.msra.mxu0 0.0
    %457 = vmatprep.mubr.f32.mxu0 0.0
    %458 = vmatmul.mubr.f32.gmra.mxu0 %v388
    %v459 = vpop.f32.mrf.mxu0
    %v460 = vadd.f32 0.0, %v459
    %v461 = vpop.f32.mrf.mxu0
    %462 = vdwg.mxu0
    %v464 = vsel %vm386, %v211, 0
    %v467 = vsel %vm386, %v297, 0
    %469 = vmatprep.subr.mxu0 0.0
    %470 = vmatpush1.xpose.msra.mxu0 0.0
    %471 = vmatprep.subr.mxu0 0.0
    %472 = vmatpush1.xpose.msra.mxu0 0.0
    %473 = vmatprep.subr.mxu0 0.0
    %474 = vmatpush1.xpose.msra.mxu0 0.0
    %475 = vmatprep.subr.mxu0 0.0
    %476 = vmatpush1.xpose.msra.mxu0 0.0
    %477 = vmatprep.subr.mxu0 0.0
    %478 = vmatpush1.xpose.msra.mxu0 0.0
    %479 = vmatprep.subr.mxu0 0.0
    %480 = vmatpush1.xpose.msra.mxu0 0.0
    %481 = vmatprep.subr.mxu0 0.0
    %482 = vmatpush1.xpose.msra.mxu0 0.0
    %483 = vmatprep.subr.mxu0 0.0
    %484 = vmatpush1.xpose.msra.mxu0 0.0
    %485 = vmatprep.subr.mxu0 0.0
    %486 = vmatpush1.xpose.msra.mxu0 0.0
    %487 = vmatprep.subr.mxu0 0.0
    %488 = vmatpush1.xpose.msra.mxu0 0.0
    %489 = vmatprep.subr.mxu0 0.0
    %490 = vmatpush1.xpose.msra.mxu0 0.0
    %491 = vmatprep.subr.mxu0 0.0
    %492 = vmatpush1.xpose.msra.mxu0 0.0
    %493 = vmatprep.subr.mxu0 0.0
    %494 = vmatpush1.xpose.msra.mxu0 0.0
    %495 = vmatprep.subr.mxu0 0.0
    %496 = vmatpush1.xpose.msra.mxu0 0.0
    %497 = vmatprep.subr.mxu0 0.0
    %498 = vmatpush1.xpose.msra.mxu0 0.0
    %499 = vmatprep.subr.mxu0 0.0
    %500 = vmatpush1.xpose.msra.mxu0 %v467
    %501 = vmatprep.subr.mxu0 0.0
    %502 = vmatpush2.xpose.msra.mxu0 0.0
    %503 = vmatprep.subr.mxu0 0.0
    %504 = vmatpush2.xpose.msra.mxu0 0.0
    %505 = vmatprep.subr.mxu0 0.0
    %506 = vmatpush2.xpose.msra.mxu0 0.0
    %507 = vmatprep.subr.mxu0 0.0
    %508 = vmatpush2.xpose.msra.mxu0 0.0
    %509 = vmatprep.subr.mxu0 0.0
    %510 = vmatpush2.xpose.msra.mxu0 0.0
    %511 = vmatprep.subr.mxu0 0.0
    %512 = vmatpush2.xpose.msra.mxu0 0.0
    %513 = vmatprep.subr.mxu0 0.0
    %514 = vmatpush2.xpose.msra.mxu0 0.0
    %515 = vmatprep.subr.mxu0 0.0
    %516 = vmatpush2.xpose.msra.mxu0 0.0
    %517 = vmatprep.subr.mxu0 0.0
    %518 = vmatpush2.xpose.msra.mxu0 0.0
    %519 = vmatprep.subr.mxu0 0.0
    %520 = vmatpush2.xpose.msra.mxu0 0.0
    %521 = vmatprep.subr.mxu0 0.0
    %522 = vmatpush2.xpose.msra.mxu0 0.0
    %523 = vmatprep.subr.mxu0 0.0
    %524 = vmatpush2.xpose.msra.mxu0 0.0
    %525 = vmatprep.subr.mxu0 0.0
    %526 = vmatpush2.xpose.msra.mxu0 0.0
    %527 = vmatprep.subr.mxu0 0.0
    %528 = vmatpush2.xpose.msra.mxu0 0.0
    %529 = vmatprep.subr.mxu0 0.0
    %530 = vmatpush2.xpose.msra.mxu0 0.0
    %531 = vmatprep.subr.mxu0 0.0
    %532 = vmatpush2.xpose.msra.mxu0 0.0
    %533 = vmatprep.mubr.f32.mxu0 0.0
    %534 = vmatmul.mubr.f32.gmra.mxu0 %v464
    %v535 = vpop.f32.mrf.mxu0
    %v536 = vadd.f32 0.0, %v535
    %v537 = vpop.f32.mrf.mxu0
    %538 = vdwg.mxu0
    %v539 = vmul.f32 %v460, 0.25
    %v540 = vmul.f32 %v536, 0.25
    %v543 = vlaneseq
    %v544 = vshrl.u32 %v543, 7
    %v545 = vsub.s32 0, %v544
    %v546 = vrot.slane %v72, %v545
    %v547 = vlaneseq
    %v548 = vshrl.u32 %v547, 7
    %v549 = vsub.s32 0, %v548
    %v550 = vrot.slane %v73, %v549
    %v553 = vadd.f32 %v539, %v546
    %v554 = vadd.f32 %v540, %v550
    %vm555 = vcmask 64512
    %v556 = vsel %vm555, %v553, -inf
    %557 = vmax.xlane.f32.xlu0 %v556
    %v558 = vpop.xlane.xlu0 %557
    %v559 = vsel %vm555, %v554, -inf
    %560 = vmax.xlane.f32.xlu0 %v559
    %v561 = vpop.xlane.xlu0 %560
    %v562 = vsub.f32 %v553, %v558
    %v563 = vsub.f32 %v554, %v561
    %v564 = vmul.f32 %v562, 1.442695
    %v565 = vpow.pop %v564
    %v566 = vmul.f32 %v563, 1.442695
    %v567 = vpow.pop %v566
    %v568 = vsel %vm555, %v565, 0.0
    %569 = vadd.xlane.f32.xlu0 %v568
    %v570 = vpop.xlane.xlu0 %569
    %v571 = vsel %vm555, %v567, 0.0
    %572 = vadd.xlane.f32.xlu0 %v571
    %v573 = vpop.xlane.xlu0 %572
    %v574 = vrcp.pop %v570
    %v575 = vrcp.pop %v573
    %v576 = vmul.f32 %v565, %v574
    %v577 = vmul.f32 %v567, %v575
    %v579 = vsel %vm555, %v576, 0
    %581 = vmatprep.subr.mxu0 0.0
    %582 = vmatpush1.msra.mxu0 0.0
    %583 = vmatprep.subr.mxu0 0.0
    %584 = vmatpush1.msra.mxu0 0.0
    %585 = vmatprep.subr.mxu0 0.0
    %586 = vmatpush1.msra.mxu0 0.0
    %587 = vmatprep.subr.mxu0 0.0
    %588 = vmatpush1.msra.mxu0 0.0
    %589 = vmatprep.subr.mxu0 0.0
    %590 = vmatpush1.msra.mxu0 0.0
    %591 = vmatprep.subr.mxu0 0.0
    %592 = vmatpush1.msra.mxu0 0.0
    %593 = vmatprep.subr.mxu0 0.0
    %594 = vmatpush1.msra.mxu0 0.0
    %595 = vmatprep.subr.mxu0 0.0
    %596 = vmatpush1.msra.mxu0 0.0
    %597 = vmatprep.subr.mxu0 0.0
    %598 = vmatpush1.msra.mxu0 0.0
    %599 = vmatprep.subr.mxu0 0.0
    %600 = vmatpush1.msra.mxu0 0.0
    %601 = vmatprep.subr.mxu0 0.0
    %602 = vmatpush1.msra.mxu0 0.0
    %603 = vmatprep.subr.mxu0 0.0
    %604 = vmatpush1.msra.mxu0 0.0
    %605 = vmatprep.subr.mxu0 0.0
    %606 = vmatpush1.msra.mxu0 0.0
    %607 = vmatprep.subr.mxu0 0.0
    %608 = vmatpush1.msra.mxu0 0.0
    %609 = vmatprep.subr.mxu0 0.0
    %610 = vmatpush1.msra.mxu0 0.0
    %611 = vmatprep.subr.mxu0 0.0
    %612 = vmatpush1.msra.mxu0 %v378
    %613 = vmatprep.subr.mxu0 0.0
    %614 = vmatpush2.msra.mxu0 0.0
    %615 = vmatprep.subr.mxu0 0.0
    %616 = vmatpush2.msra.mxu0 0.0
    %617 = vmatprep.subr.mxu0 0.0
    %618 = vmatpush2.msra.mxu0 0.0
    %619 = vmatprep.subr.mxu0 0.0
    %620 = vmatpush2.msra.mxu0 0.0
    %621 = vmatprep.subr.mxu0 0.0
    %622 = vmatpush2.msra.mxu0 0.0
    %623 = vmatprep.subr.mxu0 0.0
    %624 = vmatpush2.msra.mxu0 0.0
    %625 = vmatprep.subr.mxu0 0.0
    %626 = vmatpush2.msra.mxu0 0.0
    %627 = vmatprep.subr.mxu0 0.0
    %628 = vmatpush2.msra.mxu0 0.0
    %629 = vmatprep.subr.mxu0 0.0
    %630 = vmatpush2.msra.mxu0 0.0
    %631 = vmatprep.subr.mxu0 0.0
    %632 = vmatpush2.msra.mxu0 0.0
    %633 = vmatprep.subr.mxu0 0.0
    %634 = vmatpush2.msra.mxu0 0.0
    %635 = vmatprep.subr.mxu0 0.0
    %636 = vmatpush2.msra.mxu0 0.0
    %637 = vmatprep.subr.mxu0 0.0
    %638 = vmatpush2.msra.mxu0 0.0
    %639 = vmatprep.subr.mxu0 0.0
    %640 = vmatpush2.msra.mxu0 0.0
    %641 = vmatprep.subr.mxu0 0.0
    %642 = vmatpush2.msra.mxu0 0.0
    %643 = vmatprep.subr.mxu0 0.0
    %644 = vmatpush2.msra.mxu0 0.0
    %645 = vmatprep.mubr.f32.mxu0 0.0
    %646 = vmatmul.mubr.f32.gmra.mxu0 %v579
    %v647 = vpop.f32.mrf.mxu0
    %v648 = vadd.f32 0.0, %v647
    %v649 = vpop.f32.mrf.mxu0
    %650 = vdwg.mxu0
    %v652 = vsel %vm555, %v577, 0
    %654 = vmatprep.subr.mxu0 0.0
    %655 = vmatpush1.msra.mxu0 0.0
    %656 = vmatprep.subr.mxu0 0.0
    %657 = vmatpush1.msra.mxu0 0.0
    %658 = vmatprep.subr.mxu0 0.0
    %659 = vmatpush1.msra.mxu0 0.0
    %660 = vmatprep.subr.mxu0 0.0
    %661 = vmatpush1.msra.mxu0 0.0
    %662 = vmatprep.subr.mxu0 0.0
    %663 = vmatpush1.msra.mxu0 0.0
    %664 = vmatprep.subr.mxu0 0.0
    %665 = vmatpush1.msra.mxu0 0.0
    %666 = vmatprep.subr.mxu0 0.0
    %667 = vmatpush1.msra.mxu0 0.0
    %668 = vmatprep.subr.mxu0 0.0
    %669 = vmatpush1.msra.mxu0 0.0
    %670 = vmatprep.subr.mxu0 0.0
    %671 = vmatpush1.msra.mxu0 0.0
    %672 = vmatprep.subr.mxu0 0.0
    %673 = vmatpush1.msra.mxu0 0.0
    %674 = vmatprep.subr.mxu0 0.0
    %675 = vmatpush1.msra.mxu0 0.0
    %676 = vmatprep.subr.mxu0 0.0
    %677 = vmatpush1.msra.mxu0 0.0
    %678 = vmatprep.subr.mxu0 0.0
    %679 = vmatpush1.msra.mxu0 0.0
    %680 = vmatprep.subr.mxu0 0.0
    %681 = vmatpush1.msra.mxu0 0.0
    %682 = vmatprep.subr.mxu0 0.0
    %683 = vmatpush1.msra.mxu0 0.0
    %684 = vmatprep.subr.mxu0 0.0
    %685 = vmatpush1.msra.mxu0 %v383
    %686 = vmatprep.subr.mxu0 0.0
    %687 = vmatpush2.msra.mxu0 0.0
    %688 = vmatprep.subr.mxu0 0.0
    %689 = vmatpush2.msra.mxu0 0.0
    %690 = vmatprep.subr.mxu0 0.0
    %691 = vmatpush2.msra.mxu0 0.0
    %692 = vmatprep.subr.mxu0 0.0
    %693 = vmatpush2.msra.mxu0 0.0
    %694 = vmatprep.subr.mxu0 0.0
    %695 = vmatpush2.msra.mxu0 0.0
    %696 = vmatprep.subr.mxu0 0.0
    %697 = vmatpush2.msra.mxu0 0.0
    %698 = vmatprep.subr.mxu0 0.0
    %699 = vmatpush2.msra.mxu0 0.0
    %700 = vmatprep.subr.mxu0 0.0
    %701 = vmatpush2.msra.mxu0 0.0
    %702 = vmatprep.subr.mxu0 0.0
    %703 = vmatpush2.msra.mxu0 0.0
    %704 = vmatprep.subr.mxu0 0.0
    %705 = vmatpush2.msra.mxu0 0.0
    %706 = vmatprep.subr.mxu0 0.0
    %707 = vmatpush2.msra.mxu0 0.0
    %708 = vmatprep.subr.mxu0 0.0
    %709 = vmatpush2.msra.mxu0 0.0
    %710 = vmatprep.subr.mxu0 0.0
    %711 = vmatpush2.msra.mxu0 0.0
    %712 = vmatprep.subr.mxu0 0.0
    %713 = vmatpush2.msra.mxu0 0.0
    %714 = vmatprep.subr.mxu0 0.0
    %715 = vmatpush2.msra.mxu0 0.0
    %716 = vmatprep.subr.mxu0 0.0
    %717 = vmatpush2.msra.mxu0 0.0
    %718 = vmatprep.mubr.f32.mxu0 0.0
    %719 = vmatmul.mubr.f32.gmra.mxu0 %v652
    %v720 = vpop.f32.mrf.mxu0
    %v721 = vadd.f32 0.0, %v720
    %v722 = vpop.f32.mrf.mxu0
    %723 = vdwg.mxu0
    %724 = vrot.lane.b32.xlu0 %v206, 112
    %v725 = vpop.permute.xlu0 %724
    %726 = vrot.lane.b32.xlu0 %v292, 112
    %v727 = vpop.permute.xlu0 %726
    %v728 = vsel %vm386, %v725, 0
    %v730 = vsel %vm386, %v727, 0
    %732 = vmatprep.subr.mxu0 0.0
    %733 = vmatpush1.xpose.msra.mxu0 0.0
    %734 = vmatprep.subr.mxu0 0.0
    %735 = vmatpush1.xpose.msra.mxu0 0.0
    %736 = vmatprep.subr.mxu0 0.0
    %737 = vmatpush1.xpose.msra.mxu0 0.0
    %738 = vmatprep.subr.mxu0 0.0
    %739 = vmatpush1.xpose.msra.mxu0 0.0
    %740 = vmatprep.subr.mxu0 0.0
    %741 = vmatpush1.xpose.msra.mxu0 0.0
    %742 = vmatprep.subr.mxu0 0.0
    %743 = vmatpush1.xpose.msra.mxu0 0.0
    %744 = vmatprep.subr.mxu0 0.0
    %745 = vmatpush1.xpose.msra.mxu0 0.0
    %746 = vmatprep.subr.mxu0 0.0
    %747 = vmatpush1.xpose.msra.mxu0 0.0
    %748 = vmatprep.subr.mxu0 0.0
    %749 = vmatpush1.xpose.msra.mxu0 0.0
    %750 = vmatprep.subr.mxu0 0.0
    %751 = vmatpush1.xpose.msra.mxu0 0.0
    %752 = vmatprep.subr.mxu0 0.0
    %753 = vmatpush1.xpose.msra.mxu0 0.0
    %754 = vmatprep.subr.mxu0 0.0
    %755 = vmatpush1.xpose.msra.mxu0 0.0
    %756 = vmatprep.subr.mxu0 0.0
    %757 = vmatpush1.xpose.msra.mxu0 0.0
    %758 = vmatprep.subr.mxu0 0.0
    %759 = vmatpush1.xpose.msra.mxu0 0.0
    %760 = vmatprep.subr.mxu0 0.0
    %761 = vmatpush1.xpose.msra.mxu0 0.0
    %762 = vmatprep.subr.mxu0 0.0
    %763 = vmatpush1.xpose.msra.mxu0 %v730
    %764 = vmatprep.subr.mxu0 0.0
    %765 = vmatpush2.xpose.msra.mxu0 0.0
    %766 = vmatprep.subr.mxu0 0.0
    %767 = vmatpush2.xpose.msra.mxu0 0.0
    %768 = vmatprep.subr.mxu0 0.0
    %769 = vmatpush2.xpose.msra.mxu0 0.0
    %770 = vmatprep.subr.mxu0 0.0
    %771 = vmatpush2.xpose.msra.mxu0 0.0
    %772 = vmatprep.subr.mxu0 0.0
    %773 = vmatpush2.xpose.msra.mxu0 0.0
    %774 = vmatprep.subr.mxu0 0.0
    %775 = vmatpush2.xpose.msra.mxu0 0.0
    %776 = vmatprep.subr.mxu0 0.0
    %777 = vmatpush2.xpose.msra.mxu0 0.0
    %778 = vmatprep.subr.mxu0 0.0
    %779 = vmatpush2.xpose.msra.mxu0 0.0
    %780 = vmatprep.subr.mxu0 0.0
    %781 = vmatpush2.xpose.msra.mxu0 0.0
    %782 = vmatprep.subr.mxu0 0.0
    %783 = vmatpush2.xpose.msra.mxu0 0.0
    %784 = vmatprep.subr.mxu0 0.0
    %785 = vmatpush2.xpose.msra.mxu0 0.0
    %786 = vmatprep.subr.mxu0 0.0
    %787 = vmatpush2.xpose.msra.mxu0 0.0
    %788 = vmatprep.subr.mxu0 0.0
    %789 = vmatpush2.xpose.msra.mxu0 0.0
    %790 = vmatprep.subr.mxu0 0.0
    %791 = vmatpush2.xpose.msra.mxu0 0.0
    %792 = vmatprep.subr.mxu0 0.0
    %793 = vmatpush2.xpose.msra.mxu0 0.0
    %794 = vmatprep.subr.mxu0 0.0
    %795 = vmatpush2.xpose.msra.mxu0 0.0
    %796 = vmatprep.mubr.f32.mxu0 0.0
    %797 = vmatmul.mubr.f32.gmra.mxu0 %v728
    %v798 = vpop.f32.mrf.mxu0
    %v799 = vadd.f32 0.0, %v798
    %v800 = vpop.f32.mrf.mxu0
    %801 = vdwg.mxu0
    %802 = vrot.lane.b32.xlu0 %v211, 112
    %v803 = vpop.permute.xlu0 %802
    %804 = vrot.lane.b32.xlu0 %v297, 112
    %v805 = vpop.permute.xlu0 %804
    %v806 = vsel %vm386, %v803, 0
    %v808 = vsel %vm386, %v805, 0
    %810 = vmatprep.subr.mxu0 0.0
    %811 = vmatpush1.xpose.msra.mxu0 0.0
    %812 = vmatprep.subr.mxu0 0.0
    %813 = vmatpush1.xpose.msra.mxu0 0.0
    %814 = vmatprep.subr.mxu0 0.0
    %815 = vmatpush1.xpose.msra.mxu0 0.0
    %816 = vmatprep.subr.mxu0 0.0
    %817 = vmatpush1.xpose.msra.mxu0 0.0
    %818 = vmatprep.subr.mxu0 0.0
    %819 = vmatpush1.xpose.msra.mxu0 0.0
    %820 = vmatprep.subr.mxu0 0.0
    %821 = vmatpush1.xpose.msra.mxu0 0.0
    %822 = vmatprep.subr.mxu0 0.0
    %823 = vmatpush1.xpose.msra.mxu0 0.0
    %824 = vmatprep.subr.mxu0 0.0
    %825 = vmatpush1.xpose.msra.mxu0 0.0
    %826 = vmatprep.subr.mxu0 0.0
    %827 = vmatpush1.xpose.msra.mxu0 0.0
    %828 = vmatprep.subr.mxu0 0.0
    %829 = vmatpush1.xpose.msra.mxu0 0.0
    %830 = vmatprep.subr.mxu0 0.0
    %831 = vmatpush1.xpose.msra.mxu0 0.0
    %832 = vmatprep.subr.mxu0 0.0
    %833 = vmatpush1.xpose.msra.mxu0 0.0
    %834 = vmatprep.subr.mxu0 0.0
    %835 = vmatpush1.xpose.msra.mxu0 0.0
    %836 = vmatprep.subr.mxu0 0.0
    %837 = vmatpush1.xpose.msra.mxu0 0.0
    %838 = vmatprep.subr.mxu0 0.0
    %839 = vmatpush1.xpose.msra.mxu0 0.0
    %840 = vmatprep.subr.mxu0 0.0
    %841 = vmatpush1.xpose.msra.mxu0 %v808
    %842 = vmatprep.subr.mxu0 0.0
    %843 = vmatpush2.xpose.msra.mxu0 0.0
    %844 = vmatprep.subr.mxu0 0.0
    %845 = vmatpush2.xpose.msra.mxu0 0.0
    %846 = vmatprep.subr.mxu0 0.0
    %847 = vmatpush2.xpose.msra.mxu0 0.0
    %848 = vmatprep.subr.mxu0 0.0
    %849 = vmatpush2.xpose.msra.mxu0 0.0
    %850 = vmatprep.subr.mxu0 0.0
    %851 = vmatpush2.xpose.msra.mxu0 0.0
    %852 = vmatprep.subr.mxu0 0.0
    %853 = vmatpush2.xpose.msra.mxu0 0.0
    %854 = vmatprep.subr.mxu0 0.0
    %855 = vmatpush2.xpose.msra.mxu0 0.0
    %856 = vmatprep.subr.mxu0 0.0
    %857 = vmatpush2.xpose.msra.mxu0 0.0
    %858 = vmatprep.subr.mxu0 0.0
    %859 = vmatpush2.xpose.msra.mxu0 0.0
    %860 = vmatprep.subr.mxu0 0.0
    %861 = vmatpush2.xpose.msra.mxu0 0.0
    %862 = vmatprep.subr.mxu0 0.0
    %863 = vmatpush2.xpose.msra.mxu0 0.0
    %864 = vmatprep.subr.mxu0 0.0
    %865 = vmatpush2.xpose.msra.mxu0 0.0
    %866 = vmatprep.subr.mxu0 0.0
    %867 = vmatpush2.xpose.msra.mxu0 0.0
    %868 = vmatprep.subr.mxu0 0.0
    %869 = vmatpush2.xpose.msra.mxu0 0.0
    %870 = vmatprep.subr.mxu0 0.0
    %871 = vmatpush2.xpose.msra.mxu0 0.0
    %872 = vmatprep.subr.mxu0 0.0
    %873 = vmatpush2.xpose.msra.mxu0 0.0
    %874 = vmatprep.mubr.f32.mxu0 0.0
    %875 = vmatmul.mubr.f32.gmra.mxu0 %v806
    %v876 = vpop.f32.mrf.mxu0
    %v877 = vadd.f32 0.0, %v876
    %v878 = vpop.f32.mrf.mxu0
    %879 = vdwg.mxu0
    %v880 = vmul.f32 %v799, 0.25
    %v881 = vmul.f32 %v877, 0.25
    %v882 = vadd.f32 %v880, %v546
    %v883 = vadd.f32 %v881, %v550
    %v884 = vsel %vm555, %v882, -inf
    %885 = vmax.xlane.f32.xlu0 %v884
    %v886 = vpop.xlane.xlu0 %885
    %v887 = vsel %vm555, %v883, -inf
    %888 = vmax.xlane.f32.xlu0 %v887
    %v889 = vpop.xlane.xlu0 %888
    %v890 = vsub.f32 %v882, %v886
    %v891 = vsub.f32 %v883, %v889
    %v892 = vmul.f32 %v890, 1.442695
    %v893 = vpow.pop %v892
    %v894 = vmul.f32 %v891, 1.442695
    %v895 = vpow.pop %v894
    %v896 = vsel %vm555, %v893, 0.0
    %897 = vadd.xlane.f32.xlu0 %v896
    %v898 = vpop.xlane.xlu0 %897
    %v899 = vsel %vm555, %v895, 0.0
    %900 = vadd.xlane.f32.xlu0 %v899
    %v901 = vpop.xlane.xlu0 %900
    %v902 = vrcp.pop %v898
    %v903 = vrcp.pop %v901
    %v904 = vmul.f32 %v893, %v902
    %v905 = vmul.f32 %v895, %v903
    %907 = vrot.lane.b32.xlu0 %v378, 112
    %v908 = vpop.permute.xlu0 %907
    %v911 = vsel %vm555, %v904, 0
    %913 = vmatprep.subr.mxu0 0.0
    %914 = vmatpush1.msra.mxu0 0.0
    %915 = vmatprep.subr.mxu0 0.0
    %916 = vmatpush1.msra.mxu0 0.0
    %917 = vmatprep.subr.mxu0 0.0
    %918 = vmatpush1.msra.mxu0 0.0
    %919 = vmatprep.subr.mxu0 0.0
    %920 = vmatpush1.msra.mxu0 0.0
    %921 = vmatprep.subr.mxu0 0.0
    %922 = vmatpush1.msra.mxu0 0.0
    %923 = vmatprep.subr.mxu0 0.0
    %924 = vmatpush1.msra.mxu0 0.0
    %925 = vmatprep.subr.mxu0 0.0
    %926 = vmatpush1.msra.mxu0 0.0
    %927 = vmatprep.subr.mxu0 0.0
    %928 = vmatpush1.msra.mxu0 0.0
    %929 = vmatprep.subr.mxu0 0.0
    %930 = vmatpush1.msra.mxu0 0.0
    %931 = vmatprep.subr.mxu0 0.0
    %932 = vmatpush1.msra.mxu0 0.0
    %933 = vmatprep.subr.mxu0 0.0
    %934 = vmatpush1.msra.mxu0 0.0
    %935 = vmatprep.subr.mxu0 0.0
    %936 = vmatpush1.msra.mxu0 0.0
    %937 = vmatprep.subr.mxu0 0.0
    %938 = vmatpush1.msra.mxu0 0.0
    %939 = vmatprep.subr.mxu0 0.0
    %940 = vmatpush1.msra.mxu0 0.0
    %941 = vmatprep.subr.mxu0 0.0
    %942 = vmatpush1.msra.mxu0 0.0
    %943 = vmatprep.subr.mxu0 0.0
    %944 = vmatpush1.msra.mxu0 %v908
    %945 = vmatprep.subr.mxu0 0.0
    %946 = vmatpush2.msra.mxu0 0.0
    %947 = vmatprep.subr.mxu0 0.0
    %948 = vmatpush2.msra.mxu0 0.0
    %949 = vmatprep.subr.mxu0 0.0
    %950 = vmatpush2.msra.mxu0 0.0
    %951 = vmatprep.subr.mxu0 0.0
    %952 = vmatpush2.msra.mxu0 0.0
    %953 = vmatprep.subr.mxu0 0.0
    %954 = vmatpush2.msra.mxu0 0.0
    %955 = vmatprep.subr.mxu0 0.0
    %956 = vmatpush2.msra.mxu0 0.0
    %957 = vmatprep.subr.mxu0 0.0
    %958 = vmatpush2.msra.mxu0 0.0
    %959 = vmatprep.subr.mxu0 0.0
    %960 = vmatpush2.msra.mxu0 0.0
    %961 = vmatprep.subr.mxu0 0.0
    %962 = vmatpush2.msra.mxu0 0.0
    %963 = vmatprep.subr.mxu0 0.0
    %964 = vmatpush2.msra.mxu0 0.0
    %965 = vmatprep.subr.mxu0 0.0
    %966 = vmatpush2.msra.mxu0 0.0
    %967 = vmatprep.subr.mxu0 0.0
    %968 = vmatpush2.msra.mxu0 0.0
    %969 = vmatprep.subr.mxu0 0.0
    %970 = vmatpush2.msra.mxu0 0.0
    %971 = vmatprep.subr.mxu0 0.0
    %972 = vmatpush2.msra.mxu0 0.0
    %973 = vmatprep.subr.mxu0 0.0
    %974 = vmatpush2.msra.mxu0 0.0
    %975 = vmatprep.subr.mxu0 0.0
    %976 = vmatpush2.msra.mxu0 0.0
    %977 = vmatprep.mubr.f32.mxu0 0.0
    %978 = vmatmul.mubr.f32.gmra.mxu0 %v911
    %v979 = vpop.f32.mrf.mxu0
    %v980 = vadd.f32 0.0, %v979
    %v981 = vpop.f32.mrf.mxu0
    %982 = vdwg.mxu0
    %984 = vrot.lane.b32.xlu0 %v383, 112
    %v985 = vpop.permute.xlu0 %984
    %v988 = vsel %vm555, %v905, 0
    %990 = vmatprep.subr.mxu0 0.0
    %991 = vmatpush1.msra.mxu0 0.0
    %992 = vmatprep.subr.mxu0 0.0
    %993 = vmatpush1.msra.mxu0 0.0
    %994 = vmatprep.subr.mxu0 0.0
    %995 = vmatpush1.msra.mxu0 0.0
    %996 = vmatprep.subr.mxu0 0.0
    %997 = vmatpush1.msra.mxu0 0.0
    %998 = vmatprep.subr.mxu0 0.0
    %999 = vmatpush1.msra.mxu0 0.0
    %1000 = vmatprep.subr.mxu0 0.0
    %1001 = vmatpush1.msra.mxu0 0.0
    %1002 = vmatprep.subr.mxu0 0.0
    %1003 = vmatpush1.msra.mxu0 0.0
    %1004 = vmatprep.subr.mxu0 0.0
    %1005 = vmatpush1.msra.mxu0 0.0
    %1006 = vmatprep.subr.mxu0 0.0
    %1007 = vmatpush1.msra.mxu0 0.0
    %1008 = vmatprep.subr.mxu0 0.0
    %1009 = vmatpush1.msra.mxu0 0.0
    %1010 = vmatprep.subr.mxu0 0.0
    %1011 = vmatpush1.msra.mxu0 0.0
    %1012 = vmatprep.subr.mxu0 0.0
    %1013 = vmatpush1.msra.mxu0 0.0
    %1014 = vmatprep.subr.mxu0 0.0
    %1015 = vmatpush1.msra.mxu0 0.0
    %1016 = vmatprep.subr.mxu0 0.0
    %1017 = vmatpush1.msra.mxu0 0.0
    %1018 = vmatprep.subr.mxu0 0.0
    %1019 = vmatpush1.msra.mxu0 0.0
    %1020 = vmatprep.subr.mxu0 0.0
    %1021 = vmatpush1.msra.mxu0 %v985
    %1022 = vmatprep.subr.mxu0 0.0
    %1023 = vmatpush2.msra.mxu0 0.0
    %1024 = vmatprep.subr.mxu0 0.0
    %1025 = vmatpush2.msra.mxu0 0.0
    %1026 = vmatprep.subr.mxu0 0.0
    %1027 = vmatpush2.msra.mxu0 0.0
    %1028 = vmatprep.subr.mxu0 0.0
    %1029 = vmatpush2.msra.mxu0 0.0
    %1030 = vmatprep.subr.mxu0 0.0
    %1031 = vmatpush2.msra.mxu0 0.0
    %1032 = vmatprep.subr.mxu0 0.0
    %1033 = vmatpush2.msra.mxu0 0.0
    %1034 = vmatprep.subr.mxu0 0.0
    %1035 = vmatpush2.msra.mxu0 0.0
    %1036 = vmatprep.subr.mxu0 0.0
    %1037 = vmatpush2.msra.mxu0 0.0
    %1038 = vmatprep.subr.mxu0 0.0
    %1039 = vmatpush2.msra.mxu0 0.0
    %1040 = vmatprep.subr.mxu0 0.0
    %1041 = vmatpush2.msra.mxu0 0.0
    %1042 = vmatprep.subr.mxu0 0.0
    %1043 = vmatpush2.msra.mxu0 0.0
    %1044 = vmatprep.subr.mxu0 0.0
    %1045 = vmatpush2.msra.mxu0 0.0
    %1046 = vmatprep.subr.mxu0 0.0
    %1047 = vmatpush2.msra.mxu0 0.0
    %1048 = vmatprep.subr.mxu0 0.0
    %1049 = vmatpush2.msra.mxu0 0.0
    %1050 = vmatprep.subr.mxu0 0.0
    %1051 = vmatpush2.msra.mxu0 0.0
    %1052 = vmatprep.subr.mxu0 0.0
    %1053 = vmatpush2.msra.mxu0 0.0
    %1054 = vmatprep.mubr.f32.mxu0 0.0
    %1055 = vmatmul.mubr.f32.gmra.mxu0 %v988
    %v1056 = vpop.f32.mrf.mxu0
    %v1057 = vadd.f32 0.0, %v1056
    %v1058 = vpop.f32.mrf.mxu0
    %1059 = vdwg.mxu0
    %1062 = vrot.lane.b32.xlu0 %v980, 16
    %v1063 = vpop.permute.xlu0 %1062
    %1064 = vrot.lane.b32.xlu0 %v1057, 16
    %v1065 = vpop.permute.xlu0 %1064
    %v1068 = vsel %vm386, %v648, %v1063
    %v1069 = vsel %vm386, %v721, %v1065
    %v1070 = vld [vmem:[%s10] sm:$0xff]
    %v1071 = vld [vmem:[%s10 + $0x8] sm:$0xff]
    %v1072 = vld [vmem:[%s10 + $0x10] sm:$0xff]
    %v1073 = vld [vmem:[%s10 + $0x18] sm:$0xff]
    %v1074 = vld [vmem:[%s11] sm:$0x1]
    %v1076 = vlaneseq
    %v1077 = vshrl.u32 %v1076, 7
    %v1078 = vsub.s32 0, %v1077
    %v1079 = vrot.slane %v1074, %v1078
    %v1082 = vsel %vm78, %v1068, 0
    %v1085 = vsel %vm78, %v1069, 0
    %1087 = vmatprep.subr.mxu0 0.0
    %1088 = vmatpush1.msra.mxu0 0.0
    %1089 = vmatprep.subr.mxu0 0.0
    %1090 = vmatpush1.msra.mxu0 0.0
    %1091 = vmatprep.subr.mxu0 0.0
    %1092 = vmatpush1.msra.mxu0 0.0
    %1093 = vmatprep.subr.mxu0 0.0
    %1094 = vmatpush1.msra.mxu0 0.0
    %1095 = vmatprep.subr.mxu0 0.0
    %1096 = vmatpush1.msra.mxu0 0.0
    %1097 = vmatprep.subr.mxu0 0.0
    %1098 = vmatpush1.msra.mxu0 0.0
    %1099 = vmatprep.subr.mxu0 0.0
    %1100 = vmatpush1.msra.mxu0 0.0
    %1101 = vmatprep.subr.mxu0 0.0
    %1102 = vmatpush1.msra.mxu0 0.0
    %1103 = vmatprep.subr.mxu0 0.0
    %1104 = vmatpush1.msra.mxu0 0.0
    %1105 = vmatprep.subr.mxu0 0.0
    %1106 = vmatpush1.msra.mxu0 0.0
    %1107 = vmatprep.subr.mxu0 0.0
    %1108 = vmatpush1.msra.mxu0 0.0
    %1109 = vmatprep.subr.mxu0 0.0
    %1110 = vmatpush1.msra.mxu0 0.0
    %1111 = vmatprep.subr.mxu0 0.0
    %1112 = vmatpush1.msra.mxu0 %v1073
    %1113 = vmatprep.subr.mxu0 0.0
    %1114 = vmatpush1.msra.mxu0 %v1072
    %1115 = vmatprep.subr.mxu0 0.0
    %1116 = vmatpush1.msra.mxu0 %v1071
    %1117 = vmatprep.subr.mxu0 0.0
    %1118 = vmatpush1.msra.mxu0 %v1070
    %1119 = vmatprep.subr.mxu0 0.0
    %1120 = vmatpush2.msra.mxu0 0.0
    %1121 = vmatprep.subr.mxu0 0.0
    %1122 = vmatpush2.msra.mxu0 0.0
    %1123 = vmatprep.subr.mxu0 0.0
    %1124 = vmatpush2.msra.mxu0 0.0
    %1125 = vmatprep.subr.mxu0 0.0
    %1126 = vmatpush2.msra.mxu0 0.0
    %1127 = vmatprep.subr.mxu0 0.0
    %1128 = vmatpush2.msra.mxu0 0.0
    %1129 = vmatprep.subr.mxu0 0.0
    %1130 = vmatpush2.msra.mxu0 0.0
    %1131 = vmatprep.subr.mxu0 0.0
    %1132 = vmatpush2.msra.mxu0 0.0
    %1133 = vmatprep.subr.mxu0 0.0
    %1134 = vmatpush2.msra.mxu0 0.0
    %1135 = vmatprep.subr.mxu0 0.0
    %1136 = vmatpush2.msra.mxu0 0.0
    %1137 = vmatprep.subr.mxu0 0.0
    %1138 = vmatpush2.msra.mxu0 0.0
    %1139 = vmatprep.subr.mxu0 0.0
    %1140 = vmatpush2.msra.mxu0 0.0
    %1141 = vmatprep.subr.mxu0 0.0
    %1142 = vmatpush2.msra.mxu0 0.0
    %1143 = vmatprep.subr.mxu0 0.0
    %1144 = vmatpush2.msra.mxu0 0.0
    %1145 = vmatprep.subr.mxu0 0.0
    %1146 = vmatpush2.msra.mxu0 0.0
    %1147 = vmatprep.subr.mxu0 0.0
    %1148 = vmatpush2.msra.mxu0 0.0
    %1149 = vmatprep.subr.mxu0 0.0
    %1150 = vmatpush2.msra.mxu0 0.0
    %1151 = vmatprep.mubr.f32.mxu0 0.0
    %1152 = vmatmul.mubr.f32.gmra.mxu0 %v1082
    %v1153 = vpop.f32.mrf.mxu0
    %v1154 = vadd.f32 %v1079, %v1153
    %v1155 = vpop.f32.mrf.mxu0
    %1156 = vmatprep.mubr.f32.mxu0 0.0
    %1157 = vmatmul.mubr.f32.gmra.mxu0 %v1085
    %v1158 = vpop.f32.mrf.mxu0
    %v1159 = vadd.f32 %v1079, %v1158
    %v1160 = vpop.f32.mrf.mxu0
    %1161 = vdwg.mxu0
    %v1162 = vadd.f32 %v120, %v1154
    %v1163 = vadd.f32 %v121, %v1159
    %v1164 = vld [vmem:[%s12] sm:$0x1]
    %v1165 = vld [vmem:[%s13] sm:$0x1]
    %v1166 = vsel %vm78, %v1162, 0.0
    %1167 = vadd.xlane.f32.xlu0 %v1166
    %v1168 = vpop.xlane.xlu0 %1167
    %v1169 = vsel %vm78, %v1163, 0.0
    %1170 = vadd.xlane.f32.xlu0 %v1169
    %v1171 = vpop.xlane.xlu0 %1170
    %v1172 = vmul.f32 %v1168, %v85
    %v1173 = vmul.f32 %v1171, %v85
    %v1174 = vsub.f32 %v1162, %v1172
    %v1175 = vsub.f32 %v1163, %v1173
    %v1176 = vmul.f32 %v1174, %v1174
    %v1177 = vmul.f32 %v1175, %v1175
    %v1178 = vsel %vm78, %v1176, 0.0
    %1179 = vadd.xlane.f32.xlu0 %v1178
    %v1180 = vpop.xlane.xlu0 %1179
    %v1181 = vsel %vm78, %v1177, 0.0
    %1182 = vadd.xlane.f32.xlu0 %v1181
    %v1183 = vpop.xlane.xlu0 %1182
    %v1184 = vmul.f32 %v1180, %v85
    %v1185 = vmul.f32 %v1183, %v85
    %v1186 = vadd.f32 %v1184, 1e-12
    %v1187 = vadd.f32 %v1185, 1e-12
    %v1188 = vrsqrt.pop %v1186
    %v1189 = vrsqrt.pop %v1187
    %v1190 = vmul.f32 %v1174, %v1188
    %v1191 = vmul.f32 %v1175, %v1189
    %v1193 = vlaneseq
    %v1194 = vshrl.u32 %v1193, 7
    %v1195 = vsub.s32 0, %v1194
    %v1196 = vrot.slane %v1164, %v1195
    %v1198 = vmul.f32 %v1190, %v1196
    %v1199 = vmul.f32 %v1191, %v1196
    %v1201 = vlaneseq
    %v1202 = vshrl.u32 %v1201, 7
    %v1203 = vsub.s32 0, %v1202
    %v1204 = vrot.slane %v1165, %v1203
    %v1206 = vadd.f32 %v1198, %v1204
    %v1207 = vadd.f32 %v1199, %v1204
    %v1208 = vld [vmem:[%s14] sm:$0xff]
    %v1209 = vld [vmem:[%s14 + $0x8] sm:$0xff]
    %v1210 = vld [vmem:[%s14 + $0x10] sm:$0xff]
    %v1211 = vld [vmem:[%s14 + $0x18] sm:$0xff]
    %v1212 = vld [vmem:[%s15] sm:$0x1]
    %v1214 = vlaneseq
    %v1215 = vshrl.u32 %v1214, 7
    %v1216 = vsub.s32 0, %v1215
    %v1217 = vrot.slane %v1212, %v1216
    %v1220 = vsel %vm78, %v1206, 0
    %v1223 = vsel %vm78, %v1207, 0
    %1225 = vmatprep.subr.mxu0 0.0
    %1226 = vmatpush1.msra.mxu0 0.0
    %1227 = vmatprep.subr.mxu0 0.0
    %1228 = vmatpush1.msra.mxu0 0.0
    %1229 = vmatprep.subr.mxu0 0.0
    %1230 = vmatpush1.msra.mxu0 0.0
    %1231 = vmatprep.subr.mxu0 0.0
    %1232 = vmatpush1.msra.mxu0 0.0
    %1233 = vmatprep.subr.mxu0 0.0
    %1234 = vmatpush1.msra.mxu0 0.0
    %1235 = vmatprep.subr.mxu0 0.0
    %1236 = vmatpush1.msra.mxu0 0.0
    %1237 = vmatprep.subr.mxu0 0.0
    %1238 = vmatpush1.msra.mxu0 0.0
    %1239 = vmatprep.subr.mxu0 0.0
    %1240 = vmatpush1.msra.mxu0 0.0
    %1241 = vmatprep.subr.mxu0 0.0
    %1242 = vmatpush1.msra.mxu0 0.0
    %1243 = vmatprep.subr.mxu0 0.0
    %1244 = vmatpush1.msra.mxu0 0.0
    %1245 = vmatprep.subr.mxu0 0.0
    %1246 = vmatpush1.msra.mxu0 0.0
    %1247 = vmatprep.subr.mxu0 0.0
    %1248 = vmatpush1.msra.mxu0 0.0
    %1249 = vmatprep.subr.mxu0 0.0
    %1250 = vmatpush1.msra.mxu0 %v1211
    %1251 = vmatprep.subr.mxu0 0.0
    %1252 = vmatpush1.msra.mxu0 %v1210
    %1253 = vmatprep.subr.mxu0 0.0
    %1254 = vmatpush1.msra.mxu0 %v1209
    %1255 = vmatprep.subr.mxu0 0.0
    %1256 = vmatpush1.msra.mxu0 %v1208
    %1257 = vmatprep.subr.mxu0 0.0
    %1258 = vmatpush2.msra.mxu0 0.0
    %1259 = vmatprep.subr.mxu0 0.0
    %1260 = vmatpush2.msra.mxu0 0.0
    %1261 = vmatprep.subr.mxu0 0.0
    %1262 = vmatpush2.msra.mxu0 0.0
    %1263 = vmatprep.subr.mxu0 0.0
    %1264 = vmatpush2.msra.mxu0 0.0
    %1265 = vmatprep.subr.mxu0 0.0
    %1266 = vmatpush2.msra.mxu0 0.0
    %1267 = vmatprep.subr.mxu0 0.0
    %1268 = vmatpush2.msra.mxu0 0.0
    %1269 = vmatprep.subr.mxu0 0.0
    %1270 = vmatpush2.msra.mxu0 0.0
    %1271 = vmatprep.subr.mxu0 0.0
    %1272 = vmatpush2.msra.mxu0 0.0
    %1273 = vmatprep.subr.mxu0 0.0
    %1274 = vmatpush2.msra.mxu0 0.0
    %1275 = vmatprep.subr.mxu0 0.0
    %1276 = vmatpush2.msra.mxu0 0.0
    %1277 = vmatprep.subr.mxu0 0.0
    %1278 = vmatpush2.msra.mxu0 0.0
    %1279 = vmatprep.subr.mxu0 0.0
    %1280 = vmatpush2.msra.mxu0 0.0
    %1281 = vmatprep.subr.mxu0 0.0
    %1282 = vmatpush2.msra.mxu0 0.0
    %1283 = vmatprep.subr.mxu0 0.0
    %1284 = vmatpush2.msra.mxu0 0.0
    %1285 = vmatprep.subr.mxu0 0.0
    %1286 = vmatpush2.msra.mxu0 0.0
    %1287 = vmatprep.subr.mxu0 0.0
    %1288 = vmatpush2.msra.mxu0 0.0
    %1289 = vmatprep.mubr.f32.mxu0 0.0
    %1290 = vmatmul.mubr.f32.gmra.mxu0 %v1220
    %v1291 = vpop.f32.mrf.mxu0
    %v1292 = vadd.f32 %v1217, %v1291
    %v1293 = vpop.f32.mrf.mxu0
    %1294 = vmatprep.mubr.f32.mxu0 0.0
    %1295 = vmatmul.mubr.f32.gmra.mxu0 %v1223
    %v1296 = vpop.f32.mrf.mxu0
    %v1297 = vadd.f32 %v1217, %v1296
    %v1298 = vpop.f32.mrf.mxu0
    %1299 = vdwg.mxu0
    %v1300 = vmul.f32 %v1292, %v1292
    %v1301 = vmul.f32 %v1297, %v1297
    %v1302 = vmul.f32 %v1292, %v1300
    %v1303 = vmul.f32 %v1297, %v1301
    %v1304 = vmul.f32 %v1302, 0.044715
    %v1305 = vmul.f32 %v1303, 0.044715
    %v1306 = vadd.f32 %v1292, %v1304
    %v1307 = vadd.f32 %v1297, %v1305
    %v1308 = vmul.f32 %v1306, 0.7978846
    %v1309 = vmul.f32 %v1307, 0.7978846
    %v1310 = vtanh.pop %v1308
    %v1311 = vtanh.pop %v1309
    %v1312 = vadd.f32 %v1310, 1.0
    %v1313 = vadd.f32 %v1311, 1.0
    %v1314 = vmul.f32 %v1312, 0.5
    %v1315 = vmul.f32 %v1313, 0.5
    %v1316 = vmul.f32 %v1292, %v1314
    %v1317 = vmul.f32 %v1297, %v1315
    %v1318 = vld [vmem:[%s16] sm:$0xff]
    %v1319 = vld [vmem:[%s16 + $0x8] sm:$0xff]
    %v1320 = vld [vmem:[%s16 + $0x10] sm:$0xff]
    %v1321 = vld [vmem:[%s16 + $0x18] sm:$0xff]
    %v1322 = vld [vmem:[%s16 + $0x20] sm:$0xff]
    %v1323 = vld [vmem:[%s16 + $0x28] sm:$0xff]
    %v1324 = vld [vmem:[%s16 + $0x30] sm:$0xff]
    %v1325 = vld [vmem:[%s16 + $0x38] sm:$0xff]
    %v1326 = vld [vmem:[%s17] sm:$0x1]
    %v1328 = vlaneseq
    %v1329 = vshrl.u32 %v1328, 7
    %v1330 = vsub.s32 0, %v1329
    %v1331 = vrot.slane %v1326, %v1330
    %vm1333 = vcmask 523264
    %v1335 = vsel %vm1333, %v1316, 0
    %v1338 = vsel %vm1333, %v1317, 0
    %1340 = vmatprep.subr.mxu0 0.0
    %1341 = vmatpush1.msra.mxu0 0.0
    %1342 = vmatprep.subr.mxu0 0.0
    %1343 = vmatpush1.msra.mxu0 0.0
    %1344 = vmatprep.subr.mxu0 0.0
    %1345 = vmatpush1.msra.mxu0 0.0
    %1346 = vmatprep.subr.mxu0 0.0
    %1347 = vmatpush1.msra.mxu0 0.0
    %1348 = vmatprep.subr.mxu0 0.0
    %1349 = vmatpush1.msra.mxu0 0.0
    %1350 = vmatprep.subr.mxu0 0.0
    %1351 = vmatpush1.msra.mxu0 0.0
    %1352 = vmatprep.subr.mxu0 0.0
    %1353 = vmatpush1.msra.mxu0 0.0
    %1354 = vmatprep.subr.mxu0 0.0
    %1355 = vmatpush1.msra.mxu0 0.0
    %1356 = vmatprep.subr.mxu0 0.0
    %1357 = vmatpush1.msra.mxu0 %v1325
    %1358 = vmatprep.subr.mxu0 0.0
    %1359 = vmatpush1.msra.mxu0 %v1324
    %1360 = vmatprep.subr.mxu0 0.0
    %1361 = vmatpush1.msra.mxu0 %v1323
    %1362 = vmatprep.subr.mxu0 0.0
    %1363 = vmatpush1.msra.mxu0 %v1322
    %1364 = vmatprep.subr.mxu0 0.0
    %1365 = vmatpush1.msra.mxu0 %v1321
    %1366 = vmatprep.subr.mxu0 0.0
    %1367 = vmatpush1.msra.mxu0 %v1320
    %1368 = vmatprep.subr.mxu0 0.0
    %1369 = vmatpush1.msra.mxu0 %v1319
    %1370 = vmatprep.subr.mxu0 0.0
    %1371 = vmatpush1.msra.mxu0 %v1318
    %1372 = vmatprep.subr.mxu0 0.0
    %1373 = vmatpush2.msra.mxu0 0.0
    %1374 = vmatprep.subr.mxu0 0.0
    %1375 = vmatpush2.msra.mxu0 0.0
    %1376 = vmatprep.subr.mxu0 0.0
    %1377 = vmatpush2.msra.mxu0 0.0
    %1378 = vmatprep.subr.mxu0 0.0
    %1379 = vmatpush2.msra.mxu0 0.0
    %1380 = vmatprep.subr.mxu0 0.0
    %1381 = vmatpush2.msra.mxu0 0.0
    %1382 = vmatprep.subr.mxu0 0.0
    %1383 = vmatpush2.msra.mxu0 0.0
    %1384 = vmatprep.subr.mxu0 0.0
    %1385 = vmatpush2.msra.mxu0 0.0
    %1386 = vmatprep.subr.mxu0 0.0
    %1387 = vmatpush2.msra.mxu0 0.0
    %1388 = vmatprep.subr.mxu0 0.0
    %1389 = vmatpush2.msra.mxu0 0.0
    %1390 = vmatprep.subr.mxu0 0.0
    %1391 = vmatpush2.msra.mxu0 0.0
    %1392 = vmatprep.subr.mxu0 0.0
    %1393 = vmatpush2.msra.mxu0 0.0
    %1394 = vmatprep.subr.mxu0 0.0
    %1395 = vmatpush2.msra.mxu0 0.0
    %1396 = vmatprep.subr.mxu0 0.0
    %1397 = vmatpush2.msra.mxu0 0.0
    %1398 = vmatprep.subr.mxu0 0.0
    %1399 = vmatpush2.msra.mxu0 0.0
    %1400 = vmatprep.subr.mxu0 0.0
    %1401 = vmatpush2.msra.mxu0 0.0
    %1402 = vmatprep.subr.mxu0 0.0
    %1403 = vmatpush2.msra.mxu0 0.0
    %1404 = vmatprep.mubr.f32.mxu0 0.0
    %1405 = vmatmul.mubr.f32.gmra.mxu0 %v1335
    %v1406 = vpop.f32.mrf.mxu0
    %v1407 = vadd.f32 %v1331, %v1406
    %v1408 = vpop.f32.mrf.mxu0
    %1409 = vmatprep.mubr.f32.mxu0 0.0
    %1410 = vmatmul.mubr.f32.gmra.mxu0 %v1338
    %v1411 = vpop.f32.mrf.mxu0
    %v1412 = vadd.f32 %v1331, %v1411
    %v1413 = vpop.f32.mrf.mxu0
    %1414 = vdwg.mxu0
    %v1415 = vadd.f32 %v1206, %v1407
    %v1416 = vadd.f32 %v1207, %v1412
    %v1417 = vld [vmem:[%s18] sm:$0x1]
    %v1418 = vld [vmem:[%s19] sm:$0x1]
    %v1419 = vsel %vm78, %v1415, 0.0
    %1420 = vadd.xlane.f32.xlu0 %v1419
    %v1421 = vpop.xlane.xlu0 %1420
    %v1422 = vsel %vm78, %v1416, 0.0
    %1423 = vadd.xlane.f32.xlu0 %v1422
    %v1424 = vpop.xlane.xlu0 %1423
    %v1425 = vmul.f32 %v1421, %v85
    %v1426 = vmul.f32 %v1424, %v85
    %v1427 = vsub.f32 %v1415, %v1425
    %v1428 = vsub.f32 %v1416, %v1426
    %v1429 = vmul.f32 %v1427, %v1427
    %v1430 = vmul.f32 %v1428, %v1428
    %v1431 = vsel %vm78, %v1429, 0.0
    %1432 = vadd.xlane.f32.xlu0 %v1431
    %v1433 = vpop.xlane.xlu0 %1432
    %v1434 = vsel %vm78, %v1430, 0.0
    %1435 = vadd.xlane.f32.xlu0 %v1434
    %v1436 = vpop.xlane.xlu0 %1435
    %v1437 = vmul.f32 %v1433, %v85
    %v1438 = vmul.f32 %v1436, %v85
    %v1439 = vadd.f32 %v1437, 1e-12
    %v1440 = vadd.f32 %v1438, 1e-12
    %v1441 = vrsqrt.pop %v1439
    %v1442 = vrsqrt.pop %v1440
    %v1443 = vmul.f32 %v1427, %v1441
    %v1444 = vmul.f32 %v1428, %v1442
    %v1446 = vlaneseq
    %v1447 = vshrl.u32 %v1446, 7
    %v1448 = vsub.s32 0, %v1447
    %v1449 = vrot.slane %v1417, %v1448
    %v1451 = vmul.f32 %v1443, %v1449
    %v1452 = vmul.f32 %v1444, %v1449
    %v1454 = vlaneseq
    %v1455 = vshrl.u32 %v1454, 7
    %v1456 = vsub.s32 0, %v1455
    %v1457 = vrot.slane %v1418, %v1456
    %v1459 = vadd.f32 %v1451, %v1457
    %v1460 = vadd.f32 %v1452, %v1457
    %s1461 = scalar_lea.vmem %s4, 32
    %v1462 = vld [vmem:[%s1461] sm:$0xff]
    %v1463 = vld [vmem:[%s1461 + $0x8] sm:$0xff]
    %v1464 = vld [vmem:[%s1461 + $0x10] sm:$0xff]
    %v1465 = vld [vmem:[%s1461 + $0x18] sm:$0xff]
    %s1466 = scalar_lea.vmem %s5, 1
    %v1467 = vld [vmem:[%s1466] sm:$0x1]
    %v1469 = vlaneseq
    %v1470 = vshrl.u32 %v1469, 7
    %v1471 = vsub.s32 0, %v1470
    %v1472 = vrot.slane %v1467, %v1471
    %v1475 = vsel %vm78, %v1459, 0
    %v1478 = vsel %vm78, %v1460, 0
    %1480 = vmatprep.subr.mxu0 0.0
    %1481 = vmatpush1.msra.mxu0 0.0
    %1482 = vmatprep.subr.mxu0 0.0
    %1483 = vmatpush1.msra.mxu0 0.0
    %1484 = vmatprep.subr.mxu0 0.0
    %1485 = vmatpush1.msra.mxu0 0.0
    %1486 = vmatprep.subr.mxu0 0.0
    %1487 = vmatpush1.msra.mxu0 0.0
    %1488 = vmatprep.subr.mxu0 0.0
    %1489 = vmatpush1.msra.mxu0 0.0
    %1490 = vmatprep.subr.mxu0 0.0
    %1491 = vmatpush1.msra.mxu0 0.0
    %1492 = vmatprep.subr.mxu0 0.0
    %1493 = vmatpush1.msra.mxu0 0.0
    %1494 = vmatprep.subr.mxu0 0.0
    %1495 = vmatpush1.msra.mxu0 0.0
    %1496 = vmatprep.subr.mxu0 0.0
    %1497 = vmatpush1.msra.mxu0 0.0
    %1498 = vmatprep.subr.mxu0 0.0
    %1499 = vmatpush1.msra.mxu0 0.0
    %1500 = vmatprep.subr.mxu0 0.0
    %1501 = vmatpush1.msra.mxu0 0.0
    %1502 = vmatprep.subr.mxu0 0.0
    %1503 = vmatpush1.msra.mxu0 0.0
    %1504 = vmatprep.subr.mxu0 0.0
    %1505 = vmatpush1.msra.mxu0 %v1465
    %1506 = vmatprep.subr.mxu0 0.0
    %1507 = vmatpush1.msra.mxu0 %v1464
    %1508 = vmatprep.subr.mxu0 0.0
    %1509 = vmatpush1.msra.mxu0 %v1463
    %1510 = vmatprep.subr.mxu0 0.0
    %1511 = vmatpush1.msra.mxu0 %v1462
    %1512 = vmatprep.subr.mxu0 0.0
    %1513 = vmatpush2.msra.mxu0 0.0
    %1514 = vmatprep.subr.mxu0 0.0
    %1515 = vmatpush2.msra.mxu0 0.0
    %1516 = vmatprep.subr.mxu0 0.0
    %1517 = vmatpush2.msra.mxu0 0.0
    %1518 = vmatprep.subr.mxu0 0.0
    %1519 = vmatpush2.msra.mxu0 0.0
    %1520 = vmatprep.subr.mxu0 0.0
    %1521 = vmatpush2.msra.mxu0 0.0
    %1522 = vmatprep.subr.mxu0 0.0
    %1523 = vmatpush2.msra.mxu0 0.0
    %1524 = vmatprep.subr.mxu0 0.0
    %1525 = vmatpush2.msra.mxu0 0.0
    %1526 = vmatprep.subr.mxu0 0.0
    %1527 = vmatpush2.msra.mxu0 0.0
    %1528 = vmatprep.subr.mxu0 0.0
    %1529 = vmatpush2.msra.mxu0 0.0
    %1530 = vmatprep.subr.mxu0 0.0
    %1531 = vmatpush2.msra.mxu0 0.0
    %1532 = vmatprep.subr.mxu0 0.0
    %1533 = vmatpush2.msra.mxu0 0.0
    %1534 = vmatprep.subr.mxu0 0.0
    %1535 = vmatpush2.msra.mxu0 0.0
    %1536 = vmatprep.subr.mxu0 0.0
    %1537 = vmatpush2.msra.mxu0 0.0
    %1538 = vmatprep.subr.mxu0 0.0
    %1539 = vmatpush2.msra.mxu0 0.0
    %1540 = vmatprep.subr.mxu0 0.0
    %1541 = vmatpush2.msra.mxu0 0.0
    %1542 = vmatprep.subr.mxu0 0.0
    %1543 = vmatpush2.msra.mxu0 0.0
    %1544 = vmatprep.mubr.f32.mxu0 0.0
    %1545 = vmatmul.mubr.f32.gmra.mxu0 %v1475
    %v1546 = vpop.f32.mrf.mxu0
    %v1547 = vadd.f32 %v1472, %v1546
    %v1548 = vpop.f32.mrf.mxu0
    %1549 = vmatprep.mubr.f32.mxu0 0.0
    %1550 = vmatmul.mubr.f32.gmra.mxu0 %v1478
    %v1551 = vpop.f32.mrf.mxu0
    %v1552 = vadd.f32 %v1472, %v1551
    %v1553 = vpop.f32.mrf.mxu0
    %1554 = vdwg.mxu0
    %s1555 = scalar_lea.vmem %s6, 32
    %v1556 = vld [vmem:[%s1555] sm:$0xff]
    %v1557 = vld [vmem:[%s1555 + $0x8] sm:$0xff]
    %v1558 = vld [vmem:[%s1555 + $0x10] sm:$0xff]
    %v1559 = vld [vmem:[%s1555 + $0x18] sm:$0xff]
    %s1560 = scalar_lea.vmem %s7, 1
    %v1561 = vld [vmem:[%s1560] sm:$0x1]
    %v1563 = vlaneseq
    %v1564 = vshrl.u32 %v1563, 7
    %v1565 = vsub.s32 0, %v1564
    %v1566 = vrot.slane %v1561, %v1565
    %1568 = vmatprep.subr.mxu0 0.0
    %1569 = vmatpush1.msra.mxu0 0.0
    %1570 = vmatprep.subr.mxu0 0.0
    %1571 = vmatpush1.msra.mxu0 0.0
    %1572 = vmatprep.subr.mxu0 0.0
    %1573 = vmatpush1.msra.mxu0 0.0
    %1574 = vmatprep.subr.mxu0 0.0
    %1575 = vmatpush1.msra.mxu0 0.0
    %1576 = vmatprep.subr.mxu0 0.0
    %1577 = vmatpush1.msra.mxu0 0.0
    %1578 = vmatprep.subr.mxu0 0.0
    %1579 = vmatpush1.msra.mxu0 0.0
    %1580 = vmatprep.subr.mxu0 0.0
    %1581 = vmatpush1.msra.mxu0 0.0
    %1582 = vmatprep.subr.mxu0 0.0
    %1583 = vmatpush1.msra.mxu0 0.0
    %1584 = vmatprep.subr.mxu0 0.0
    %1585 = vmatpush1.msra.mxu0 0.0
    %1586 = vmatprep.subr.mxu0 0.0
    %1587 = vmatpush1.msra.mxu0 0.0
    %1588 = vmatprep.subr.mxu0 0.0
    %1589 = vmatpush1.msra.mxu0 0.0
    %1590 = vmatprep.subr.mxu0 0.0
    %1591 = vmatpush1.msra.mxu0 0.0
    %1592 = vmatprep.subr.mxu0 0.0
    %1593 = vmatpush1.msra.mxu0 %v1559
    %1594 = vmatprep.subr.mxu0 0.0
    %1595 = vmatpush1.msra.mxu0 %v1558
    %1596 = vmatprep.subr.mxu0 0.0
    %1597 = vmatpush1.msra.mxu0 %v1557
    %1598 = vmatprep.subr.mxu0 0.0
    %1599 = vmatpush1.msra.mxu0 %v1556
    %1600 = vmatprep.subr.mxu0 0.0
    %1601 = vmatpush2.msra.mxu0 0.0
    %1602 = vmatprep.subr.mxu0 0.0
    %1603 = vmatpush2.msra.mxu0 0.0
    %1604 = vmatprep.subr.mxu0 0.0
    %1605 = vmatpush2.msra.mxu0 0.0
    %1606 = vmatprep.subr.mxu0 0.0
    %1607 = vmatpush2.msra.mxu0 0.0
    %1608 = vmatprep.subr.mxu0 0.0
    %1609 = vmatpush2.msra.mxu0 0.0
    %1610 = vmatprep.subr.mxu0 0.0
    %1611 = vmatpush2.msra.mxu0 0.0
    %1612 = vmatprep.subr.mxu0 0.0
    %1613 = vmatpush2.msra.mxu0 0.0
    %1614 = vmatprep.subr.mxu0 0.0
    %1615 = vmatpush2.msra.mxu0 0.0
    %1616 = vmatprep.subr.mxu0 0.0
    %1617 = vmatpush2.msra.mxu0 0.0
    %1618 = vmatprep.subr.mxu0 0.0
    %1619 = vmatpush2.msra.mxu0 0.0
    %1620 = vmatprep.subr.mxu0 0.0
    %1621 = vmatpush2.msra.mxu0 0.0
    %1622 = vmatprep.subr.mxu0 0.0
    %1623 = vmatpush2.msra.mxu0 0.0
    %1624 = vmatprep.subr.mxu0 0.0
    %1625 = vmatpush2.msra.mxu0 0.0
    %1626 = vmatprep.subr.mxu0 0.0
    %1627 = vmatpush2.msra.mxu0 0.0
    %1628 = vmatprep.subr.mxu0 0.0
    %1629 = vmatpush2.msra.mxu0 0.0
    %1630 = vmatprep.subr.mxu0 0.0
    %1631 = vmatpush2.msra.mxu0 0.0
    %1632 = vmatprep.mubr.f32.mxu0 0.0
    %1633 = vmatmul.mubr.f32.gmra.mxu0 %v1475
    %v1634 = vpop.f32.mrf.mxu0
    %v1635 = vadd.f32 %v1566, %v1634
    %v1636 = vpop.f32.mrf.mxu0
    %1637 = vmatprep.mubr.f32.mxu0 0.0
    %1638 = vmatmul.mubr.f32.gmra.mxu0 %v1478
    %v1639 = vpop.f32.mrf.mxu0
    %v1640 = vadd.f32 %v1566, %v1639
    %v1641 = vpop.f32.mrf.mxu0
    %1642 = vdwg.mxu0
    %s1643 = scalar_lea.vmem %s8, 32
    %v1644 = vld [vmem:[%s1643] sm:$0xff]
    %v1645 = vld [vmem:[%s1643 + $0x8] sm:$0xff]
    %v1646 = vld [vmem:[%s1643 + $0x10] sm:$0xff]
    %v1647 = vld [vmem:[%s1643 + $0x18] sm:$0xff]
    %s1648 = scalar_lea.vmem %s9, 1
    %v1649 = vld [vmem:[%s1648] sm:$0x1]
    %v1651 = vlaneseq
    %v1652 = vshrl.u32 %v1651, 7
    %v1653 = vsub.s32 0, %v1652
    %v1654 = vrot.slane %v1649, %v1653
    %1656 = vmatprep.subr.mxu0 0.0
    %1657 = vmatpush1.msra.mxu0 0.0
    %1658 = vmatprep.subr.mxu0 0.0
    %1659 = vmatpush1.msra.mxu0 0.0
    %1660 = vmatprep.subr.mxu0 0.0
    %1661 = vmatpush1.msra.mxu0 0.0
    %1662 = vmatprep.subr.mxu0 0.0
    %1663 = vmatpush1.msra.mxu0 0.0
    %1664 = vmatprep.subr.mxu0 0.0
    %1665 = vmatpush1.msra.mxu0 0.0
    %1666 = vmatprep.subr.mxu0 0.0
    %1667 = vmatpush1.msra.mxu0 0.0
    %1668 = vmatprep.subr.mxu0 0.0
    %1669 = vmatpush1.msra.mxu0 0.0
    %1670 = vmatprep.subr.mxu0 0.0
    %1671 = vmatpush1.msra.mxu0 0.0
    %1672 = vmatprep.subr.mxu0 0.0
    %1673 = vmatpush1.msra.mxu0 0.0
    %1674 = vmatprep.subr.mxu0 0.0
    %1675 = vmatpush1.msra.mxu0 0.0
    %1676 = vmatprep.subr.mxu0 0.0
    %1677 = vmatpush1.msra.mxu0 0.0
    %1678 = vmatprep.subr.mxu0 0.0
    %1679 = vmatpush1.msra.mxu0 0.0
    %1680 = vmatprep.subr.mxu0 0.0
    %1681 = vmatpush1.msra.mxu0 %v1647
    %1682 = vmatprep.subr.mxu0 0.0
    %1683 = vmatpush1.msra.mxu0 %v1646
    %1684 = vmatprep.subr.mxu0 0.0
    %1685 = vmatpush1.msra.mxu0 %v1645
    %1686 = vmatprep.subr.mxu0 0.0
    %1687 = vmatpush1.msra.mxu0 %v1644
    %1688 = vmatprep.subr.mxu0 0.0
    %1689 = vmatpush2.msra.mxu0 0.0
    %1690 = vmatprep.subr.mxu0 0.0
    %1691 = vmatpush2.msra.mxu0 0.0
    %1692 = vmatprep.subr.mxu0 0.0
    %1693 = vmatpush2.msra.mxu0 0.0
    %1694 = vmatprep.subr.mxu0 0.0
    %1695 = vmatpush2.msra.mxu0 0.0
    %1696 = vmatprep.subr.mxu0 0.0
    %1697 = vmatpush2.msra.mxu0 0.0
    %1698 = vmatprep.subr.mxu0 0.0
    %1699 = vmatpush2.msra.mxu0 0.0
    %1700 = vmatprep.subr.mxu0 0.0
    %1701 = vmatpush2.msra.mxu0 0.0
    %1702 = vmatprep.subr.mxu0 0.0
    %1703 = vmatpush2.msra.mxu0 0.0
    %1704 = vmatprep.subr.mxu0 0.0
    %1705 = vmatpush2.msra.mxu0 0.0
    %1706 = vmatprep.subr.mxu0 0.0
    %1707 = vmatpush2.msra.mxu0 0.0
    %1708 = vmatprep.subr.mxu0 0.0
    %1709 = vmatpush2.msra.mxu0 0.0
    %1710 = vmatprep.subr.mxu0 0.0
    %1711 = vmatpush2.msra.mxu0 0.0
    %1712 = vmatprep.subr.mxu0 0.0
    %1713 = vmatpush2.msra.mxu0 0.0
    %1714 = vmatprep.subr.mxu0 0.0
    %1715 = vmatpush2.msra.mxu0 0.0
    %1716 = vmatprep.subr.mxu0 0.0
    %1717 = vmatpush2.msra.mxu0 0.0
    %1718 = vmatprep.subr.mxu0 0.0
    %1719 = vmatpush2.msra.mxu0 0.0
    %1720 = vmatprep.mubr.f32.mxu0 0.0
    %1721 = vmatmul.mubr.f32.gmra.mxu0 %v1475
    %v1722 = vpop.f32.mrf.mxu0
    %v1723 = vadd.f32 %v1654, %v1722
    %v1724 = vpop.f32.mrf.mxu0
    %1725 = vmatprep.mubr.f32.mxu0 0.0
    %1726 = vmatmul.mubr.f32.gmra.mxu0 %v1478
    %v1727 = vpop.f32.mrf.mxu0
    %v1728 = vadd.f32 %v1654, %v1727
    %v1729 = vpop.f32.mrf.mxu0
    %1730 = vdwg.mxu0
    %v1732 = vsel %vm386, %v1547, 0
    %v1735 = vsel %vm386, %v1635, 0
    %1737 = vmatprep.subr.mxu0 0.0
    %1738 = vmatpush1.xpose.msra.mxu0 0.0
    %1739 = vmatprep.subr.mxu0 0.0
    %1740 = vmatpush1.xpose.msra.mxu0 0.0
    %1741 = vmatprep.subr.mxu0 0.0
    %1742 = vmatpush1.xpose.msra.mxu0 0.0
    %1743 = vmatprep.subr.mxu0 0.0
    %1744 = vmatpush1.xpose.msra.mxu0 0.0
    %1745 = vmatprep.subr.mxu0 0.0
    %1746 = vmatpush1.xpose.msra.mxu0 0.0
    %1747 = vmatprep.subr.mxu0 0.0
    %1748 = vmatpush1.xpose.msra.mxu0 0.0
    %1749 = vmatprep.subr.mxu0 0.0
    %1750 = vmatpush1.xpose.msra.mxu0 0.0
    %1751 = vmatprep.subr.mxu0 0.0
    %1752 = vmatpush1.xpose.msra.mxu0 0.0
    %1753 = vmatprep.subr.mxu0 0.0
    %1754 = vmatpush1.xpose.msra.mxu0 0.0
    %1755 = vmatprep.subr.mxu0 0.0
    %1756 = vmatpush1.xpose.msra.mxu0 0.0
    %1757 = vmatprep.subr.mxu0 0.0
    %1758 = vmatpush1.xpose.msra.mxu0 0.0
    %1759 = vmatprep.subr.mxu0 0.0
    %1760 = vmatpush1.xpose.msra.mxu0 0.0
    %1761 = vmatprep.subr.mxu0 0.0
    %1762 = vmatpush1.xpose.msra.mxu0 0.0
    %1763 = vmatprep.subr.mxu0 0.0
    %1764 = vmatpush1.xpose.msra.mxu0 0.0
    %1765 = vmatprep.subr.mxu0 0.0
    %1766 = vmatpush1.xpose.msra.mxu0 0.0
    %1767 = vmatprep.subr.mxu0 0.0
    %1768 = vmatpush1.xpose.msra.mxu0 %v1735
    %1769 = vmatprep.subr.mxu0 0.0
    %1770 = vmatpush2.xpose.msra.mxu0 0.0
    %1771 = vmatprep.subr.mxu0 0.0
    %1772 = vmatpush2.xpose.msra.mxu0 0.0
    %1773 = vmatprep.subr.mxu0 0.0
    %1774 = vmatpush2.xpose.msra.mxu0 0.0
    %1775 = vmatprep.subr.mxu0 0.0
    %1776 = vmatpush2.xpose.msra.mxu0 0.0
    %1777 = vmatprep.subr.mxu0 0.0
    %1778 = vmatpush2.xpose.msra.mxu0 0.0
    %1779 = vmatprep.subr.mxu0 0.0
    %1780 = vmatpush2.xpose.msra.mxu0 0.0
    %1781 = vmatprep.subr.mxu0 0.0
    %1782 = vmatpush2.xpose.msra.mxu0 0.0
    %1783 = vmatprep.subr.mxu0 0.0
    %1784 = vmatpush2.xpose.msra.mxu0 0.0
    %1785 = vmatprep.subr.mxu0 0.0
    %1786 = vmatpush2.xpose.msra.mxu0 0.0
    %1787 = vmatprep.subr.mxu0 0.0
    %1788 = vmatpush2.xpose.msra.mxu0 0.0
    %1789 = vmatprep.subr.mxu0 0.0
    %1790 = vmatpush2.xpose.msra.mxu0 0.0
    %1791 = vmatprep.subr.mxu0 0.0
    %1792 = vmatpush2.xpose.msra.mxu0 0.0
    %1793 = vmatprep.subr.mxu0 0.0
    %1794 = vmatpush2.xpose.msra.mxu0 0.0
    %1795 = vmatprep.subr.mxu0 0.0
    %1796 = vmatpush2.xpose.msra.mxu0 0.0
    %1797 = vmatprep.subr.mxu0 0.0
    %1798 = vmatpush2.xpose.msra.mxu0 0.0
    %1799 = vmatprep.subr.mxu0 0.0
    %1800 = vmatpush2.xpose.msra.mxu0 0.0
    %1801 = vmatprep.mubr.f32.mxu0 0.0
    %1802 = vmatmul.mubr.f32.gmra.mxu0 %v1732
    %v1803 = vpop.f32.mrf.mxu0
    %v1804 = vadd.f32 0.0, %v1803
    %v1805 = vpop.f32.mrf.mxu0
    %1806 = vdwg.mxu0
    %v1808 = vsel %vm386, %v1552, 0
    %v1811 = vsel %vm386, %v1640, 0
    %1813 = vmatprep.subr.mxu0 0.0
    %1814 = vmatpush1.xpose.msra.mxu0 0.0
    %1815 = vmatprep.subr.mxu0 0.0
    %1816 = vmatpush1.xpose.msra.mxu0 0.0
    %1817 = vmatprep.subr.mxu0 0.0
    %1818 = vmatpush1.xpose.msra.mxu0 0.0
    %1819 = vmatprep.subr.mxu0 0.0
    %1820 = vmatpush1.xpose.msra.mxu0 0.0
    %1821 = vmatprep.subr.mxu0 0.0
    %1822 = vmatpush1.xpose.msra.mxu0 0.0
    %1823 = vmatprep.subr.mxu0 0.0
    %1824 = vmatpush1.xpose.msra.mxu0 0.0
    %1825 = vmatprep.subr.mxu0 0.0
    %1826 = vmatpush1.xpose.msra.mxu0 0.0
    %1827 = vmatprep.subr.mxu0 0.0
    %1828 = vmatpush1.xpose.msra.mxu0 0.0
    %1829 = vmatprep.subr.mxu0 0.0
    %1830 = vmatpush1.xpose.msra.mxu0 0.0
    %1831 = vmatprep.subr.mxu0 0.0
    %1832 = vmatpush1.xpose.msra.mxu0 0.0
    %1833 = vmatprep.subr.mxu0 0.0
    %1834 = vmatpush1.xpose.msra.mxu0 0.0
    %1835 = vmatprep.subr.mxu0 0.0
    %1836 = vmatpush1.xpose.msra.mxu0 0.0
    %1837 = vmatprep.subr.mxu0 0.0
    %1838 = vmatpush1.xpose.msra.mxu0 0.0
    %1839 = vmatprep.subr.mxu0 0.0
    %1840 = vmatpush1.xpose.msra.mxu0 0.0
    %1841 = vmatprep.subr.mxu0 0.0
    %1842 = vmatpush1.xpose.msra.mxu0 0.0
    %1843 = vmatprep.subr.mxu0 0.0
    %1844 = vmatpush1.xpose.msra.mxu0 %v1811
    %1845 = vmatprep.subr.mxu0 0.0
    %1846 = vmatpush2.xpose.msra.mxu0 0.0
    %1847 = vmatprep.subr.mxu0 0.0
    %1848 = vmatpush2.xpose.msra.mxu0 0.0
    %1849 = vmatprep.subr.mxu0 0.0
    %1850 = vmatpush2.xpose.msra.mxu0 0.0
    %1851 = vmatprep.subr.mxu0 0.0
    %1852 = vmatpush2.xpose.msra.mxu0 0.0
    %1853 = vmatprep.subr.mxu0 0.0
    %1854 = vmatpush2.xpose.msra.mxu0 0.0
    %1855 = vmatprep.subr.mxu0 0.0
    %1856 = vmatpush2.xpose.msra.mxu0 0.0
    %1857 = vmatprep.subr.mxu0 0.0
    %1858 = vmatpush2.xpose.msra.mxu0 0.0
    %1859 = vmatprep.subr.mxu0 0.0
    %1860 = vmatpush2.xpose.msra.mxu0 0.0
    %1861 = vmatprep.subr.mxu0 0.0
    %1862 = vmatpush2.xpose.msra.mxu0 0.0
    %1863 = vmatprep.subr.mxu0 0.0
    %1864 = vmatpush2.xpose.msra.mxu0 0.0
    %1865 = vmatprep.subr.mxu0 0.0
    %1866 = vmatpush2.xpose.msra.mxu0 0.0
    %1867 = vmatprep.subr.mxu0 0.0
    %1868 = vmatpush2.xpose.msra.mxu0 0.0
    %1869 = vmatprep.subr.mxu0 0.0
    %1870 = vmatpush2.xpose.msra.mxu0 0.0
    %1871 = vmatprep.subr.mxu0 0.0
    %1872 = vmatpush2.xpose.msra.mxu0 0.0
    %1873 = vmatprep.subr.mxu0 0.0
    %1874 = vmatpush2.xpose.msra.mxu0 0.0
    %1875 = vmatprep.subr.mxu0 0.0
    %1876 = vmatpush2.xpose.msra.mxu0 0.0
    %1877 = vmatprep.mubr.f32.mxu0 0.0
    %1878 = vmatmul.mubr.f32.gmra.mxu0 %v1808
    %v1879 = vpop.f32.mrf.mxu0
    %v1880 = vadd.f32 0.0, %v1879
    %v1881 = vpop.f32.mrf.mxu0
    %1882 = vdwg.mxu0
    %v1883 = vmul.f32 %v1804, 0.25
    %v1884 = vmul.f32 %v1880, 0.25
    %v1885 = vadd.f32 %v1883, %v546
    %v1886 = vadd.f32 %v1884, %v550
    %v1887 = vsel %vm555, %v1885, -inf
    %1888 = vmax.xlane.f32.xlu0 %v1887
    %v1889 = vpop.xlane.xlu0 %1888
    %v1890 = vsel %vm555, %v1886, -inf
    %1891 = vmax.xlane.f32.xlu0 %v1890
    %v1892 = vpop.xlane.xlu0 %1891
    %v1893 = vsub.f32 %v1885, %v1889
    %v1894 = vsub.f32 %v1886, %v1892
    %v1895 = vmul.f32 %v1893, 1.442695
    %v1896 = vpow.pop %v1895
    %v1897 = vmul.f32 %v1894, 1.442695
    %v1898 = vpow.pop %v1897
    %v1899 = vsel %vm555, %v1896, 0.0
    %1900 = vadd.xlane.f32.xlu0 %v1899
    %v1901 = vpop.xlane.xlu0 %1900
    %v1902 = vsel %vm555, %v1898, 0.0
    %1903 = vadd.xlane.f32.xlu0 %v1902
    %v1904 = vpop.xlane.xlu0 %1903
    %v1905 = vrcp.pop %v1901
    %v1906 = vrcp.pop %v1904
    %v1907 = vmul.f32 %v1896, %v1905
    %v1908 = vmul.f32 %v1898, %v1906
    %v1910 = vsel %vm555, %v1907, 0
    %1912 = vmatprep.subr.mxu0 0.0
    %1913 = vmatpush1.msra.mxu0 0.0
    %1914 = vmatprep.subr.mxu0 0.0
    %1915 = vmatpush1.msra.mxu0 0.0
    %1916 = vmatprep.subr.mxu0 0.0
    %1917 = vmatpush1.msra.mxu0 0.0
    %1918 = vmatprep.subr.mxu0 0.0
    %1919 = vmatpush1.msra.mxu0 0.0
    %1920 = vmatprep.subr.mxu0 0.0
    %1921 = vmatpush1.msra.mxu0 0.0
    %1922 = vmatprep.subr.mxu0 0.0
    %1923 = vmatpush1.msra.mxu0 0.0
    %1924 = vmatprep.subr.mxu0 0.0
    %1925 = vmatpush1.msra.mxu0 0.0
    %1926 = vmatprep.subr.mxu0 0.0
    %1927 = vmatpush1.msra.mxu0 0.0
    %1928 = vmatprep.subr.mxu0 0.0
    %1929 = vmatpush1.msra.mxu0 0.0
    %1930 = vmatprep.subr.mxu0 0.0
    %1931 = vmatpush1.msra.mxu0 0.0
    %1932 = vmatprep.subr.mxu0 0.0
    %1933 = vmatpush1.msra.mxu0 0.0
    %1934 = vmatprep.subr.mxu0 0.0
    %1935 = vmatpush1.msra.mxu0 0.0
    %1936 = vmatprep.subr.mxu0 0.0
    %1937 = vmatpush1.msra.mxu0 0.0
    %1938 = vmatprep.subr.mxu0 0.0
    %1939 = vmatpush1.msra.mxu0 0.0
    %1940 = vmatprep.subr.mxu0 0.0
    %1941 = vmatpush1.msra.mxu0 0.0
    %1942 = vmatprep.subr.mxu0 0.0
    %1943 = vmatpush1.msra.mxu0 %v1723
    %1944 = vmatprep.subr.mxu0 0.0
    %1945 = vmatpush2.msra.mxu0 0.0
    %1946 = vmatprep.subr.mxu0 0.0
    %1947 = vmatpush2.msra.mxu0 0.0
    %1948 = vmatprep.subr.mxu0 0.0
    %1949 = vmatpush2.msra.mxu0 0.0
    %1950 = vmatprep.subr.mxu0 0.0
    %1951 = vmatpush2.msra.mxu0 0.0
    %1952 = vmatprep.subr.mxu0 0.0
    %1953 = vmatpush2.msra.mxu0 0.0
    %1954 = vmatprep.subr.mxu0 0.0
    %1955 = vmatpush2.msra.mxu0 0.0
    %1956 = vmatprep.subr.mxu0 0.0
    %1957 = vmatpush2.msra.mxu0 0.0
    %1958 = vmatprep.subr.mxu0 0.0
    %1959 = vmatpush2.msra.mxu0 0.0
    %1960 = vmatprep.subr.mxu0 0.0
    %1961 = vmatpush2.msra.mxu0 0.0
    %1962 = vmatprep.subr.mxu0 0.0
    %1963 = vmatpush2.msra.mxu0 0.0
    %1964 = vmatprep.subr.mxu0 0.0
    %1965 = vmatpush2.msra.mxu0 0.0
    %1966 = vmatprep.subr.mxu0 0.0
    %1967 = vmatpush2.msra.mxu0 0.0
    %1968 = vmatprep.subr.mxu0 0.0
    %1969 = vmatpush2.msra.mxu0 0.0
    %1970 = vmatprep.subr.mxu0 0.0
    %1971 = vmatpush2.msra.mxu0 0.0
    %1972 = vmatprep.subr.mxu0 0.0
    %1973 = vmatpush2.msra.mxu0 0.0
    %1974 = vmatprep.subr.mxu0 0.0
    %1975 = vmatpush2.msra.mxu0 0.0
    %1976 = vmatprep.mubr.f32.mxu0 0.0
    %1977 = vmatmul.mubr.f32.gmra.mxu0 %v1910
    %v1978 = vpop.f32.mrf.mxu0
    %v1979 = vadd.f32 0.0, %v1978
    %v1980 = vpop.f32.mrf.mxu0
    %1981 = vdwg.mxu0
    %v1983 = vsel %vm555, %v1908, 0
    %1985 = vmatprep.subr.mxu0 0.0
    %1986 = vmatpush1.msra.mxu0 0.0
    %1987 = vmatprep.subr.mxu0 0.0
    %1988 = vmatpush1.msra.mxu0 0.0
    %1989 = vmatprep.subr.mxu0 0.0
    %1990 = vmatpush1.msra.mxu0 0.0
    %1991 = vmatprep.subr.mxu0 0.0
    %1992 = vmatpush1.msra.mxu0 0.0
    %1993 = vmatprep.subr.mxu0 0.0
    %1994 = vmatpush1.msra.mxu0 0.0
    %1995 = vmatprep.subr.mxu0 0.0
    %1996 = vmatpush1.msra.mxu0 0.0
    %1997 = vmatprep.subr.mxu0 0.0
    %1998 = vmatpush1.msra.mxu0 0.0
    %1999 = vmatprep.subr.mxu0 0.0
    %2000 = vmatpush1.msra.mxu0 0.0
    %2001 = vmatprep.subr.mxu0 0.0
    %2002 = vmatpush1.msra.mxu0 0.0
    %2003 = vmatprep.subr.mxu0 0.0
    %2004 = vmatpush1.msra.mxu0 0.0
    %2005 = vmatprep.subr.mxu0 0.0
    %2006 = vmatpush1.msra.mxu0 0.0
    %2007 = vmatprep.subr.mxu0 0.0
    %2008 = vmatpush1.msra.mxu0 0.0
    %2009 = vmatprep.subr.mxu0 0.0
    %2010 = vmatpush1.msra.mxu0 0.0
    %2011 = vmatprep.subr.mxu0 0.0
    %2012 = vmatpush1.msra.mxu0 0.0
    %2013 = vmatprep.subr.mxu0 0.0
    %2014 = vmatpush1.msra.mxu0 0.0
    %2015 = vmatprep.subr.mxu0 0.0
    %2016 = vmatpush1.msra.mxu0 %v1728
    %2017 = vmatprep.subr.mxu0 0.0
    %2018 = vmatpush2.msra.mxu0 0.0
    %2019 = vmatprep.subr.mxu0 0.0
    %2020 = vmatpush2.msra.mxu0 0.0
    %2021 = vmatprep.subr.mxu0 0.0
    %2022 = vmatpush2.msra.mxu0 0.0
    %2023 = vmatprep.subr.mxu0 0.0
    %2024 = vmatpush2.msra.mxu0 0.0
    %2025 = vmatprep.subr.mxu0 0.0
    %2026 = vmatpush2.msra.mxu0 0.0
    %2027 = vmatprep.subr.mxu0 0.0
    %2028 = vmatpush2.msra.mxu0 0.0
    %2029 = vmatprep.subr.mxu0 0.0
    %2030 = vmatpush2.msra.mxu0 0.0
    %2031 = vmatprep.subr.mxu0 0.0
    %2032 = vmatpush2.msra.mxu0 0.0
    %2033 = vmatprep.subr.mxu0 0.0
    %2034 = vmatpush2.msra.mxu0 0.0
    %2035 = vmatprep.subr.mxu0 0.0
    %2036 = vmatpush2.msra.mxu0 0.0
    %2037 = vmatprep.subr.mxu0 0.0
    %2038 = vmatpush2.msra.mxu0 0.0
    %2039 = vmatprep.subr.mxu0 0.0
    %2040 = vmatpush2.msra.mxu0 0.0
    %2041 = vmatprep.subr.mxu0 0.0
    %2042 = vmatpush2.msra.mxu0 0.0
    %2043 = vmatprep.subr.mxu0 0.0
    %2044 = vmatpush2.msra.mxu0 0.0
    %2045 = vmatprep.subr.mxu0 0.0
    %2046 = vmatpush2.msra.mxu0 0.0
    %2047 = vmatprep.subr.mxu0 0.0
    %2048 = vmatpush2.msra.mxu0 0.0
    %2049 = vmatprep.mubr.f32.mxu0 0.0
    %2050 = vmatmul.mubr.f32.gmra.mxu0 %v1983
    %v2051 = vpop.f32.mrf.mxu0
    %v2052 = vadd.f32 0.0, %v2051
    %v2053 = vpop.f32.mrf.mxu0
    %2054 = vdwg.mxu0
    %2055 = vrot.lane.b32.xlu0 %v1547, 112
    %v2056 = vpop.permute.xlu0 %2055
    %2057 = vrot.lane.b32.xlu0 %v1635, 112
    %v2058 = vpop.permute.xlu0 %2057
    %v2059 = vsel %vm386, %v2056, 0
    %v2061 = vsel %vm386, %v2058, 0
    %2063 = vmatprep.subr.mxu0 0.0
    %2064 = vmatpush1.xpose.msra.mxu0 0.0
    %2065 = vmatprep.subr.mxu0 0.0
    %2066 = vmatpush1.xpose.msra.mxu0 0.0
    %2067 = vmatprep.subr.mxu0 0.0
    %2068 = vmatpush1.xpose.msra.mxu0 0.0
    %2069 = vmatprep.subr.mxu0 0.0
    %2070 = vmatpush1.xpose.msra.mxu0 0.0
    %2071 = vmatprep.subr.mxu0 0.0
    %2072 = vmatpush1.xpose.msra.mxu0 0.0
    %2073 = vmatprep.subr.mxu0 0.0
    %2074 = vmatpush1.xpose.msra.mxu0 0.0
    %2075 = vmatprep.subr.mxu0 0.0
    %2076 = vmatpush1.xpose.msra.mxu0 0.0
    %2077 = vmatprep.subr.mxu0 0.0
    %2078 = vmatpush1.xpose.msra.mxu0 0.0
    %2079 = vmatprep.subr.mxu0 0.0
    %2080 = vmatpush1.xpose.msra.mxu0 0.0
    %2081 = vmatprep.subr.mxu0 0.0
    %2082 = vmatpush1.xpose.msra.mxu0 0.0
    %2083 = vmatprep.subr.mxu0 0.0
    %2084 = vmatpush1.xpose.msra.mxu0 0.0
    %2085 = vmatprep.subr.mxu0 0.0
    %2086 = vmatpush1.xpose.msra.mxu0 0.0
    %2087 = vmatprep.subr.mxu0 0.0
    %2088 = vmatpush1.xpose.msra.mxu0 0.0
    %2089 = vmatprep.subr.mxu0 0.0
    %2090 = vmatpush1.xpose.msra.mxu0 0.0
    %2091 = vmatprep.subr.mxu0 0.0
    %2092 = vmatpush1.xpose.msra.mxu0 0.0
    %2093 = vmatprep.subr.mxu0 0.0
    %2094 = vmatpush1.xpose.msra.mxu0 %v2061
    %2095 = vmatprep.subr.mxu0 0.0
    %2096 = vmatpush2.xpose.msra.mxu0 0.0
    %2097 = vmatprep.subr.mxu0 0.0
    %2098 = vmatpush2.xpose.msra.mxu0 0.0
    %2099 = vmatprep.subr.mxu0 0.0
    %2100 = vmatpush2.xpose.msra.mxu0 0.0
    %2101 = vmatprep.subr.mxu0 0.0
    %2102 = vmatpush2.xpose.msra.mxu0 0.0
    %2103 = vmatprep.subr.mxu0 0.0
    %2104 = vmatpush2.xpose.msra.mxu0 0.0
    %2105 = vmatprep.subr.mxu0 0.0
    %2106 = vmatpush2.xpose.msra.mxu0 0.0
    %2107 = vmatprep.subr.mxu0 0.0
    %2108 = vmatpush2.xpose.msra.mxu0 0.0
    %2109 = vmatprep.subr.mxu0 0.0
    %2110 = vmatpush2.xpose.msra.mxu0 0.0
    %2111 = vmatprep.subr.mxu0 0.0
    %2112 = vmatpush2.xpose.msra.mxu0 0.0
    %2113 = vmatprep.subr.mxu0 0.0
    %2114 = vmatpush2.xpose.msra.mxu0 0.0
    %2115 = vmatprep.subr.mxu0 0.0
    %2116 = vmatpush2.xpose.msra.mxu0 0.0
    %2117 = vmatprep.subr.mxu0 0.0
    %2118 = vmatpush2.xpose.msra.mxu0 0.0
    %2119 = vmatprep.subr.mxu0 0.0
    %2120 = vmatpush2.xpose.msra.mxu0 0.0
    %2121 = vmatprep.subr.mxu0 0.0
    %2122 = vmatpush2.xpose.msra.mxu0 0.0
    %2123 = vmatprep.subr.mxu0 0.0
    %2124 = vmatpush2.xpose.msra.mxu0 0.0
    %2125 = vmatprep.subr.mxu0 0.0
    %2126 = vmatpush2.xpose.msra.mxu0 0.0
    %2127 = vmatprep.mubr.f32.mxu0 0.0
    %2128 = vmatmul.mubr.f32.gmra.mxu0 %v2059
    %v2129 = vpop.f32.mrf.mxu0
    %v2130 = vadd.f32 0.0, %v2129
    %v2131 = vpop.f32.mrf.mxu0
    %2132 = vdwg.mxu0
    %2133 = vrot.lane.b32.xlu0 %v1552, 112
    %v2134 = vpop.permute.xlu0 %2133
    %2135 = vrot.lane.b32.xlu0 %v1640, 112
    %v2136 = vpop.permute.xlu0 %2135
    %v2137 = vsel %vm386, %v2134, 0
    %v2139 = vsel %vm386, %v2136, 0
    %2141 = vmatprep.subr.mxu0 0.0
    %2142 = vmatpush1.xpose.msra.mxu0 0.0
    %2143 = vmatprep.subr.mxu0 0.0
    %2144 = vmatpush1.xpose.msra.mxu0 0.0
    %2145 = vmatprep.subr.mxu0 0.0
    %2146 = vmatpush1.xpose.msra.mxu0 0.0
    %2147 = vmatprep.subr.mxu0 0.0
    %2148 = vmatpush1.xpose.msra.mxu0 0.0
    %2149 = vmatprep.subr.mxu0 0.0
    %2150 = vmatpush1.xpose.msra.mxu0 0.0
    %2151 = vmatprep.subr.mxu0 0.0
    %2152 = vmatpush1.xpose.msra.mxu0 0.0
    %2153 = vmatprep.subr.mxu0 0.0
    %2154 = vmatpush1.xpose.msra.mxu0 0.0
    %2155 = vmatprep.subr.mxu0 0.0
    %2156 = vmatpush1.xpose.msra.mxu0 0.0
    %2157 = vmatprep.subr.mxu0 0.0
    %2158 = vmatpush1.xpose.msra.mxu0 0.0
    %2159 = vmatprep.subr.mxu0 0.0
    %2160 = vmatpush1.xpose.msra.mxu0 0.0
    %2161 = vmatprep.subr.mxu0 0.0
    %2162 = vmatpush1.xpose.msra.mxu0 0.0
    %2163 = vmatprep.subr.mxu0 0.0
    %2164 = vmatpush1.xpose.msra.mxu0 0.0
    %2165 = vmatprep.subr.mxu0 0.0
    %2166 = vmatpush1.xpose.msra.mxu0 0.0
    %2167 = vmatprep.subr.mxu0 0.0
    %2168 = vmatpush1.xpose.msra.mxu0 0.0
    %2169 = vmatprep.subr.mxu0 0.0
    %2170 = vmatpush1.xpose.msra.mxu0 0.0
    %2171 = vmatprep.subr.mxu0 0.0
    %2172 = vmatpush1.xpose.msra.mxu0 %v2139
    %2173 = vmatprep.subr.mxu0 0.0
    %2174 = vmatpush2.xpose.msra.mxu0 0.0
    %2175 = vmatprep.subr.mxu0 0.0
    %2176 = vmatpush2.xpose.msra.mxu0 0.0
    %2177 = vmatprep.subr.mxu0 0.0
    %2178 = vmatpush2.xpose.msra.mxu0 0.0
    %2179 = vmatprep.subr.mxu0 0.0
    %2180 = vmatpush2.xpose.msra.mxu0 0.0
    %2181 = vmatprep.subr.mxu0 0.0
    %2182 = vmatpush2.xpose.msra.mxu0 0.0
    %2183 = vmatprep.subr.mxu0 0.0
    %2184 = vmatpush2.xpose.msra.mxu0 0.0
    %2185 = vmatprep.subr.mxu0 0.0
    %2186 = vmatpush2.xpose.msra.mxu0 0.0
    %2187 = vmatprep.subr.mxu0 0.0
    %2188 = vmatpush2.xpose.msra.mxu0 0.0
    %2189 = vmatprep.subr.mxu0 0.0
    %2190 = vmatpush2.xpose.msra.mxu0 0.0
    %2191 = vmatprep.subr.mxu0 0.0
    %2192 = vmatpush2.xpose.msra.mxu0 0.0
    %2193 = vmatprep.subr.mxu0 0.0
    %2194 = vmatpush2.xpose.msra.mxu0 0.0
    %2195 = vmatprep.subr.mxu0 0.0
    %2196 = vmatpush2.xpose.msra.mxu0 0.0
    %2197 = vmatprep.subr.mxu0 0.0
    %2198 = vmatpush2.xpose.msra.mxu0 0.0
    %2199 = vmatprep.subr.mxu0 0.0
    %2200 = vmatpush2.xpose.msra.mxu0 0.0
    %2201 = vmatprep.subr.mxu0 0.0
    %2202 = vmatpush2.xpose.msra.mxu0 0.0
    %2203 = vmatprep.subr.mxu0 0.0
    %2204 = vmatpush2.xpose.msra.mxu0 0.0
    %2205 = vmatprep.mubr.f32.mxu0 0.0
    %2206 = vmatmul.mubr.f32.gmra.mxu0 %v2137
    %v2207 = vpop.f32.mrf.mxu0
    %v2208 = vadd.f32 0.0, %v2207
    %v2209 = vpop.f32.mrf.mxu0
    %2210 = vdwg.mxu0
    %v2211 = vmul.f32 %v2130, 0.25
    %v2212 = vmul.f32 %v2208, 0.25
    %v2213 = vadd.f32 %v2211, %v546
    %v2214 = vadd.f32 %v2212, %v550
    %v2215 = vsel %vm555, %v2213, -inf
    %2216 = vmax.xlane.f32.xlu0 %v2215
    %v2217 = vpop.xlane.xlu0 %2216
    %v2218 = vsel %vm555, %v2214, -inf
    %2219 = vmax.xlane.f32.xlu0 %v2218
    %v2220 = vpop.xlane.xlu0 %2219
    %v2221 = vsub.f32 %v2213, %v2217
    %v2222 = vsub.f32 %v2214, %v2220
    %v2223 = vmul.f32 %v2221, 1.442695
    %v2224 = vpow.pop %v2223
    %v2225 = vmul.f32 %v2222, 1.442695
    %v2226 = vpow.pop %v2225
    %v2227 = vsel %vm555, %v2224, 0.0
    %2228 = vadd.xlane.f32.xlu0 %v2227
    %v2229 = vpop.xlane.xlu0 %2228
    %v2230 = vsel %vm555, %v2226, 0.0
    %2231 = vadd.xlane.f32.xlu0 %v2230
    %v2232 = vpop.xlane.xlu0 %2231
    %v2233 = vrcp.pop %v2229
    %v2234 = vrcp.pop %v2232
    %v2235 = vmul.f32 %v2224, %v2233
    %v2236 = vmul.f32 %v2226, %v2234
    %2238 = vrot.lane.b32.xlu0 %v1723, 112
    %v2239 = vpop.permute.xlu0 %2238
    %v2242 = vsel %vm555, %v2235, 0
    %2244 = vmatprep.subr.mxu0 0.0
    %2245 = vmatpush1.msra.mxu0 0.0
    %2246 = vmatprep.subr.mxu0 0.0
    %2247 = vmatpush1.msra.mxu0 0.0
    %2248 = vmatprep.subr.mxu0 0.0
    %2249 = vmatpush1.msra.mxu0 0.0
    %2250 = vmatprep.subr.mxu0 0.0
    %2251 = vmatpush1.msra.mxu0 0.0
    %2252 = vmatprep.subr.mxu0 0.0
    %2253 = vmatpush1.msra.mxu0 0.0
    %2254 = vmatprep.subr.mxu0 0.0
    %2255 = vmatpush1.msra.mxu0 0.0
    %2256 = vmatprep.subr.mxu0 0.0
    %2257 = vmatpush1.msra.mxu0 0.0
    %2258 = vmatprep.subr.mxu0 0.0
    %2259 = vmatpush1.msra.mxu0 0.0
    %2260 = vmatprep.subr.mxu0 0.0
    %2261 = vmatpush1.msra.mxu0 0.0
    %2262 = vmatprep.subr.mxu0 0.0
    %2263 = vmatpush1.msra.mxu0 0.0
    %2264 = vmatprep.subr.mxu0 0.0
    %2265 = vmatpush1.msra.mxu0 0.0
    %2266 = vmatprep.subr.mxu0 0.0
    %2267 = vmatpush1.msra.mxu0 0.0
    %2268 = vmatprep.subr.mxu0 0.0
    %2269 = vmatpush1.msra.mxu0 0.0
    %2270 = vmatprep.subr.mxu0 0.0
    %2271 = vmatpush1.msra.mxu0 0.0
    %2272 = vmatprep.subr.mxu0 0.0
    %2273 = vmatpush1.msra.mxu0 0.0
    %2274 = vmatprep.subr.mxu0 0.0
    %2275 = vmatpush1.msra.mxu0 %v2239
    %2276 = vmatprep.subr.mxu0 0.0
    %2277 = vmatpush2.msra.mxu0 0.0
    %2278 = vmatprep.subr.mxu0 0.0
    %2279 = vmatpush2.msra.mxu0 0.0
    %2280 = vmatprep.subr.mxu0 0.0
    %2281 = vmatpush2.msra.mxu0 0.0
    %2282 = vmatprep.subr.mxu0 0.0
    %2283 = vmatpush2.msra.mxu0 0.0
    %2284 = vmatprep.subr.mxu0 0.0
    %2285 = vmatpush2.msra.mxu0 0.0
    %2286 = vmatprep.subr.mxu0 0.0
    %2287 = vmatpush2.msra.mxu0 0.0
    %2288 = vmatprep.subr.mxu0 0.0
    %2289 = vmatpush2.msra.mxu0 0.0
    %2290 = vmatprep.subr.mxu0 0.0
    %2291 = vmatpush2.msra.mxu0 0.0
    %2292 = vmatprep.subr.mxu0 0.0
    %2293 = vmatpush2.msra.mxu0 0.0
    %2294 = vmatprep.subr.mxu0 0.0
    %2295 = vmatpush2.msra.mxu0 0.0
    %2296 = vmatprep.subr.mxu0 0.0
    %2297 = vmatpush2.msra.mxu0 0.0
    %2298 = vmatprep.subr.mxu0 0.0
    %2299 = vmatpush2.msra.mxu0 0.0
    %2300 = vmatprep.subr.mxu0 0.0
    %2301 = vmatpush2.msra.mxu0 0.0
    %2302 = vmatprep.subr.mxu0 0.0
    %2303 = vmatpush2.msra.mxu0 0.0
    %2304 = vmatprep.subr.mxu0 0.0
    %2305 = vmatpush2.msra.mxu0 0.0
    %2306 = vmatprep.subr.mxu0 0.0
    %2307 = vmatpush2.msra.mxu0 0.0
    %2308 = vmatprep.mubr.f32.mxu0 0.0
    %2309 = vmatmul.mubr.f32.gmra.mxu0 %v2242
    %v2310 = vpop.f32.mrf.mxu0
    %v2311 = vadd.f32 0.0, %v2310
    %v2312 = vpop.f32.mrf.mxu0
    %2313 = vdwg.mxu0
    %2315 = vrot.lane.b32.xlu0 %v1728, 112
    %v2316 = vpop.permute.xlu0 %2315
    %v2319 = vsel %vm555, %v2236, 0
    %2321 = vmatprep.subr.mxu0 0.0
    %2322 = vmatpush1.msra.mxu0 0.0
    %2323 = vmatprep.subr.mxu0 0.0
    %2324 = vmatpush1.msra.mxu0 0.0
    %2325 = vmatprep.subr.mxu0 0.0
    %2326 = vmatpush1.msra.mxu0 0.0
    %2327 = vmatprep.subr.mxu0 0.0
    %2328 = vmatpush1.msra.mxu0 0.0
    %2329 = vmatprep.subr.mxu0 0.0
    %2330 = vmatpush1.msra.mxu0 0.0
    %2331 = vmatprep.subr.mxu0 0.0
    %2332 = vmatpush1.msra.mxu0 0.0
    %2333 = vmatprep.subr.mxu0 0.0
    %2334 = vmatpush1.msra.mxu0 0.0
    %2335 = vmatprep.subr.mxu0 0.0
    %2336 = vmatpush1.msra.mxu0 0.0
    %2337 = vmatprep.subr.mxu0 0.0
    %2338 = vmatpush1.msra.mxu0 0.0
    %2339 = vmatprep.subr.mxu0 0.0
    %2340 = vmatpush1.msra.mxu0 0.0
    %2341 = vmatprep.subr.mxu0 0.0
    %2342 = vmatpush1.msra.mxu0 0.0
    %2343 = vmatprep.subr.mxu0 0.0
    %2344 = vmatpush1.msra.mxu0 0.0
    %2345 = vmatprep.subr.mxu0 0.0
    %2346 = vmatpush1.msra.mxu0 0.0
    %2347 = vmatprep.subr.mxu0 0.0
    %2348 = vmatpush1.msra.mxu0 0.0
    %2349 = vmatprep.subr.mxu0 0.0
    %2350 = vmatpush1.msra.mxu0 0.0
    %2351 = vmatprep.subr.mxu0 0.0
    %2352 = vmatpush1.msra.mxu0 %v2316
    %2353 = vmatprep.subr.mxu0 0.0
    %2354 = vmatpush2.msra.mxu0 0.0
    %2355 = vmatprep.subr.mxu0 0.0
    %2356 = vmatpush2.msra.mxu0 0.0
    %2357 = vmatprep.subr.mxu0 0.0
    %2358 = vmatpush2.msra.mxu0 0.0
    %2359 = vmatprep.subr.mxu0 0.0
    %2360 = vmatpush2.msra.mxu0 0.0
    %2361 = vmatprep.subr.mxu0 0.0
    %2362 = vmatpush2.msra.mxu0 0.0
    %2363 = vmatprep.subr.mxu0 0.0
    %2364 = vmatpush2.msra.mxu0 0.0
    %2365 = vmatprep.subr.mxu0 0.0
    %2366 = vmatpush2.msra.mxu0 0.0
    %2367 = vmatprep.subr.mxu0 0.0
    %2368 = vmatpush2.msra.mxu0 0.0
    %2369 = vmatprep.subr.mxu0 0.0
    %2370 = vmatpush2.msra.mxu0 0.0
    %2371 = vmatprep.subr.mxu0 0.0
    %2372 = vmatpush2.msra.mxu0 0.0
    %2373 = vmatprep.subr.mxu0 0.0
    %2374 = vmatpush2.msra.mxu0 0.0
    %2375 = vmatprep.subr.mxu0 0.0
    %2376 = vmatpush2.msra.mxu0 0.0
    %2377 = vmatprep.subr.mxu0 0.0
    %2378 = vmatpush2.msra.mxu0 0.0
    %2379 = vmatprep.subr.mxu0 0.0
    %2380 = vmatpush2.msra.mxu0 0.0
    %2381 = vmatprep.subr.mxu0 0.0
    %2382 = vmatpush2.msra.mxu0 0.0
    %2383 = vmatprep.subr.mxu0 0.0
    %2384 = vmatpush2.msra.mxu0 0.0
    %2385 = vmatprep.mubr.f32.mxu0 0.0
    %2386 = vmatmul.mubr.f32.gmra.mxu0 %v2319
    %v2387 = vpop.f32.mrf.mxu0
    %v2388 = vadd.f32 0.0, %v2387
    %v2389 = vpop.f32.mrf.mxu0
    %2390 = vdwg.mxu0
    %2393 = vrot.lane.b32.xlu0 %v2311, 16
    %v2394 = vpop.permute.xlu0 %2393
    %2395 = vrot.lane.b32.xlu0 %v2388, 16
    %v2396 = vpop.permute.xlu0 %2395
    %v2399 = vsel %vm386, %v1979, %v2394
    %v2400 = vsel %vm386, %v2052, %v2396
    %s2401 = scalar_lea.vmem %s10, 32
    %v2402 = vld [vmem:[%s2401] sm:$0xff]
    %v2403 = vld [vmem:[%s2401 + $0x8] sm:$0xff]
    %v2404 = vld [vmem:[%s2401 + $0x10] sm:$0xff]
    %v2405 = vld [vmem:[%s2401 + $0x18] sm:$0xff]
    %s2406 = scalar_lea.vmem %s11, 1
    %v2407 = vld [vmem:[%s2406] sm:$0x1]
    %v2409 = vlaneseq
    %v2410 = vshrl.u32 %v2409, 7
    %v2411 = vsub.s32 0, %v2410
    %v2412 = vrot.slane %v2407, %v2411
    %v2415 = vsel %vm78, %v2399, 0
    %v2418 = vsel %vm78, %v2400, 0
    %2420 = vmatprep.subr.mxu0 0.0
    %2421 = vmatpush1.msra.mxu0 0.0
    %2422 = vmatprep.subr.mxu0 0.0
    %2423 = vmatpush1.msra.mxu0 0.0
    %2424 = vmatprep.subr.mxu0 0.0
    %2425 = vmatpush1.msra.mxu0 0.0
    %2426 = vmatprep.subr.mxu0 0.0
    %2427 = vmatpush1.msra.mxu0 0.0
    %2428 = vmatprep.subr.mxu0 0.0
    %2429 = vmatpush1.msra.mxu0 0.0
    %2430 = vmatprep.subr.mxu0 0.0
    %2431 = vmatpush1.msra.mxu0 0.0
    %2432 = vmatprep.subr.mxu0 0.0
    %2433 = vmatpush1.msra.mxu0 0.0
    %2434 = vmatprep.subr.mxu0 0.0
    %2435 = vmatpush1.msra.mxu0 0.0
    %2436 = vmatprep.subr.mxu0 0.0
    %2437 = vmatpush1.msra.mxu0 0.0
    %2438 = vmatprep.subr.mxu0 0.0
    %2439 = vmatpush1.msra.mxu0 0.0
    %2440 = vmatprep.subr.mxu0 0.0
    %2441 = vmatpush1.msra.mxu0 0.0
    %2442 = vmatprep.subr.mxu0 0.0
    %2443 = vmatpush1.msra.mxu0 0.0
    %2444 = vmatprep.subr.mxu0 0.0
    %2445 = vmatpush1.msra.mxu0 %v2405
    %2446 = vmatprep.subr.mxu0 0.0
    %2447 = vmatpush1.msra.mxu0 %v2404
    %2448 = vmatprep.subr.mxu0 0.0
    %2449 = vmatpush1.msra.mxu0 %v2403
    %2450 = vmatprep.subr.mxu0 0.0
    %2451 = vmatpush1.msra.mxu0 %v2402
    %2452 = vmatprep.subr.mxu0 0.0
    %2453 = vmatpush2.msra.mxu0 0.0
    %2454 = vmatprep.subr.mxu0 0.0
    %2455 = vmatpush2.msra.mxu0 0.0
    %2456 = vmatprep.subr.mxu0 0.0
    %2457 = vmatpush2.msra.mxu0 0.0
    %2458 = vmatprep.subr.mxu0 0.0
    %2459 = vmatpush2.msra.mxu0 0.0
    %2460 = vmatprep.subr.mxu0 0.0
    %2461 = vmatpush2.msra.mxu0 0.0
    %2462 = vmatprep.subr.mxu0 0.0
    %2463 = vmatpush2.msra.mxu0 0.0
    %2464 = vmatprep.subr.mxu0 0.0
    %2465 = vmatpush2.msra.mxu0 0.0
    %2466 = vmatprep.subr.mxu0 0.0
    %2467 = vmatpush2.msra.mxu0 0.0
    %2468 = vmatprep.subr.mxu0 0.0
    %2469 = vmatpush2.msra.mxu0 0.0
    %2470 = vmatprep.subr.mxu0 0.0
    %2471 = vmatpush2.msra.mxu0 0.0
    %2472 = vmatprep.subr.mxu0 0.0
    %2473 = vmatpush2.msra.mxu0 0.0
    %2474 = vmatprep.subr.mxu0 0.0
    %2475 = vmatpush2.msra.mxu0 0.0
    %2476 = vmatprep.subr.mxu0 0.0
    %2477 = vmatpush2.msra.mxu0 0.0
    %2478 = vmatprep.subr.mxu0 0.0
    %2479 = vmatpush2.msra.mxu0 0.0
    %2480 = vmatprep.subr.mxu0 0.0
    %2481 = vmatpush2.msra.mxu0 0.0
    %2482 = vmatprep.subr.mxu0 0.0
    %2483 = vmatpush2.msra.mxu0 0.0
    %2484 = vmatprep.mubr.f32.mxu0 0.0
    %2485 = vmatmul.mubr.f32.gmra.mxu0 %v2415
    %v2486 = vpop.f32.mrf.mxu0
    %v2487 = vadd.f32 %v2412, %v2486
    %v2488 = vpop.f32.mrf.mxu0
    %2489 = vmatprep.mubr.f32.mxu0 0.0
    %2490 = vmatmul.mubr.f32.gmra.mxu0 %v2418
    %v2491 = vpop.f32.mrf.mxu0
    %v2492 = vadd.f32 %v2412, %v2491
    %v2493 = vpop.f32.mrf.mxu0
    %2494 = vdwg.mxu0
    %v2495 = vadd.f32 %v1459, %v2487
    %v2496 = vadd.f32 %v1460, %v2492
    %s2497 = scalar_lea.vmem %s12, 1
    %v2498 = vld [vmem:[%s2497] sm:$0x1]
    %s2499 = scalar_lea.vmem %s13, 1
    %v2500 = vld [vmem:[%s2499] sm:$0x1]
    %v2501 = vsel %vm78, %v2495, 0.0
    %2502 = vadd.xlane.f32.xlu0 %v2501
    %v2503 = vpop.xlane.xlu0 %2502
    %v2504 = vsel %vm78, %v2496, 0.0
    %2505 = vadd.xlane.f32.xlu0 %v2504
    %v2506 = vpop.xlane.xlu0 %2505
    %v2507 = vmul.f32 %v2503, %v85
    %v2508 = vmul.f32 %v2506, %v85
    %v2509 = vsub.f32 %v2495, %v2507
    %v2510 = vsub.f32 %v2496, %v2508
    %v2511 = vmul.f32 %v2509, %v2509
    %v2512 = vmul.f32 %v2510, %v2510
    %v2513 = vsel %vm78, %v2511, 0.0
    %2514 = vadd.xlane.f32.xlu0 %v2513
    %v2515 = vpop.xlane.xlu0 %2514
    %v2516 = vsel %vm78, %v2512, 0.0
    %2517 = vadd.xlane.f32.xlu0 %v2516
    %v2518 = vpop.xlane.xlu0 %2517
    %v2519 = vmul.f32 %v2515, %v85
    %v2520 = vmul.f32 %v2518, %v85
    %v2521 = vadd.f32 %v2519, 1e-12
    %v2522 = vadd.f32 %v2520, 1e-12
    %v2523 = vrsqrt.pop %v2521
    %v2524 = vrsqrt.pop %v2522
    %v2525 = vmul.f32 %v2509, %v2523
    %v2526 = vmul.f32 %v2510, %v2524
    %v2528 = vlaneseq
    %v2529 = vshrl.u32 %v2528, 7
    %v2530 = vsub.s32 0, %v2529
    %v2531 = vrot.slane %v2498, %v2530
    %v2533 = vmul.f32 %v2525, %v2531
    %v2534 = vmul.f32 %v2526, %v2531
    %v2536 = vlaneseq
    %v2537 = vshrl.u32 %v2536, 7
    %v2538 = vsub.s32 0, %v2537
    %v2539 = vrot.slane %v2500, %v2538
    %v2541 = vadd.f32 %v2533, %v2539
    %v2542 = vadd.f32 %v2534, %v2539
    %s2543 = scalar_lea.vmem %s14, 32
    %v2544 = vld [vmem:[%s2543] sm:$0xff]
    %v2545 = vld [vmem:[%s2543 + $0x8] sm:$0xff]
    %v2546 = vld [vmem:[%s2543 + $0x10] sm:$0xff]
    %v2547 = vld [vmem:[%s2543 + $0x18] sm:$0xff]
    %s2548 = scalar_lea.vmem %s15, 1
    %v2549 = vld [vmem:[%s2548] sm:$0x1]
    %v2551 = vlaneseq
    %v2552 = vshrl.u32 %v2551, 7
    %v2553 = vsub.s32 0, %v2552
    %v2554 = vrot.slane %v2549, %v2553
    %v2557 = vsel %vm78, %v2541, 0
    %v2560 = vsel %vm78, %v2542, 0
    %2562 = vmatprep.subr.mxu0 0.0
    %2563 = vmatpush1.msra.mxu0 0.0
    %2564 = vmatprep.subr.mxu0 0.0
    %2565 = vmatpush1.msra.mxu0 0.0
    %2566 = vmatprep.subr.mxu0 0.0
    %2567 = vmatpush1.msra.mxu0 0.0
    %2568 = vmatprep.subr.mxu0 0.0
    %2569 = vmatpush1.msra.mxu0 0.0
    %2570 = vmatprep.subr.mxu0 0.0
    %2571 = vmatpush1.msra.mxu0 0.0
    %2572 = vmatprep.subr.mxu0 0.0
    %2573 = vmatpush1.msra.mxu0 0.0
    %2574 = vmatprep.subr.mxu0 0.0
    %2575 = vmatpush1.msra.mxu0 0.0
    %2576 = vmatprep.subr.mxu0 0.0
    %2577 = vmatpush1.msra.mxu0 0.0
    %2578 = vmatprep.subr.mxu0 0.0
    %2579 = vmatpush1.msra.mxu0 0.0
    %2580 = vmatprep.subr.mxu0 0.0
    %2581 = vmatpush1.msra.mxu0 0.0
    %2582 = vmatprep.subr.mxu0 0.0
    %2583 = vmatpush1.msra.mxu0 0.0
    %2584 = vmatprep.subr.mxu0 0.0
    %2585 = vmatpush1.msra.mxu0 0.0
    %2586 = vmatprep.subr.mxu0 0.0
    %2587 = vmatpush1.msra.mxu0 %v2547
    %2588 = vmatprep.subr.mxu0 0.0
    %2589 = vmatpush1.msra.mxu0 %v2546
    %2590 = vmatprep.subr.mxu0 0.0
    %2591 = vmatpush1.msra.mxu0 %v2545
    %2592 = vmatprep.subr.mxu0 0.0
    %2593 = vmatpush1.msra.mxu0 %v2544
    %2594 = vmatprep.subr.mxu0 0.0
    %2595 = vmatpush2.msra.mxu0 0.0
    %2596 = vmatprep.subr.mxu0 0.0
    %2597 = vmatpush2.msra.mxu0 0.0
    %2598 = vmatprep.subr.mxu0 0.0
    %2599 = vmatpush2.msra.mxu0 0.0
    %2600 = vmatprep.subr.mxu0 0.0
    %2601 = vmatpush2.msra.mxu0 0.0
    %2602 = vmatprep.subr.mxu0 0.0
    %2603 = vmatpush2.msra.mxu0 0.0
    %2604 = vmatprep.subr.mxu0 0.0
    %2605 = vmatpush2.msra.mxu0 0.0
    %2606 = vmatprep.subr.mxu0 0.0
    %2607 = vmatpush2.msra.mxu0 0.0
    %2608 = vmatprep.subr.mxu0 0.0
    %2609 = vmatpush2.msra.mxu0 0.0
    %2610 = vmatprep.subr.mxu0 0.0
    %2611 = vmatpush2.msra.mxu0 0.0
    %2612 = vmatprep.subr.mxu0 0.0
    %2613 = vmatpush2.msra.mxu0 0.0
    %2614 = vmatprep.subr.mxu0 0.0
    %2615 = vmatpush2.msra.mxu0 0.0
    %2616 = vmatprep.subr.mxu0 0.0
    %2617 = vmatpush2.msra.mxu0 0.0
    %2618 = vmatprep.subr.mxu0 0.0
    %2619 = vmatpush2.msra.mxu0 0.0
    %2620 = vmatprep.subr.mxu0 0.0
    %2621 = vmatpush2.msra.mxu0 0.0
    %2622 = vmatprep.subr.mxu0 0.0
    %2623 = vmatpush2.msra.mxu0 0.0
    %2624 = vmatprep.subr.mxu0 0.0
    %2625 = vmatpush2.msra.mxu0 0.0
    %2626 = vmatprep.mubr.f32.mxu0 0.0
    %2627 = vmatmul.mubr.f32.gmra.mxu0 %v2557
    %v2628 = vpop.f32.mrf.mxu0
    %v2629 = vadd.f32 %v2554, %v2628
    %v2630 = vpop.f32.mrf.mxu0
    %2631 = vmatprep.mubr.f32.mxu0 0.0
    %2632 = vmatmul.mubr.f32.gmra.mxu0 %v2560
    %v2633 = vpop.f32.mrf.mxu0
    %v2634 = vadd.f32 %v2554, %v2633
    %v2635 = vpop.f32.mrf.mxu0
    %2636 = vdwg.mxu0
    %v2637 = vmul.f32 %v2629, %v2629
    %v2638 = vmul.f32 %v2634, %v2634
    %v2639 = vmul.f32 %v2629, %v2637
    %v2640 = vmul.f32 %v2634, %v2638
    %v2641 = vmul.f32 %v2639, 0.044715
    %v2642 = vmul.f32 %v2640, 0.044715
    %v2643 = vadd.f32 %v2629, %v2641
    %v2644 = vadd.f32 %v2634, %v2642
    %v2645 = vmul.f32 %v2643, 0.7978846
    %v2646 = vmul.f32 %v2644, 0.7978846
    %v2647 = vtanh.pop %v2645
    %v2648 = vtanh.pop %v2646
    %v2649 = vadd.f32 %v2647, 1.0
    %v2650 = vadd.f32 %v2648, 1.0
    %v2651 = vmul.f32 %v2649, 0.5
    %v2652 = vmul.f32 %v2650, 0.5
    %v2653 = vmul.f32 %v2629, %v2651
    %v2654 = vmul.f32 %v2634, %v2652
    %s2655 = scalar_lea.vmem %s16, 64
    %v2656 = vld [vmem:[%s2655] sm:$0xff]
    %v2657 = vld [vmem:[%s2655 + $0x8] sm:$0xff]
    %v2658 = vld [vmem:[%s2655 + $0x10] sm:$0xff]
    %v2659 = vld [vmem:[%s2655 + $0x18] sm:$0xff]
    %v2660 = vld [vmem:[%s2655 + $0x20] sm:$0xff]
    %v2661 = vld [vmem:[%s2655 + $0x28] sm:$0xff]
    %v2662 = vld [vmem:[%s2655 + $0x30] sm:$0xff]
    %v2663 = vld [vmem:[%s2655 + $0x38] sm:$0xff]
    %s2664 = scalar_lea.vmem %s17, 1
    %v2665 = vld [vmem:[%s2664] sm:$0x1]
    %v2667 = vlaneseq
    %v2668 = vshrl.u32 %v2667, 7
    %v2669 = vsub.s32 0, %v2668
    %v2670 = vrot.slane %v2665, %v2669
    %v2673 = vsel %vm1333, %v2653, 0
    %v2676 = vsel %vm1333, %v2654, 0
    %2678 = vmatprep.subr.mxu0 0.0
    %2679 = vmatpush1.msra.mxu0 0.0
    %2680 = vmatprep.subr.mxu0 0.0
    %2681 = vmatpush1.msra.mxu0 0.0
    %2682 = vmatprep.subr.mxu0 0.0
    %2683 = vmatpush1.msra.mxu0 0.0
    %2684 = vmatprep.subr.mxu0 0.0
    %2685 = vmatpush1.msra.mxu0 0.0
    %2686 = vmatprep.subr.mxu0 0.0
    %2687 = vmatpush1.msra.mxu0 0.0
    %2688 = vmatprep.subr.mxu0 0.0
    %2689 = vmatpush1.msra.mxu0 0.0
    %2690 = vmatprep.subr.mxu0 0.0
    %2691 = vmatpush1.msra.mxu0 0.0
    %2692 = vmatprep.subr.mxu0 0.0
    %2693 = vmatpush1.msra.mxu0 0.0
    %2694 = vmatprep.subr.mxu0 0.0
    %2695 = vmatpush1.msra.mxu0 %v2663
    %2696 = vmatprep.subr.mxu0 0.0
    %2697 = vmatpush1.msra.mxu0 %v2662
    %2698 = vmatprep.subr.mxu0 0.0
    %2699 = vmatpush1.msra.mxu0 %v2661
    %2700 = vmatprep.subr.mxu0 0.0
    %2701 = vmatpush1.msra.mxu0 %v2660
    %2702 = vmatprep.subr.mxu0 0.0
    %2703 = vmatpush1.msra.mxu0 %v2659
    %2704 = vmatprep.subr.mxu0 0.0
    %2705 = vmatpush1.msra.mxu0 %v2658
    %2706 = vmatprep.subr.mxu0 0.0
    %2707 = vmatpush1.msra.mxu0 %v2657
    %2708 = vmatprep.subr.mxu0 0.0
    %2709 = vmatpush1.msra.mxu0 %v2656
    %2710 = vmatprep.subr.mxu0 0.0
    %2711 = vmatpush2.msra.mxu0 0.0
    %2712 = vmatprep.subr.mxu0 0.0
    %2713 = vmatpush2.msra.mxu0 0.0
    %2714 = vmatprep.subr.mxu0 0.0
    %2715 = vmatpush2.msra.mxu0 0.0
    %2716 = vmatprep.subr.mxu0 0.0
    %2717 = vmatpush2.msra.mxu0 0.0
    %2718 = vmatprep.subr.mxu0 0.0
    %2719 = vmatpush2.msra.mxu0 0.0
    %2720 = vmatprep.subr.mxu0 0.0
    %2721 = vmatpush2.msra.mxu0 0.0
    %2722 = vmatprep.subr.mxu0 0.0
    %2723 = vmatpush2.msra.mxu0 0.0
    %2724 = vmatprep.subr.mxu0 0.0
    %2725 = vmatpush2.msra.mxu0 0.0
    %2726 = vmatprep.subr.mxu0 0.0
    %2727 = vmatpush2.msra.mxu0 0.0
    %2728 = vmatprep.subr.mxu0 0.0
    %2729 = vmatpush2.msra.mxu0 0.0
    %2730 = vmatprep.subr.mxu0 0.0
    %2731 = vmatpush2.msra.mxu0 0.0
    %2732 = vmatprep.subr.mxu0 0.0
    %2733 = vmatpush2.msra.mxu0 0.0
    %2734 = vmatprep.subr.mxu0 0.0
    %2735 = vmatpush2.msra.mxu0 0.0
    %2736 = vmatprep.subr.mxu0 0.0
    %2737 = vmatpush2.msra.mxu0 0.0
    %2738 = vmatprep.subr.mxu0 0.0
    %2739 = vmatpush2.msra.mxu0 0.0
    %2740 = vmatprep.subr.mxu0 0.0
    %2741 = vmatpush2.msra.mxu0 0.0
    %2742 = vmatprep.mubr.f32.mxu0 0.0
    %2743 = vmatmul.mubr.f32.gmra.mxu0 %v2673
    %v2744 = vpop.f32.mrf.mxu0
    %v2745 = vadd.f32 %v2670, %v2744
    %v2746 = vpop.f32.mrf.mxu0
    %2747 = vmatprep.mubr.f32.mxu0 0.0
    %2748 = vmatmul.mubr.f32.gmra.mxu0 %v2676
    %v2749 = vpop.f32.mrf.mxu0
    %v2750 = vadd.f32 %v2670, %v2749
    %v2751 = vpop.f32.mrf.mxu0
    %2752 = vdwg.mxu0
    %v2753 = vadd.f32 %v2541, %v2745
    %v2754 = vadd.f32 %v2542, %v2750
    %s2755 = scalar_lea.vmem %s18, 1
    %v2756 = vld [vmem:[%s2755] sm:$0x1]
    %s2757 = scalar_lea.vmem %s19, 1
    %v2758 = vld [vmem:[%s2757] sm:$0x1]
    %v2759 = vsel %vm78, %v2753, 0.0
    %2760 = vadd.xlane.f32.xlu0 %v2759
    %v2761 = vpop.xlane.xlu0 %2760
    %v2762 = vsel %vm78, %v2754, 0.0
    %2763 = vadd.xlane.f32.xlu0 %v2762
    %v2764 = vpop.xlane.xlu0 %2763
    %v2765 = vmul.f32 %v2761, %v85
    %v2766 = vmul.f32 %v2764, %v85
    %v2767 = vsub.f32 %v2753, %v2765
    %v2768 = vsub.f32 %v2754, %v2766
    %v2769 = vmul.f32 %v2767, %v2767
    %v2770 = vmul.f32 %v2768, %v2768
    %v2771 = vsel %vm78, %v2769, 0.0
    %2772 = vadd.xlane.f32.xlu0 %v2771
    %v2773 = vpop.xlane.xlu0 %2772
    %v2774 = vsel %vm78, %v2770, 0.0
    %2775 = vadd.xlane.f32.xlu0 %v2774
    %v2776 = vpop.xlane.xlu0 %2775
    %v2777 = vmul.f32 %v2773, %v85
    %v2778 = vmul.f32 %v2776, %v85
    %v2779 = vadd.f32 %v2777, 1e-12
    %v2780 = vadd.f32 %v2778, 1e-12
    %v2781 = vrsqrt.pop %v2779
    %v2782 = vrsqrt.pop %v2780
    %v2783 = vmul.f32 %v2767, %v2781
    %v2784 = vmul.f32 %v2768, %v2782
    %v2786 = vlaneseq
    %v2787 = vshrl.u32 %v2786, 7
    %v2788 = vsub.s32 0, %v2787
    %v2789 = vrot.slane %v2756, %v2788
    %v2791 = vmul.f32 %v2783, %v2789
    %v2792 = vmul.f32 %v2784, %v2789
    %v2794 = vlaneseq
    %v2795 = vshrl.u32 %v2794, 7
    %v2796 = vsub.s32 0, %v2795
    %v2797 = vrot.slane %v2758, %v2796
    %v2799 = vadd.f32 %v2791, %v2797
    %v2800 = vadd.f32 %v2792, %v2797
    %v2801 = vld [vmem:[%s20] sm:$0xff]
    %v2802 = vld [vmem:[%s20 + $0x8] sm:$0xff]
    %v2803 = vld [vmem:[%s20 + $0x10] sm:$0xff]
    %v2804 = vld [vmem:[%s20 + $0x18] sm:$0xff]
    %v2805 = vld [vmem:[%s21] sm:$0x1]
    %v2807 = vlaneseq
    %v2808 = vshrl.u32 %v2807, 7
    %v2809 = vsub.s32 0, %v2808
    %v2810 = vrot.slane %v2805, %v2809
    %v2814 = vrot.slane %v2800, 7
    %vm2815 = vcmask 1041409
    %v2816 = vsel %vm2815, %v2814, %v2799
    %v2817 = vsel %vm78, %v2816, 0
    %2819 = vmatprep.subr.mxu0 0.0
    %2820 = vmatpush1.msra.mxu0 0.0
    %2821 = vmatprep.subr.mxu0 0.0
    %2822 = vmatpush1.msra.mxu0 0.0
    %2823 = vmatprep.subr.mxu0 0.0
    %2824 = vmatpush1.msra.mxu0 0.0
    %2825 = vmatprep.subr.mxu0 0.0
    %2826 = vmatpush1.msra.mxu0 0.0
    %2827 = vmatprep.subr.mxu0 0.0
    %2828 = vmatpush1.msra.mxu0 0.0
    %2829 = vmatprep.subr.mxu0 0.0
    %2830 = vmatpush1.msra.mxu0 0.0
    %2831 = vmatprep.subr.mxu0 0.0
    %2832 = vmatpush1.msra.mxu0 0.0
    %2833 = vmatprep.subr.mxu0 0.0
    %2834 = vmatpush1.msra.mxu0 0.0
    %2835 = vmatprep.subr.mxu0 0.0
    %2836 = vmatpush1.msra.mxu0 0.0
    %2837 = vmatprep.subr.mxu0 0.0
    %2838 = vmatpush1.msra.mxu0 0.0
    %2839 = vmatprep.subr.mxu0 0.0
    %2840 = vmatpush1.msra.mxu0 0.0
    %2841 = vmatprep.subr.mxu0 0.0
    %2842 = vmatpush1.msra.mxu0 0.0
    %2843 = vmatprep.subr.mxu0 0.0
    %2844 = vmatpush1.msra.mxu0 %v2804
    %2845 = vmatprep.subr.mxu0 0.0
    %2846 = vmatpush1.msra.mxu0 %v2803
    %2847 = vmatprep.subr.mxu0 0.0
    %2848 = vmatpush1.msra.mxu0 %v2802
    %2849 = vmatprep.subr.mxu0 0.0
    %2850 = vmatpush1.msra.mxu0 %v2801
    %2851 = vmatprep.subr.mxu0 0.0
    %2852 = vmatpush2.msra.mxu0 0.0
    %2853 = vmatprep.subr.mxu0 0.0
    %2854 = vmatpush2.msra.mxu0 0.0
    %2855 = vmatprep.subr.mxu0 0.0
    %2856 = vmatpush2.msra.mxu0 0.0
    %2857 = vmatprep.subr.mxu0 0.0
    %2858 = vmatpush2.msra.mxu0 0.0
    %2859 = vmatprep.subr.mxu0 0.0
    %2860 = vmatpush2.msra.mxu0 0.0
    %2861 = vmatprep.subr.mxu0 0.0
    %2862 = vmatpush2.msra.mxu0 0.0
    %2863 = vmatprep.subr.mxu0 0.0
    %2864 = vmatpush2.msra.mxu0 0.0
    %2865 = vmatprep.subr.mxu0 0.0
    %2866 = vmatpush2.msra.mxu0 0.0
    %2867 = vmatprep.subr.mxu0 0.0
    %2868 = vmatpush2.msra.mxu0 0.0
    %2869 = vmatprep.subr.mxu0 0.0
    %2870 = vmatpush2.msra.mxu0 0.0
    %2871 = vmatprep.subr.mxu0 0.0
    %2872 = vmatpush2.msra.mxu0 0.0
    %2873 = vmatprep.subr.mxu0 0.0
    %2874 = vmatpush2.msra.mxu0 0.0
    %2875 = vmatprep.subr.mxu0 0.0
    %2876 = vmatpush2.msra.mxu0 0.0
    %2877 = vmatprep.subr.mxu0 0.0
    %2878 = vmatpush2.msra.mxu0 0.0
    %2879 = vmatprep.subr.mxu0 0.0
    %2880 = vmatpush2.msra.mxu0 0.0
    %2881 = vmatprep.subr.mxu0 0.0
    %2882 = vmatpush2.msra.mxu0 0.0
    %2883 = vmatprep.mubr.f32.mxu0 0.0
    %2884 = vmatmul.mubr.f32.gmra.mxu0 %v2817
    %v2885 = vpop.f32.mrf.mxu0
    %v2886 = vadd.f32 %v2810, %v2885
    %v2887 = vpop.f32.mrf.mxu0
    %2888 = vdwg.mxu0
    %2889 = vst [vmem:[#allocation2] sm:$0x3] %v2886
    // Predicated region
    $region90: #{bert_sent_classifier.1} parent=1 // pred_check
      _
    $region91: #{bert_sent_classifier.1} parent=1 // pred_check_branch
      %2891 = sbr.rel (0) target = $region93
    $region92: #{bert_sent_classifier.1} parent=1 // pred_region
      %s2893 = ssub.s32 32, 32
      %2894 = vsyncadd [#allocation3], %s2893
      %s2896 = sshll.u32 [#allocation2], 4
      %s2897 = int_to_ptr.vmem [resolvable:$true] %s2896
      %2899 = dma.vmem_to_hbm [thread:$0]  %s2897, 32, %s22, [#allocation3]
    $region93: #{bert_sent_classifier.1} parent=1 // pred_fallthru
      _
    // Predicated region
    $region94: #{bert_sent_classifier.1} parent=1 // pred_check
      _
    $region95: #{bert_sent_classifier.1} parent=1 // pred_check_branch
      %2901 = sbr.rel (0) target = $region97
    $region96: #{bert_sent_classifier.1} parent=1 // pred_region
      %2902 = dma.done [#allocation3], 32
    $region97: #{bert_sent_classifier.1} parent=1 // pred_fallthru
      _
    %2903 = vsyncpa [#allocation3], 1

</llo_original>
